<compile_context>
chip_gen: v5e
topology: v5e:2x2
jax: 0.10.0
libtpu: 0.0.40
codegen_flags: <defaults>
</compile_context>

<pallas_src>
import jax
import jax.numpy as jnp
from jax import lax
from jax.experimental import pallas as pl
from jax.experimental.pallas import tpu as pltpu

EPS = 1e-5
LANE = 128


def _round_up(x, m):
    return (x + m - 1) // m * m


def _layer_norm_padded(x, gamma, beta, n_real, n_pad):
    """LayerNorm over the last dim of a zero-padded (T, Ep) f32 array.

    Padded columns of `x` must be exactly zero; `gamma`/`beta` are zero in the
    padded columns, so the padded outputs stay zero.  Mean/variance use the true
    feature count `n_real` (biased variance, matching PyTorch)."""
    s = jnp.sum(x, axis=-1, keepdims=True)
    mu = s * (1.0 / n_real)
    xc = x - mu
    ssq = jnp.sum(xc * xc, axis=-1, keepdims=True) - n_pad * (mu * mu)
    var = ssq * (1.0 / n_real)
    return xc * lax.rsqrt(var + EPS) * gamma + beta


def make_transformer_block_kernel(num_heads, head_dim, block_q, e_real, e_pad):
    H, D = num_heads, head_dim
    n_real = float(e_real)
    n_pad = float(e_pad - e_real)
    scale = 1.0 / (D ** 0.5)

    def kernel(x_ref,                                    # (S, Ep) f32 (batch squeezed)
               wq_ref, bq_ref, wk_ref, bk_ref,           # (H,Ep,D) bf16, (H,1,D) f32
               wv_ref, bv_ref,
               wo_ref, bo_ref,                           # (H,D,Ep) bf16, (1,Ep) f32
               g1_ref, b1_ref,                           # LayerNorm1 (1,Ep) f32
               w1_ref, bb1_ref,                          # FF1 (Ep,FFp) bf16, (1,FFp) f32
               w2_ref, bb2_ref,                          # FF2 (FFp,Ep) bf16, (1,Ep) f32
               g2_ref, b2_ref,                           # LayerNorm2 (1,Ep) f32
               o_ref,                                    # (Tq, Ep)
               k_scr, v_scr):                            # (H, S, D) bf16 scratch
        f32 = jnp.float32
        cdt = wq_ref.dtype                               # GEMM operand dtype (bf16)
        qi = pl.program_id(1)

        # --- K/V projection cache: compute once per batch element, reuse -------
        @pl.when(qi == 0)
        def _():
            xkv_c = x_ref[...].astype(cdt)               # (S, Ep) bf16
            for h in range(H):
                kh = jnp.dot(xkv_c, wk_ref[h], preferred_element_type=f32) + bk_ref[h]
                vh = jnp.dot(xkv_c, wv_ref[h], preferred_element_type=f32) + bv_ref[h]
                k_scr[h] = kh.astype(cdt)                # only bf16 copies stay live
                v_scr[h] = vh.astype(cdt)

        # --- query / residual tile sliced from the resident sequence block -----
        q_start = pl.multiple_of(qi * block_q, block_q)
        xq = x_ref[pl.ds(q_start, block_q), :]           # (Tq, Ep) f32, padded cols = 0
        xq_c = xq.astype(cdt)

        # --- per-head attention, out-projection folded per head (no concat) ----
        # TODO(synk): switch to lax.fori_loop(..., unroll=True) if H grows large.
        attn = jnp.zeros(xq.shape, f32)
        for h in range(H):
            qh = jnp.dot(xq_c, wq_ref[h], preferred_element_type=f32) + bq_ref[h]
            qh = (qh * scale).astype(cdt)                # (Tq, D), 1/sqrt(D) folded
            kh = k_scr[h]                                # (S, D) bf16
            vh = v_scr[h]
            # QK^T via dot_general contracting last dims (no in-kernel transpose)
            s = lax.dot_general(qh, kh, (((1,), (1,)), ((), ())),
                                preferred_element_type=f32)          # (Tq, S)
            s = s - jnp.max(s, axis=-1, keepdims=True)
            p = jnp.exp(s)
            p = p * pl.reciprocal(jnp.sum(p, axis=-1, keepdims=True), approx=True)
            head = jnp.dot(p.astype(cdt), vh, preferred_element_type=f32)  # (Tq, D)
            attn = attn + jnp.dot(head.astype(cdt), wo_ref[h],
                                  preferred_element_type=f32)        # (Tq, Ep)
        attn = attn + bo_ref[...]

        # --- residual + LayerNorm1 ---------------------------------------------
        x1 = _layer_norm_padded(xq + attn, g1_ref[...], b1_ref[...], n_real, n_pad)

        # --- feed-forward (bf16 operands, f32 accumulation) ---------------------
        h1 = jnp.maximum(
            jnp.dot(x1.astype(cdt), w1_ref[...], preferred_element_type=f32)
            + bb1_ref[...], 0.0)
        ff = jnp.dot(h1.astype(cdt), w2_ref[...], preferred_element_type=f32) + bb2_ref[...]

        # --- residual + LayerNorm2, lane-dense store -----------------------------
        o_ref[...] = _layer_norm_padded(x1 + ff, g2_ref[...], b2_ref[...],
                                        n_real, n_pad).astype(o_ref.dtype)

    return kernel


def _vmem_limit_bytes(S, Ep, FFp, block_q, H, D, weights, weight_bufs):
    weight_bytes = weight_bufs * sum(int(w.size) * w.dtype.itemsize for w in weights)
    io_bytes = 2 * 4 * (S * Ep + block_q * Ep)           # double-buffered x block + out tile
    kv_bytes = 2 * 2 * H * S * D                         # bf16 K/V scratch caches
    tmp_bytes = 4 * (4 * block_q * Ep + block_q * S + block_q * FFp + S * Ep)
    need = weight_bytes + io_bytes + kv_bytes + tmp_bytes
    try:
        cap = int(pltpu.get_tpu_info().vmem_capacity_bytes)
    except Exception:                                    # pragma: no cover
        cap = 64 * 1024 * 1024                           # v7x per-TC floor (safe everywhere)
    return int(min(max(2 * need, 8 * 1024 * 1024), (cap * 7) // 8))


def transformer_block(x, params, num_heads, *, block_q=None,
                      compute_dtype=jnp.bfloat16, single_buffer_weights=True):
    """x: (S, B, E) float32 -> (S, B, E), matching PyTorch TransformerBlock.forward
    (eval-mode semantics: dropout = identity)."""
    S, B, E = x.shape
    FF = params["w1"].shape[0]
    H = num_heads
    assert E % H == 0
    D = E // H

    Ep = _round_up(E, LANE)
    FFp = _round_up(FF, LANE)
    ep_pad, ff_pad = Ep - E, FFp - FF

    if block_q is None:
        # Larger tiles amortize the ~0.35us per-grid-step overhead (v5e/v6e have
        # 128 MiB VMEM); keep the (block_q, S) score buffer in budget on v7x.
        block_q = S if S <= 256 else 256
    assert S % block_q == 0

    f32 = jnp.float32
    xb = jnp.pad(jnp.transpose(x, (1, 0, 2)).astype(f32),
                 ((0, 0), (0, 0), (0, ep_pad)))          # (B, S, Ep), pad cols = 0

    # --- host-side weight prep: per-head panels, pad, transpose, cast -----------
    in_w, in_b = params["in_w"], params["in_b"]          # (3E, E), (3E,)

    def head_panels(w_full):                             # (E,E) torch (out,in) -> (H,Ep,D)
        p = jnp.transpose(w_full.reshape(H, D, E), (0, 2, 1))        # (H, E, D)
        return jnp.pad(p, ((0, 0), (0, ep_pad), (0, 0))).astype(compute_dtype)

    def head_bias(b_full):                               # (E,) -> (H, 1, D)
        return b_full.reshape(H, 1, D).astype(f32)

    wq, bq = head_panels(in_w[:E]), head_bias(in_b[:E])
    wk, bk = head_panels(in_w[E:2 * E]), head_bias(in_b[E:2 * E])
    wv, bv = head_panels(in_w[2 * E:]), head_bias(in_b[2 * E:])

    # out-projection, folded per head: wo[h] = out_w[:, hD:(h+1)D].T, padded cols
    wo = jnp.pad(jnp.transpose(params["out_w"].reshape(E, H, D), (1, 2, 0)),
                 ((0, 0), (0, 0), (0, ep_pad))).astype(compute_dtype)      # (H, D, Ep)
    bo = jnp.pad(params["out_b"], (0, ep_pad)).reshape(1, Ep).astype(f32)

    g1 = jnp.pad(params["g1"], (0, ep_pad)).reshape(1, Ep).astype(f32)
    b1 = jnp.pad(params["b1"], (0, ep_pad)).reshape(1, Ep).astype(f32)
    w1 = jnp.pad(params["w1"].T, ((0, ep_pad), (0, ff_pad))).astype(compute_dtype)
    bb1 = jnp.pad(params["bb1"], (0, ff_pad)).reshape(1, FFp).astype(f32)
    w2 = jnp.pad(params["w2"].T, ((0, ff_pad), (0, ep_pad))).astype(compute_dtype)
    bb2 = jnp.pad(params["bb2"], (0, ep_pad)).reshape(1, Ep).astype(f32)
    g2 = jnp.pad(params["g2"], (0, ep_pad)).reshape(1, Ep).astype(f32)
    b2 = jnp.pad(params["b2"], (0, ep_pad)).reshape(1, Ep).astype(f32)

    weights = [wq, bq, wk, bk, wv, bv, wo, bo,
               g1, b1, w1, bb1, w2, bb2, g2, b2]

    kernel = make_transformer_block_kernel(H, D, block_q, E, Ep)
    grid = (B, S // block_q)

    def w_spec(w):
        imap = (lambda b, qi: (0, 0, 0)) if w.ndim == 3 else (lambda b, qi: (0, 0))
        if single_buffer_weights:
            # Constant index_map -> double-buffering buys nothing; halve weight VMEM.
            return pl.BlockSpec(w.shape, imap, pipeline_mode=pl.Buffered(1))
        return pl.BlockSpec(w.shape, imap)

    out = pl.pallas_call(
        kernel,
        out_shape=jax.ShapeDtypeStruct((B, S, Ep), x.dtype),
        grid=grid,
        in_specs=[
            # Full padded sequence (residual + K/V source), resident across q-tiles.
            pl.BlockSpec((None, S, Ep), lambda b, qi: (b, 0, 0)),
        ] + [w_spec(w) for w in weights],
        out_specs=pl.BlockSpec((None, block_q, Ep), lambda b, qi: (b, qi, 0)),
        scratch_shapes=[pltpu.VMEM((H, S, D), compute_dtype),    # K cache
                        pltpu.VMEM((H, S, D), compute_dtype)],   # V cache
        compiler_params=pltpu.CompilerParams(
            dimension_semantics=("parallel", "arbitrary"),
            vmem_limit_bytes=_vmem_limit_bytes(
                S, Ep, FFp, block_q, H, D, weights,
                1 if single_buffer_weights else 2)),
    )(xb, *weights)

    return jnp.transpose(out, (1, 0, 2))[:, :, :E]        # strip E padding


def init_params(key, embed_dim, ff_dim):
    """Parameters in PyTorch layout (MultiheadAttention / Linear conventions)."""
    E, FF = embed_dim, ff_dim
    ks = jax.random.split(key, 6)
    scale = 0.02
    return {
        "in_w": jax.random.normal(ks[0], (3 * E, E), jnp.float32) * scale,
        "in_b": jax.random.normal(ks[1], (3 * E,), jnp.float32) * scale,
        "out_w": jax.random.normal(ks[2], (E, E), jnp.float32) * scale,
        "out_b": jax.random.normal(ks[3], (E,), jnp.float32) * scale,
        "g1": jnp.ones((E,), jnp.float32),
        "b1": jnp.zeros((E,), jnp.float32),
        "w1": jax.random.normal(ks[4], (FF, E), jnp.float32) * scale,
        "bb1": jnp.zeros((FF,), jnp.float32),
        "w2": jax.random.normal(ks[5], (E, FF), jnp.float32) * scale,
        "bb2": jnp.zeros((E,), jnp.float32),
        "g2": jnp.ones((E,), jnp.float32),
        "b2": jnp.zeros((E,), jnp.float32),
    }


def reference_transformer_block(x, params, num_heads):
    """Pure-JAX f32 reference reproducing PyTorch semantics (eval mode)."""
    S, B, E = x.shape
    D = E // num_heads
    qkv = jnp.einsum("sbe,fe->sbf", x, params["in_w"]) + params["in_b"]
    q, k, v = qkv[..., :E], qkv[..., E:2 * E], qkv[..., 2 * E:]

    def split_heads(t):  # (S,B,E) -> (B,H,S,D)
        return jnp.transpose(t.reshape(S, B, num_heads, D), (1, 2, 0, 3))

    qh, kh, vh = split_heads(q), split_heads(k), split_heads(v)
    scores = jnp.einsum("bhsd,bhtd->bhst", qh, kh) / jnp.sqrt(jnp.float32(D))
    probs = jax.nn.softmax(scores, axis=-1)
    attn = jnp.einsum("bhst,bhtd->bhsd", probs, vh)
    attn = jnp.transpose(attn, (2, 0, 1, 3)).reshape(S, B, E)
    attn = jnp.einsum("sbe,fe->sbf", attn, params["out_w"]) + params["out_b"]

    def ln(t, g, b):
        mu = jnp.mean(t, axis=-1, keepdims=True)
        var = jnp.mean((t - mu) ** 2, axis=-1, keepdims=True)
        return (t - mu) / jnp.sqrt(var + EPS) * g + b

    x1 = ln(x + attn, params["g1"], params["b1"])
    h1 = jax.nn.relu(jnp.einsum("sbe,fe->sbf", x1, params["w1"]) + params["bb1"])
    ff = jnp.einsum("sbf,ef->sbe", h1, params["w2"]) + params["bb2"]
    return ln(x1 + ff, params["g2"], params["b2"])


if __name__ == "__main__":
    # Small shapes consistent with the module: seq=8, batch=2, embed=32, heads=4, ff=64
    S, B, E, H, FF = 8, 2, 32, 4, 64

    key = jax.random.PRNGKey(0)
    k_x, k_p = jax.random.split(key)
    x = jax.random.normal(k_x, (S, B, E), jnp.float32)
    params = init_params(k_p, E, FF)

    try:
        out = jax.block_until_ready(transformer_block(x, params, H))
    except Exception:
        # Fallback: if single-buffered weight pipelining (Buffered(1)) is not
        # supported by this jax build, rerun with default double buffering.
        out = jax.block_until_ready(
            transformer_block(x, params, H, single_buffer_weights=False))
    ref = reference_transformer_block(x, params, H)

    assert out.shape == (S, B, E)
    # bf16 matmul operands + approx reciprocal -> looser tolerance vs f32 reference.
    max_err = float(jnp.max(jnp.abs(out - ref)))
    assert jnp.allclose(out, ref, atol=2e-2, rtol=2e-2), \
        f"mismatch vs reference (max abs err {max_err})"

    print("KERNEL_OK")
</pallas_src>

<mosaic_0001>
module attributes {stable_mosaic.version = 11 : i64} {
  func.func @kernel(%arg0: i32, %arg1: i32, %arg2: memref<1x8x128xf32, #tpu.memory_space<vmem>>, %arg3: memref<4x128x8xbf16, #tpu.memory_space<vmem>>, %arg4: memref<4x1x8xf32, #tpu.memory_space<vmem>>, %arg5: memref<4x128x8xbf16, #tpu.memory_space<vmem>>, %arg6: memref<4x1x8xf32, #tpu.memory_space<vmem>>, %arg7: memref<4x128x8xbf16, #tpu.memory_space<vmem>>, %arg8: memref<4x1x8xf32, #tpu.memory_space<vmem>>, %arg9: memref<4x8x128xbf16, #tpu.memory_space<vmem>>, %arg10: memref<1x128xf32, #tpu.memory_space<vmem>>, %arg11: memref<1x128xf32, #tpu.memory_space<vmem>>, %arg12: memref<1x128xf32, #tpu.memory_space<vmem>>, %arg13: memref<128x128xbf16, #tpu.memory_space<vmem>>, %arg14: memref<1x128xf32, #tpu.memory_space<vmem>>, %arg15: memref<128x128xbf16, #tpu.memory_space<vmem>>, %arg16: memref<1x128xf32, #tpu.memory_space<vmem>>, %arg17: memref<1x128xf32, #tpu.memory_space<vmem>>, %arg18: memref<1x128xf32, #tpu.memory_space<vmem>>, %arg19: memref<1x8x128xf32, #tpu.memory_space<vmem>>, %arg20: memref<4x8x8xbf16, #tpu.memory_space<vmem>>, %arg21: memref<4x8x8xbf16, #tpu.memory_space<vmem>>) attributes {dimension_semantics = [#tpu.dimension_semantics<parallel>, #tpu.dimension_semantics<arbitrary>], iteration_bounds = array<i64: 2, 1>, scalar_prefetch = 0 : i64, scratch_operands = 2 : i64, tpu.core_type = #tpu.core_type<tc>, window_params = [{transform_indices = @transform_0, window_bounds = array<i64: 1, 8, 128>}, {pipeline_mode = #tpu.pipeline_mode<synchronous>, transform_indices = @transform_1, window_bounds = array<i64: 4, 128, 8>}, {pipeline_mode = #tpu.pipeline_mode<synchronous>, transform_indices = @transform_2, window_bounds = array<i64: 4, 1, 8>}, {pipeline_mode = #tpu.pipeline_mode<synchronous>, transform_indices = @transform_3, window_bounds = array<i64: 4, 128, 8>}, {pipeline_mode = #tpu.pipeline_mode<synchronous>, transform_indices = @transform_4, window_bounds = array<i64: 4, 1, 8>}, {pipeline_mode = #tpu.pipeline_mode<synchronous>, transform_indices = @transform_5, window_bounds = array<i64: 4, 128, 8>}, {pipeline_mode = #tpu.pipeline_mode<synchronous>, transform_indices = @transform_6, window_bounds = array<i64: 4, 1, 8>}, {pipeline_mode = #tpu.pipeline_mode<synchronous>, transform_indices = @transform_7, window_bounds = array<i64: 4, 8, 128>}, {pipeline_mode = #tpu.pipeline_mode<synchronous>, transform_indices = @transform_8, window_bounds = array<i64: 1, 128>}, {pipeline_mode = #tpu.pipeline_mode<synchronous>, transform_indices = @transform_9, window_bounds = array<i64: 1, 128>}, {pipeline_mode = #tpu.pipeline_mode<synchronous>, transform_indices = @transform_10, window_bounds = array<i64: 1, 128>}, {pipeline_mode = #tpu.pipeline_mode<synchronous>, transform_indices = @transform_11, window_bounds = array<i64: 128, 128>}, {pipeline_mode = #tpu.pipeline_mode<synchronous>, transform_indices = @transform_12, window_bounds = array<i64: 1, 128>}, {pipeline_mode = #tpu.pipeline_mode<synchronous>, transform_indices = @transform_13, window_bounds = array<i64: 128, 128>}, {pipeline_mode = #tpu.pipeline_mode<synchronous>, transform_indices = @transform_14, window_bounds = array<i64: 1, 128>}, {pipeline_mode = #tpu.pipeline_mode<synchronous>, transform_indices = @transform_15, window_bounds = array<i64: 1, 128>}, {pipeline_mode = #tpu.pipeline_mode<synchronous>, transform_indices = @transform_16, window_bounds = array<i64: 1, 128>}, {transform_indices = @transform_17, window_bounds = array<i64: 1, 8, 128>}]} {
    %c0_i32 = arith.constant 0 : i32
    %0 = arith.cmpi eq, %arg1, %c0_i32 : i32
    %1 = arith.extui %0 : i1 to i32
    %c0_i32_0 = arith.constant 0 : i32
    %2 = arith.cmpi ne, %1, %c0_i32_0 : i32
    scf.if %2 {
      %c0_123 = arith.constant 0 : index
      %c0_124 = arith.constant 0 : index
      %c0_125 = arith.constant 0 : index
      %212 = vector.load %arg2[%c0_123, %c0_124, %c0_125] : memref<1x8x128xf32, #tpu.memory_space<vmem>>, vector<1x8x128xf32>
      %213 = vector.shape_cast %212 : vector<1x8x128xf32> to vector<8x128xf32>
      %214 = arith.truncf %213 : vector<8x128xf32> to vector<8x128xbf16>
      %c0_126 = arith.constant 0 : index
      %c0_127 = arith.constant 0 : index
      %c0_128 = arith.constant 0 : index
      %215 = vector.load %arg5[%c0_126, %c0_127, %c0_128] : memref<4x128x8xbf16, #tpu.memory_space<vmem>>, vector<1x128x8xbf16>
      %216 = vector.shape_cast %215 : vector<1x128x8xbf16> to vector<128x8xbf16>
      %cst_129 = arith.constant dense<0.000000e+00> : vector<8x8xf32>
      %217 = tpu.matmul %214, %216, %cst_129 {dimension_numbers = #tpu.dot_dimension_numbers<[1], [0], [0], [1], [0, 0, 1, 1], [], []>} : vector<8x128xbf16>, vector<128x8xbf16>, vector<8x8xf32> -> vector<8x8xf32>
      %c0_130 = arith.constant 0 : index
      %c0_131 = arith.constant 0 : index
      %c0_132 = arith.constant 0 : index
      %218 = vector.load %arg6[%c0_130, %c0_131, %c0_132] : memref<4x1x8xf32, #tpu.memory_space<vmem>>, vector<1x1x8xf32>
      %219 = vector.shape_cast %218 : vector<1x1x8xf32> to vector<1x8xf32>
      %220 = vector.broadcast %219 : vector<1x8xf32> to vector<8x8xf32>
      %221 = arith.addf %217, %220 : vector<8x8xf32>
      %c0_133 = arith.constant 0 : index
      %c0_134 = arith.constant 0 : index
      %c0_135 = arith.constant 0 : index
      %222 = vector.load %arg7[%c0_133, %c0_134, %c0_135] : memref<4x128x8xbf16, #tpu.memory_space<vmem>>, vector<1x128x8xbf16>
      %223 = vector.shape_cast %222 : vector<1x128x8xbf16> to vector<128x8xbf16>
      %cst_136 = arith.constant dense<0.000000e+00> : vector<8x8xf32>
      %224 = tpu.matmul %214, %223, %cst_136 {dimension_numbers = #tpu.dot_dimension_numbers<[1], [0], [0], [1], [0, 0, 1, 1], [], []>} : vector<8x128xbf16>, vector<128x8xbf16>, vector<8x8xf32> -> vector<8x8xf32>
      %c0_137 = arith.constant 0 : index
      %c0_138 = arith.constant 0 : index
      %c0_139 = arith.constant 0 : index
      %225 = vector.load %arg8[%c0_137, %c0_138, %c0_139] : memref<4x1x8xf32, #tpu.memory_space<vmem>>, vector<1x1x8xf32>
      %226 = vector.shape_cast %225 : vector<1x1x8xf32> to vector<1x8xf32>
      %227 = vector.broadcast %226 : vector<1x8xf32> to vector<8x8xf32>
      %228 = arith.addf %224, %227 : vector<8x8xf32>
      %229 = arith.truncf %221 : vector<8x8xf32> to vector<8x8xbf16>
      %c0_140 = arith.constant 0 : index
      %c0_141 = arith.constant 0 : index
      %c0_142 = arith.constant 0 : index
      %230 = vector.load %arg20[%c0_140, %c0_141, %c0_142] : memref<4x8x8xbf16, #tpu.memory_space<vmem>>, vector<1x8x8xbf16>
      %231 = vector.shape_cast %230 : vector<1x8x8xbf16> to vector<8x8xbf16>
      %232 = vector.shape_cast %229 : vector<8x8xbf16> to vector<1x8x8xbf16>
      tpu.vector_store %arg20[%c0_140, %c0_141, %c0_142], %232 {strides = array<i32>} : memref<4x8x8xbf16, #tpu.memory_space<vmem>>, vector<1x8x8xbf16>,
      %233 = arith.truncf %228 : vector<8x8xf32> to vector<8x8xbf16>
      %c0_143 = arith.constant 0 : index
      %c0_144 = arith.constant 0 : index
      %c0_145 = arith.constant 0 : index
      %234 = vector.load %arg21[%c0_143, %c0_144, %c0_145] : memref<4x8x8xbf16, #tpu.memory_space<vmem>>, vector<1x8x8xbf16>
      %235 = vector.shape_cast %234 : vector<1x8x8xbf16> to vector<8x8xbf16>
      %236 = vector.shape_cast %233 : vector<8x8xbf16> to vector<1x8x8xbf16>
      tpu.vector_store %arg21[%c0_143, %c0_144, %c0_145], %236 {strides = array<i32>} : memref<4x8x8xbf16, #tpu.memory_space<vmem>>, vector<1x8x8xbf16>,
      %c1_146 = arith.constant 1 : index
      %c0_147 = arith.constant 0 : index
      %c0_148 = arith.constant 0 : index
      %237 = vector.load %arg5[%c1_146, %c0_147, %c0_148] : memref<4x128x8xbf16, #tpu.memory_space<vmem>>, vector<1x128x8xbf16>
      %238 = vector.shape_cast %237 : vector<1x128x8xbf16> to vector<128x8xbf16>
      %cst_149 = arith.constant dense<0.000000e+00> : vector<8x8xf32>
      %239 = tpu.matmul %214, %238, %cst_149 {dimension_numbers = #tpu.dot_dimension_numbers<[1], [0], [0], [1], [0, 0, 1, 1], [], []>} : vector<8x128xbf16>, vector<128x8xbf16>, vector<8x8xf32> -> vector<8x8xf32>
      %c1_150 = arith.constant 1 : index
      %c0_151 = arith.constant 0 : index
      %c0_152 = arith.constant 0 : index
      %240 = vector.load %arg6[%c1_150, %c0_151, %c0_152] : memref<4x1x8xf32, #tpu.memory_space<vmem>>, vector<1x1x8xf32>
      %241 = vector.shape_cast %240 : vector<1x1x8xf32> to vector<1x8xf32>
      %242 = vector.broadcast %241 : vector<1x8xf32> to vector<8x8xf32>
      %243 = arith.addf %239, %242 : vector<8x8xf32>
      %c1_153 = arith.constant 1 : index
      %c0_154 = arith.constant 0 : index
      %c0_155 = arith.constant 0 : index
      %244 = vector.load %arg7[%c1_153, %c0_154, %c0_155] : memref<4x128x8xbf16, #tpu.memory_space<vmem>>, vector<1x128x8xbf16>
      %245 = vector.shape_cast %244 : vector<1x128x8xbf16> to vector<128x8xbf16>
      %cst_156 = arith.constant dense<0.000000e+00> : vector<8x8xf32>
      %246 = tpu.matmul %214, %245, %cst_156 {dimension_numbers = #tpu.dot_dimension_numbers<[1], [0], [0], [1], [0, 0, 1, 1], [], []>} : vector<8x128xbf16>, vector<128x8xbf16>, vector<8x8xf32> -> vector<8x8xf32>
      %c1_157 = arith.constant 1 : index
      %c0_158 = arith.constant 0 : index
      %c0_159 = arith.constant 0 : index
      %247 = vector.load %arg8[%c1_157, %c0_158, %c0_159] : memref<4x1x8xf32, #tpu.memory_space<vmem>>, vector<1x1x8xf32>
      %248 = vector.shape_cast %247 : vector<1x1x8xf32> to vector<1x8xf32>
      %249 = vector.broadcast %248 : vector<1x8xf32> to vector<8x8xf32>
      %250 = arith.addf %246, %249 : vector<8x8xf32>
      %251 = arith.truncf %243 : vector<8x8xf32> to vector<8x8xbf16>
      %c1_160 = arith.constant 1 : index
      %c0_161 = arith.constant 0 : index
      %c0_162 = arith.constant 0 : index
      %252 = vector.load %arg20[%c1_160, %c0_161, %c0_162] : memref<4x8x8xbf16, #tpu.memory_space<vmem>>, vector<1x8x8xbf16>
      %253 = vector.shape_cast %252 : vector<1x8x8xbf16> to vector<8x8xbf16>
      %254 = vector.shape_cast %251 : vector<8x8xbf16> to vector<1x8x8xbf16>
      tpu.vector_store %arg20[%c1_160, %c0_161, %c0_162], %254 {strides = array<i32>} : memref<4x8x8xbf16, #tpu.memory_space<vmem>>, vector<1x8x8xbf16>,
      %255 = arith.truncf %250 : vector<8x8xf32> to vector<8x8xbf16>
      %c1_163 = arith.constant 1 : index
      %c0_164 = arith.constant 0 : index
      %c0_165 = arith.constant 0 : index
      %256 = vector.load %arg21[%c1_163, %c0_164, %c0_165] : memref<4x8x8xbf16, #tpu.memory_space<vmem>>, vector<1x8x8xbf16>
      %257 = vector.shape_cast %256 : vector<1x8x8xbf16> to vector<8x8xbf16>
      %258 = vector.shape_cast %255 : vector<8x8xbf16> to vector<1x8x8xbf16>
      tpu.vector_store %arg21[%c1_163, %c0_164, %c0_165], %258 {strides = array<i32>} : memref<4x8x8xbf16, #tpu.memory_space<vmem>>, vector<1x8x8xbf16>,
      %c2_166 = arith.constant 2 : index
      %c0_167 = arith.constant 0 : index
      %c0_168 = arith.constant 0 : index
      %259 = vector.load %arg5[%c2_166, %c0_167, %c0_168] : memref<4x128x8xbf16, #tpu.memory_space<vmem>>, vector<1x128x8xbf16>
      %260 = vector.shape_cast %259 : vector<1x128x8xbf16> to vector<128x8xbf16>
      %cst_169 = arith.constant dense<0.000000e+00> : vector<8x8xf32>
      %261 = tpu.matmul %214, %260, %cst_169 {dimension_numbers = #tpu.dot_dimension_numbers<[1], [0], [0], [1], [0, 0, 1, 1], [], []>} : vector<8x128xbf16>, vector<128x8xbf16>, vector<8x8xf32> -> vector<8x8xf32>
      %c2_170 = arith.constant 2 : index
      %c0_171 = arith.constant 0 : index
      %c0_172 = arith.constant 0 : index
      %262 = vector.load %arg6[%c2_170, %c0_171, %c0_172] : memref<4x1x8xf32, #tpu.memory_space<vmem>>, vector<1x1x8xf32>
      %263 = vector.shape_cast %262 : vector<1x1x8xf32> to vector<1x8xf32>
      %264 = vector.broadcast %263 : vector<1x8xf32> to vector<8x8xf32>
      %265 = arith.addf %261, %264 : vector<8x8xf32>
      %c2_173 = arith.constant 2 : index
      %c0_174 = arith.constant 0 : index
      %c0_175 = arith.constant 0 : index
      %266 = vector.load %arg7[%c2_173, %c0_174, %c0_175] : memref<4x128x8xbf16, #tpu.memory_space<vmem>>, vector<1x128x8xbf16>
      %267 = vector.shape_cast %266 : vector<1x128x8xbf16> to vector<128x8xbf16>
      %cst_176 = arith.constant dense<0.000000e+00> : vector<8x8xf32>
      %268 = tpu.matmul %214, %267, %cst_176 {dimension_numbers = #tpu.dot_dimension_numbers<[1], [0], [0], [1], [0, 0, 1, 1], [], []>} : vector<8x128xbf16>, vector<128x8xbf16>, vector<8x8xf32> -> vector<8x8xf32>
      %c2_177 = arith.constant 2 : index
      %c0_178 = arith.constant 0 : index
      %c0_179 = arith.constant 0 : index
      %269 = vector.load %arg8[%c2_177, %c0_178, %c0_179] : memref<4x1x8xf32, #tpu.memory_space<vmem>>, vector<1x1x8xf32>
      %270 = vector.shape_cast %269 : vector<1x1x8xf32> to vector<1x8xf32>
      %271 = vector.broadcast %270 : vector<1x8xf32> to vector<8x8xf32>
      %272 = arith.addf %268, %271 : vector<8x8xf32>
      %273 = arith.truncf %265 : vector<8x8xf32> to vector<8x8xbf16>
      %c2_180 = arith.constant 2 : index
      %c0_181 = arith.constant 0 : index
      %c0_182 = arith.constant 0 : index
      %274 = vector.load %arg20[%c2_180, %c0_181, %c0_182] : memref<4x8x8xbf16, #tpu.memory_space<vmem>>, vector<1x8x8xbf16>
      %275 = vector.shape_cast %274 : vector<1x8x8xbf16> to vector<8x8xbf16>
      %276 = vector.shape_cast %273 : vector<8x8xbf16> to vector<1x8x8xbf16>
      tpu.vector_store %arg20[%c2_180, %c0_181, %c0_182], %276 {strides = array<i32>} : memref<4x8x8xbf16, #tpu.memory_space<vmem>>, vector<1x8x8xbf16>,
      %277 = arith.truncf %272 : vector<8x8xf32> to vector<8x8xbf16>
      %c2_183 = arith.constant 2 : index
      %c0_184 = arith.constant 0 : index
      %c0_185 = arith.constant 0 : index
      %278 = vector.load %arg21[%c2_183, %c0_184, %c0_185] : memref<4x8x8xbf16, #tpu.memory_space<vmem>>, vector<1x8x8xbf16>
      %279 = vector.shape_cast %278 : vector<1x8x8xbf16> to vector<8x8xbf16>
      %280 = vector.shape_cast %277 : vector<8x8xbf16> to vector<1x8x8xbf16>
      tpu.vector_store %arg21[%c2_183, %c0_184, %c0_185], %280 {strides = array<i32>} : memref<4x8x8xbf16, #tpu.memory_space<vmem>>, vector<1x8x8xbf16>,
      %c3_186 = arith.constant 3 : index
      %c0_187 = arith.constant 0 : index
      %c0_188 = arith.constant 0 : index
      %281 = vector.load %arg5[%c3_186, %c0_187, %c0_188] : memref<4x128x8xbf16, #tpu.memory_space<vmem>>, vector<1x128x8xbf16>
      %282 = vector.shape_cast %281 : vector<1x128x8xbf16> to vector<128x8xbf16>
      %cst_189 = arith.constant dense<0.000000e+00> : vector<8x8xf32>
      %283 = tpu.matmul %214, %282, %cst_189 {dimension_numbers = #tpu.dot_dimension_numbers<[1], [0], [0], [1], [0, 0, 1, 1], [], []>} : vector<8x128xbf16>, vector<128x8xbf16>, vector<8x8xf32> -> vector<8x8xf32>
      %c3_190 = arith.constant 3 : index
      %c0_191 = arith.constant 0 : index
      %c0_192 = arith.constant 0 : index
      %284 = vector.load %arg6[%c3_190, %c0_191, %c0_192] : memref<4x1x8xf32, #tpu.memory_space<vmem>>, vector<1x1x8xf32>
      %285 = vector.shape_cast %284 : vector<1x1x8xf32> to vector<1x8xf32>
      %286 = vector.broadcast %285 : vector<1x8xf32> to vector<8x8xf32>
      %287 = arith.addf %283, %286 : vector<8x8xf32>
      %c3_193 = arith.constant 3 : index
      %c0_194 = arith.constant 0 : index
      %c0_195 = arith.constant 0 : index
      %288 = vector.load %arg7[%c3_193, %c0_194, %c0_195] : memref<4x128x8xbf16, #tpu.memory_space<vmem>>, vector<1x128x8xbf16>
      %289 = vector.shape_cast %288 : vector<1x128x8xbf16> to vector<128x8xbf16>
      %cst_196 = arith.constant dense<0.000000e+00> : vector<8x8xf32>
      %290 = tpu.matmul %214, %289, %cst_196 {dimension_numbers = #tpu.dot_dimension_numbers<[1], [0], [0], [1], [0, 0, 1, 1], [], []>} : vector<8x128xbf16>, vector<128x8xbf16>, vector<8x8xf32> -> vector<8x8xf32>
      %c3_197 = arith.constant 3 : index
      %c0_198 = arith.constant 0 : index
      %c0_199 = arith.constant 0 : index
      %291 = vector.load %arg8[%c3_197, %c0_198, %c0_199] : memref<4x1x8xf32, #tpu.memory_space<vmem>>, vector<1x1x8xf32>
      %292 = vector.shape_cast %291 : vector<1x1x8xf32> to vector<1x8xf32>
      %293 = vector.broadcast %292 : vector<1x8xf32> to vector<8x8xf32>
      %294 = arith.addf %290, %293 : vector<8x8xf32>
      %295 = arith.truncf %287 : vector<8x8xf32> to vector<8x8xbf16>
      %c3_200 = arith.constant 3 : index
      %c0_201 = arith.constant 0 : index
      %c0_202 = arith.constant 0 : index
      %296 = vector.load %arg20[%c3_200, %c0_201, %c0_202] : memref<4x8x8xbf16, #tpu.memory_space<vmem>>, vector<1x8x8xbf16>
      %297 = vector.shape_cast %296 : vector<1x8x8xbf16> to vector<8x8xbf16>
      %298 = vector.shape_cast %295 : vector<8x8xbf16> to vector<1x8x8xbf16>
      tpu.vector_store %arg20[%c3_200, %c0_201, %c0_202], %298 {strides = array<i32>} : memref<4x8x8xbf16, #tpu.memory_space<vmem>>, vector<1x8x8xbf16>,
      %299 = arith.truncf %294 : vector<8x8xf32> to vector<8x8xbf16>
      %c3_203 = arith.constant 3 : index
      %c0_204 = arith.constant 0 : index
      %c0_205 = arith.constant 0 : index
      %300 = vector.load %arg21[%c3_203, %c0_204, %c0_205] : memref<4x8x8xbf16, #tpu.memory_space<vmem>>, vector<1x8x8xbf16>
      %301 = vector.shape_cast %300 : vector<1x8x8xbf16> to vector<8x8xbf16>
      %302 = vector.shape_cast %299 : vector<8x8xbf16> to vector<1x8x8xbf16>
      tpu.vector_store %arg21[%c3_203, %c0_204, %c0_205], %302 {strides = array<i32>} : memref<4x8x8xbf16, #tpu.memory_space<vmem>>, vector<1x8x8xbf16>,
    } else {
    }
    %c8_i32 = arith.constant 8 : i32
    %3 = arith.muli %arg1, %c8_i32 : i32
    %4 = tpu.assume_multiple %3, 8 : i32
    %c0 = arith.constant 0 : index
    %5 = arith.index_cast %4 : i32 to index
    %c0_1 = arith.constant 0 : index
    %6 = vector.load %arg2[%c0, %5, %c0_1] : memref<1x8x128xf32, #tpu.memory_space<vmem>>, vector<1x8x128xf32>
    %7 = vector.shape_cast %6 : vector<1x8x128xf32> to vector<8x128xf32>
    %8 = arith.truncf %7 : vector<8x128xf32> to vector<8x128xbf16>
    %cst = arith.constant 0.000000e+00 : f32
    %9 = vector.broadcast %cst : f32 to vector<8x128xf32>
    %c0_2 = arith.constant 0 : index
    %c0_3 = arith.constant 0 : index
    %c0_4 = arith.constant 0 : index
    %10 = vector.load %arg3[%c0_2, %c0_3, %c0_4] : memref<4x128x8xbf16, #tpu.memory_space<vmem>>, vector<1x128x8xbf16>
    %11 = vector.shape_cast %10 : vector<1x128x8xbf16> to vector<128x8xbf16>
    %cst_5 = arith.constant dense<0.000000e+00> : vector<8x8xf32>
    %12 = tpu.matmul %8, %11, %cst_5 {dimension_numbers = #tpu.dot_dimension_numbers<[1], [0], [0], [1], [0, 0, 1, 1], [], []>} : vector<8x128xbf16>, vector<128x8xbf16>, vector<8x8xf32> -> vector<8x8xf32>
    %c0_6 = arith.constant 0 : index
    %c0_7 = arith.constant 0 : index
    %c0_8 = arith.constant 0 : index
    %13 = vector.load %arg4[%c0_6, %c0_7, %c0_8] : memref<4x1x8xf32, #tpu.memory_space<vmem>>, vector<1x1x8xf32>
    %14 = vector.shape_cast %13 : vector<1x1x8xf32> to vector<1x8xf32>
    %15 = vector.broadcast %14 : vector<1x8xf32> to vector<8x8xf32>
    %16 = arith.addf %12, %15 : vector<8x8xf32>
    %cst_9 = arith.constant 0.353553385 : f32
    %17 = vector.broadcast %cst_9 : f32 to vector<8x8xf32>
    %18 = arith.mulf %16, %17 : vector<8x8xf32>
    %19 = arith.truncf %18 : vector<8x8xf32> to vector<8x8xbf16>
    %c0_10 = arith.constant 0 : index
    %c0_11 = arith.constant 0 : index
    %c0_12 = arith.constant 0 : index
    %20 = vector.load %arg20[%c0_10, %c0_11, %c0_12] : memref<4x8x8xbf16, #tpu.memory_space<vmem>>, vector<1x8x8xbf16>
    %21 = vector.shape_cast %20 : vector<1x8x8xbf16> to vector<8x8xbf16>
    %c0_13 = arith.constant 0 : index
    %c0_14 = arith.constant 0 : index
    %c0_15 = arith.constant 0 : index
    %22 = vector.load %arg21[%c0_13, %c0_14, %c0_15] : memref<4x8x8xbf16, #tpu.memory_space<vmem>>, vector<1x8x8xbf16>
    %23 = vector.shape_cast %22 : vector<1x8x8xbf16> to vector<8x8xbf16>
    %cst_16 = arith.constant dense<0.000000e+00> : vector<8x8xf32>
    %24 = tpu.matmul %19, %21, %cst_16 {dimension_numbers = #tpu.dot_dimension_numbers<[1], [1], [0], [0], [0, 0, 1, 0], [], []>} : vector<8x8xbf16>, vector<8x8xbf16>, vector<8x8xf32> -> vector<8x8xf32>
    %cst_17 = arith.constant dense<0xFF800000> : vector<8xf32>
    %25 = vector.multi_reduction <maximumf>, %24, %cst_17 [1] : vector<8x8xf32> to vector<8xf32>
    %26 = vector.shape_cast %25 : vector<8xf32> to vector<8x1xf32>
    %27 = vector.broadcast %26 : vector<8x1xf32> to vector<8x8xf32>
    %28 = arith.subf %24, %27 : vector<8x8xf32>
    %29 = math.exp %28 : vector<8x8xf32>
    %cst_18 = arith.constant dense<0.000000e+00> : vector<8xf32>
    %30 = vector.multi_reduction <add>, %29, %cst_18 [1] : vector<8x8xf32> to vector<8xf32>
    %31 = vector.shape_cast %30 : vector<8xf32> to vector<8x1xf32>
    %32 = tpu.reciprocal %31 {approx = true} : vector<8x1xf32> -> vector<8x1xf32>
    %33 = vector.broadcast %32 : vector<8x1xf32> to vector<8x8xf32>
    %34 = arith.mulf %29, %33 : vector<8x8xf32>
    %35 = arith.truncf %34 : vector<8x8xf32> to vector<8x8xbf16>
    %cst_19 = arith.constant dense<0.000000e+00> : vector<8x8xf32>
    %36 = tpu.matmul %35, %23, %cst_19 {dimension_numbers = #tpu.dot_dimension_numbers<[1], [0], [0], [1], [0, 0, 1, 1], [], []>} : vector<8x8xbf16>, vector<8x8xbf16>, vector<8x8xf32> -> vector<8x8xf32>
    %37 = arith.truncf %36 : vector<8x8xf32> to vector<8x8xbf16>
    %c0_20 = arith.constant 0 : index
    %c0_21 = arith.constant 0 : index
    %c0_22 = arith.constant 0 : index
    %38 = vector.load %arg9[%c0_20, %c0_21, %c0_22] : memref<4x8x128xbf16, #tpu.memory_space<vmem>>, vector<1x8x128xbf16>
    %39 = vector.shape_cast %38 : vector<1x8x128xbf16> to vector<8x128xbf16>
    %cst_23 = arith.constant dense<0.000000e+00> : vector<8x128xf32>
    %40 = tpu.matmul %37, %39, %cst_23 {dimension_numbers = #tpu.dot_dimension_numbers<[1], [0], [0], [1], [0, 0, 1, 1], [], []>} : vector<8x8xbf16>, vector<8x128xbf16>, vector<8x128xf32> -> vector<8x128xf32>
    %41 = arith.addf %9, %40 : vector<8x128xf32>
    %c1 = arith.constant 1 : index
    %c0_24 = arith.constant 0 : index
    %c0_25 = arith.constant 0 : index
    %42 = vector.load %arg3[%c1, %c0_24, %c0_25] : memref<4x128x8xbf16, #tpu.memory_space<vmem>>, vector<1x128x8xbf16>
    %43 = vector.shape_cast %42 : vector<1x128x8xbf16> to vector<128x8xbf16>
    %cst_26 = arith.constant dense<0.000000e+00> : vector<8x8xf32>
    %44 = tpu.matmul %8, %43, %cst_26 {dimension_numbers = #tpu.dot_dimension_numbers<[1], [0], [0], [1], [0, 0, 1, 1], [], []>} : vector<8x128xbf16>, vector<128x8xbf16>, vector<8x8xf32> -> vector<8x8xf32>
    %c1_27 = arith.constant 1 : index
    %c0_28 = arith.constant 0 : index
    %c0_29 = arith.constant 0 : index
    %45 = vector.load %arg4[%c1_27, %c0_28, %c0_29] : memref<4x1x8xf32, #tpu.memory_space<vmem>>, vector<1x1x8xf32>
    %46 = vector.shape_cast %45 : vector<1x1x8xf32> to vector<1x8xf32>
    %47 = vector.broadcast %46 : vector<1x8xf32> to vector<8x8xf32>
    %48 = arith.addf %44, %47 : vector<8x8xf32>
    %cst_30 = arith.constant 0.353553385 : f32
    %49 = vector.broadcast %cst_30 : f32 to vector<8x8xf32>
    %50 = arith.mulf %48, %49 : vector<8x8xf32>
    %51 = arith.truncf %50 : vector<8x8xf32> to vector<8x8xbf16>
    %c1_31 = arith.constant 1 : index
    %c0_32 = arith.constant 0 : index
    %c0_33 = arith.constant 0 : index
    %52 = vector.load %arg20[%c1_31, %c0_32, %c0_33] : memref<4x8x8xbf16, #tpu.memory_space<vmem>>, vector<1x8x8xbf16>
    %53 = vector.shape_cast %52 : vector<1x8x8xbf16> to vector<8x8xbf16>
    %c1_34 = arith.constant 1 : index
    %c0_35 = arith.constant 0 : index
    %c0_36 = arith.constant 0 : index
    %54 = vector.load %arg21[%c1_34, %c0_35, %c0_36] : memref<4x8x8xbf16, #tpu.memory_space<vmem>>, vector<1x8x8xbf16>
    %55 = vector.shape_cast %54 : vector<1x8x8xbf16> to vector<8x8xbf16>
    %cst_37 = arith.constant dense<0.000000e+00> : vector<8x8xf32>
    %56 = tpu.matmul %51, %53, %cst_37 {dimension_numbers = #tpu.dot_dimension_numbers<[1], [1], [0], [0], [0, 0, 1, 0], [], []>} : vector<8x8xbf16>, vector<8x8xbf16>, vector<8x8xf32> -> vector<8x8xf32>
    %cst_38 = arith.constant dense<0xFF800000> : vector<8xf32>
    %57 = vector.multi_reduction <maximumf>, %56, %cst_38 [1] : vector<8x8xf32> to vector<8xf32>
    %58 = vector.shape_cast %57 : vector<8xf32> to vector<8x1xf32>
    %59 = vector.broadcast %58 : vector<8x1xf32> to vector<8x8xf32>
    %60 = arith.subf %56, %59 : vector<8x8xf32>
    %61 = math.exp %60 : vector<8x8xf32>
    %cst_39 = arith.constant dense<0.000000e+00> : vector<8xf32>
    %62 = vector.multi_reduction <add>, %61, %cst_39 [1] : vector<8x8xf32> to vector<8xf32>
    %63 = vector.shape_cast %62 : vector<8xf32> to vector<8x1xf32>
    %64 = tpu.reciprocal %63 {approx = true} : vector<8x1xf32> -> vector<8x1xf32>
    %65 = vector.broadcast %64 : vector<8x1xf32> to vector<8x8xf32>
    %66 = arith.mulf %61, %65 : vector<8x8xf32>
    %67 = arith.truncf %66 : vector<8x8xf32> to vector<8x8xbf16>
    %cst_40 = arith.constant dense<0.000000e+00> : vector<8x8xf32>
    %68 = tpu.matmul %67, %55, %cst_40 {dimension_numbers = #tpu.dot_dimension_numbers<[1], [0], [0], [1], [0, 0, 1, 1], [], []>} : vector<8x8xbf16>, vector<8x8xbf16>, vector<8x8xf32> -> vector<8x8xf32>
    %69 = arith.truncf %68 : vector<8x8xf32> to vector<8x8xbf16>
    %c1_41 = arith.constant 1 : index
    %c0_42 = arith.constant 0 : index
    %c0_43 = arith.constant 0 : index
    %70 = vector.load %arg9[%c1_41, %c0_42, %c0_43] : memref<4x8x128xbf16, #tpu.memory_space<vmem>>, vector<1x8x128xbf16>
    %71 = vector.shape_cast %70 : vector<1x8x128xbf16> to vector<8x128xbf16>
    %cst_44 = arith.constant dense<0.000000e+00> : vector<8x128xf32>
    %72 = tpu.matmul %69, %71, %cst_44 {dimension_numbers = #tpu.dot_dimension_numbers<[1], [0], [0], [1], [0, 0, 1, 1], [], []>} : vector<8x8xbf16>, vector<8x128xbf16>, vector<8x128xf32> -> vector<8x128xf32>
    %73 = arith.addf %41, %72 : vector<8x128xf32>
    %c2 = arith.constant 2 : index
    %c0_45 = arith.constant 0 : index
    %c0_46 = arith.constant 0 : index
    %74 = vector.load %arg3[%c2, %c0_45, %c0_46] : memref<4x128x8xbf16, #tpu.memory_space<vmem>>, vector<1x128x8xbf16>
    %75 = vector.shape_cast %74 : vector<1x128x8xbf16> to vector<128x8xbf16>
    %cst_47 = arith.constant dense<0.000000e+00> : vector<8x8xf32>
    %76 = tpu.matmul %8, %75, %cst_47 {dimension_numbers = #tpu.dot_dimension_numbers<[1], [0], [0], [1], [0, 0, 1, 1], [], []>} : vector<8x128xbf16>, vector<128x8xbf16>, vector<8x8xf32> -> vector<8x8xf32>
    %c2_48 = arith.constant 2 : index
    %c0_49 = arith.constant 0 : index
    %c0_50 = arith.constant 0 : index
    %77 = vector.load %arg4[%c2_48, %c0_49, %c0_50] : memref<4x1x8xf32, #tpu.memory_space<vmem>>, vector<1x1x8xf32>
    %78 = vector.shape_cast %77 : vector<1x1x8xf32> to vector<1x8xf32>
    %79 = vector.broadcast %78 : vector<1x8xf32> to vector<8x8xf32>
    %80 = arith.addf %76, %79 : vector<8x8xf32>
    %cst_51 = arith.constant 0.353553385 : f32
    %81 = vector.broadcast %cst_51 : f32 to vector<8x8xf32>
    %82 = arith.mulf %80, %81 : vector<8x8xf32>
    %83 = arith.truncf %82 : vector<8x8xf32> to vector<8x8xbf16>
    %c2_52 = arith.constant 2 : index
    %c0_53 = arith.constant 0 : index
    %c0_54 = arith.constant 0 : index
    %84 = vector.load %arg20[%c2_52, %c0_53, %c0_54] : memref<4x8x8xbf16, #tpu.memory_space<vmem>>, vector<1x8x8xbf16>
    %85 = vector.shape_cast %84 : vector<1x8x8xbf16> to vector<8x8xbf16>
    %c2_55 = arith.constant 2 : index
    %c0_56 = arith.constant 0 : index
    %c0_57 = arith.constant 0 : index
    %86 = vector.load %arg21[%c2_55, %c0_56, %c0_57] : memref<4x8x8xbf16, #tpu.memory_space<vmem>>, vector<1x8x8xbf16>
    %87 = vector.shape_cast %86 : vector<1x8x8xbf16> to vector<8x8xbf16>
    %cst_58 = arith.constant dense<0.000000e+00> : vector<8x8xf32>
    %88 = tpu.matmul %83, %85, %cst_58 {dimension_numbers = #tpu.dot_dimension_numbers<[1], [1], [0], [0], [0, 0, 1, 0], [], []>} : vector<8x8xbf16>, vector<8x8xbf16>, vector<8x8xf32> -> vector<8x8xf32>
    %cst_59 = arith.constant dense<0xFF800000> : vector<8xf32>
    %89 = vector.multi_reduction <maximumf>, %88, %cst_59 [1] : vector<8x8xf32> to vector<8xf32>
    %90 = vector.shape_cast %89 : vector<8xf32> to vector<8x1xf32>
    %91 = vector.broadcast %90 : vector<8x1xf32> to vector<8x8xf32>
    %92 = arith.subf %88, %91 : vector<8x8xf32>
    %93 = math.exp %92 : vector<8x8xf32>
    %cst_60 = arith.constant dense<0.000000e+00> : vector<8xf32>
    %94 = vector.multi_reduction <add>, %93, %cst_60 [1] : vector<8x8xf32> to vector<8xf32>
    %95 = vector.shape_cast %94 : vector<8xf32> to vector<8x1xf32>
    %96 = tpu.reciprocal %95 {approx = true} : vector<8x1xf32> -> vector<8x1xf32>
    %97 = vector.broadcast %96 : vector<8x1xf32> to vector<8x8xf32>
    %98 = arith.mulf %93, %97 : vector<8x8xf32>
    %99 = arith.truncf %98 : vector<8x8xf32> to vector<8x8xbf16>
    %cst_61 = arith.constant dense<0.000000e+00> : vector<8x8xf32>
    %100 = tpu.matmul %99, %87, %cst_61 {dimension_numbers = #tpu.dot_dimension_numbers<[1], [0], [0], [1], [0, 0, 1, 1], [], []>} : vector<8x8xbf16>, vector<8x8xbf16>, vector<8x8xf32> -> vector<8x8xf32>
    %101 = arith.truncf %100 : vector<8x8xf32> to vector<8x8xbf16>
    %c2_62 = arith.constant 2 : index
    %c0_63 = arith.constant 0 : index
    %c0_64 = arith.constant 0 : index
    %102 = vector.load %arg9[%c2_62, %c0_63, %c0_64] : memref<4x8x128xbf16, #tpu.memory_space<vmem>>, vector<1x8x128xbf16>
    %103 = vector.shape_cast %102 : vector<1x8x128xbf16> to vector<8x128xbf16>
    %cst_65 = arith.constant dense<0.000000e+00> : vector<8x128xf32>
    %104 = tpu.matmul %101, %103, %cst_65 {dimension_numbers = #tpu.dot_dimension_numbers<[1], [0], [0], [1], [0, 0, 1, 1], [], []>} : vector<8x8xbf16>, vector<8x128xbf16>, vector<8x128xf32> -> vector<8x128xf32>
    %105 = arith.addf %73, %104 : vector<8x128xf32>
    %c3 = arith.constant 3 : index
    %c0_66 = arith.constant 0 : index
    %c0_67 = arith.constant 0 : index
    %106 = vector.load %arg3[%c3, %c0_66, %c0_67] : memref<4x128x8xbf16, #tpu.memory_space<vmem>>, vector<1x128x8xbf16>
    %107 = vector.shape_cast %106 : vector<1x128x8xbf16> to vector<128x8xbf16>
    %cst_68 = arith.constant dense<0.000000e+00> : vector<8x8xf32>
    %108 = tpu.matmul %8, %107, %cst_68 {dimension_numbers = #tpu.dot_dimension_numbers<[1], [0], [0], [1], [0, 0, 1, 1], [], []>} : vector<8x128xbf16>, vector<128x8xbf16>, vector<8x8xf32> -> vector<8x8xf32>
    %c3_69 = arith.constant 3 : index
    %c0_70 = arith.constant 0 : index
    %c0_71 = arith.constant 0 : index
    %109 = vector.load %arg4[%c3_69, %c0_70, %c0_71] : memref<4x1x8xf32, #tpu.memory_space<vmem>>, vector<1x1x8xf32>
    %110 = vector.shape_cast %109 : vector<1x1x8xf32> to vector<1x8xf32>
    %111 = vector.broadcast %110 : vector<1x8xf32> to vector<8x8xf32>
    %112 = arith.addf %108, %111 : vector<8x8xf32>
    %cst_72 = arith.constant 0.353553385 : f32
    %113 = vector.broadcast %cst_72 : f32 to vector<8x8xf32>
    %114 = arith.mulf %112, %113 : vector<8x8xf32>
    %115 = arith.truncf %114 : vector<8x8xf32> to vector<8x8xbf16>
    %c3_73 = arith.constant 3 : index
    %c0_74 = arith.constant 0 : index
    %c0_75 = arith.constant 0 : index
    %116 = vector.load %arg20[%c3_73, %c0_74, %c0_75] : memref<4x8x8xbf16, #tpu.memory_space<vmem>>, vector<1x8x8xbf16>
    %117 = vector.shape_cast %116 : vector<1x8x8xbf16> to vector<8x8xbf16>
    %c3_76 = arith.constant 3 : index
    %c0_77 = arith.constant 0 : index
    %c0_78 = arith.constant 0 : index
    %118 = vector.load %arg21[%c3_76, %c0_77, %c0_78] : memref<4x8x8xbf16, #tpu.memory_space<vmem>>, vector<1x8x8xbf16>
    %119 = vector.shape_cast %118 : vector<1x8x8xbf16> to vector<8x8xbf16>
    %cst_79 = arith.constant dense<0.000000e+00> : vector<8x8xf32>
    %120 = tpu.matmul %115, %117, %cst_79 {dimension_numbers = #tpu.dot_dimension_numbers<[1], [1], [0], [0], [0, 0, 1, 0], [], []>} : vector<8x8xbf16>, vector<8x8xbf16>, vector<8x8xf32> -> vector<8x8xf32>
    %cst_80 = arith.constant dense<0xFF800000> : vector<8xf32>
    %121 = vector.multi_reduction <maximumf>, %120, %cst_80 [1] : vector<8x8xf32> to vector<8xf32>
    %122 = vector.shape_cast %121 : vector<8xf32> to vector<8x1xf32>
    %123 = vector.broadcast %122 : vector<8x1xf32> to vector<8x8xf32>
    %124 = arith.subf %120, %123 : vector<8x8xf32>
    %125 = math.exp %124 : vector<8x8xf32>
    %cst_81 = arith.constant dense<0.000000e+00> : vector<8xf32>
    %126 = vector.multi_reduction <add>, %125, %cst_81 [1] : vector<8x8xf32> to vector<8xf32>
    %127 = vector.shape_cast %126 : vector<8xf32> to vector<8x1xf32>
    %128 = tpu.reciprocal %127 {approx = true} : vector<8x1xf32> -> vector<8x1xf32>
    %129 = vector.broadcast %128 : vector<8x1xf32> to vector<8x8xf32>
    %130 = arith.mulf %125, %129 : vector<8x8xf32>
    %131 = arith.truncf %130 : vector<8x8xf32> to vector<8x8xbf16>
    %cst_82 = arith.constant dense<0.000000e+00> : vector<8x8xf32>
    %132 = tpu.matmul %131, %119, %cst_82 {dimension_numbers = #tpu.dot_dimension_numbers<[1], [0], [0], [1], [0, 0, 1, 1], [], []>} : vector<8x8xbf16>, vector<8x8xbf16>, vector<8x8xf32> -> vector<8x8xf32>
    %133 = arith.truncf %132 : vector<8x8xf32> to vector<8x8xbf16>
    %c3_83 = arith.constant 3 : index
    %c0_84 = arith.constant 0 : index
    %c0_85 = arith.constant 0 : index
    %134 = vector.load %arg9[%c3_83, %c0_84, %c0_85] : memref<4x8x128xbf16, #tpu.memory_space<vmem>>, vector<1x8x128xbf16>
    %135 = vector.shape_cast %134 : vector<1x8x128xbf16> to vector<8x128xbf16>
    %cst_86 = arith.constant dense<0.000000e+00> : vector<8x128xf32>
    %136 = tpu.matmul %133, %135, %cst_86 {dimension_numbers = #tpu.dot_dimension_numbers<[1], [0], [0], [1], [0, 0, 1, 1], [], []>} : vector<8x8xbf16>, vector<8x128xbf16>, vector<8x128xf32> -> vector<8x128xf32>
    %137 = arith.addf %105, %136 : vector<8x128xf32>
    %c0_87 = arith.constant 0 : index
    %c0_88 = arith.constant 0 : index
    %138 = vector.load %arg10[%c0_87, %c0_88] : memref<1x128xf32, #tpu.memory_space<vmem>>, vector<1x128xf32>
    %139 = vector.broadcast %138 : vector<1x128xf32> to vector<8x128xf32>
    %140 = arith.addf %137, %139 : vector<8x128xf32>
    %141 = arith.addf %7, %140 : vector<8x128xf32>
    %c0_89 = arith.constant 0 : index
    %c0_90 = arith.constant 0 : index
    %142 = vector.load %arg11[%c0_89, %c0_90] : memref<1x128xf32, #tpu.memory_space<vmem>>, vector<1x128xf32>
    %c0_91 = arith.constant 0 : index
    %c0_92 = arith.constant 0 : index
    %143 = vector.load %arg12[%c0_91, %c0_92] : memref<1x128xf32, #tpu.memory_space<vmem>>, vector<1x128xf32>
    %cst_93 = arith.constant dense<0.000000e+00> : vector<8xf32>
    %144 = vector.multi_reduction <add>, %141, %cst_93 [1] : vector<8x128xf32> to vector<8xf32>
    %145 = vector.shape_cast %144 : vector<8xf32> to vector<8x1xf32>
    %cst_94 = arith.constant 3.125000e-02 : f32
    %146 = vector.broadcast %cst_94 : f32 to vector<8x1xf32>
    %147 = arith.mulf %145, %146 : vector<8x1xf32>
    %148 = vector.broadcast %147 : vector<8x1xf32> to vector<8x128xf32>
    %149 = arith.subf %141, %148 : vector<8x128xf32>
    %150 = arith.mulf %149, %149 : vector<8x128xf32>
    %cst_95 = arith.constant dense<0.000000e+00> : vector<8xf32>
    %151 = vector.multi_reduction <add>, %150, %cst_95 [1] : vector<8x128xf32> to vector<8xf32>
    %152 = vector.shape_cast %151 : vector<8xf32> to vector<8x1xf32>
    %153 = arith.mulf %147, %147 : vector<8x1xf32>
    %cst_96 = arith.constant 9.600000e+01 : f32
    %154 = vector.broadcast %cst_96 : f32 to vector<8x1xf32>
    %155 = arith.mulf %154, %153 : vector<8x1xf32>
    %156 = arith.subf %152, %155 : vector<8x1xf32>
    %cst_97 = arith.constant 3.125000e-02 : f32
    %157 = vector.broadcast %cst_97 : f32 to vector<8x1xf32>
    %158 = arith.mulf %156, %157 : vector<8x1xf32>
    %cst_98 = arith.constant 9.99999974E-6 : f32
    %159 = vector.broadcast %cst_98 : f32 to vector<8x1xf32>
    %160 = arith.addf %158, %159 : vector<8x1xf32>
    %161 = math.rsqrt %160 : vector<8x1xf32>
    %162 = vector.broadcast %161 : vector<8x1xf32> to vector<8x128xf32>
    %163 = arith.mulf %149, %162 : vector<8x128xf32>
    %164 = vector.broadcast %142 : vector<1x128xf32> to vector<8x128xf32>
    %165 = arith.mulf %163, %164 : vector<8x128xf32>
    %166 = vector.broadcast %143 : vector<1x128xf32> to vector<8x128xf32>
    %167 = arith.addf %165, %166 : vector<8x128xf32>
    %168 = arith.truncf %167 : vector<8x128xf32> to vector<8x128xbf16>
    %c0_99 = arith.constant 0 : index
    %c0_100 = arith.constant 0 : index
    %169 = vector.load %arg13[%c0_99, %c0_100] : memref<128x128xbf16, #tpu.memory_space<vmem>>, vector<128x128xbf16>
    %cst_101 = arith.constant dense<0.000000e+00> : vector<8x128xf32>
    %170 = tpu.matmul %168, %169, %cst_101 {dimension_numbers = #tpu.dot_dimension_numbers<[1], [0], [0], [1], [0, 0, 1, 1], [], []>} : vector<8x128xbf16>, vector<128x128xbf16>, vector<8x128xf32> -> vector<8x128xf32>
    %c0_102 = arith.constant 0 : index
    %c0_103 = arith.constant 0 : index
    %171 = vector.load %arg14[%c0_102, %c0_103] : memref<1x128xf32, #tpu.memory_space<vmem>>, vector<1x128xf32>
    %172 = vector.broadcast %171 : vector<1x128xf32> to vector<8x128xf32>
    %173 = arith.addf %170, %172 : vector<8x128xf32>
    %cst_104 = arith.constant 0.000000e+00 : f32
    %174 = vector.broadcast %cst_104 : f32 to vector<8x128xf32>
    %175 = arith.maximumf %173, %174 : vector<8x128xf32>
    %176 = arith.truncf %175 : vector<8x128xf32> to vector<8x128xbf16>
    %c0_105 = arith.constant 0 : index
    %c0_106 = arith.constant 0 : index
    %177 = vector.load %arg15[%c0_105, %c0_106] : memref<128x128xbf16, #tpu.memory_space<vmem>>, vector<128x128xbf16>
    %cst_107 = arith.constant dense<0.000000e+00> : vector<8x128xf32>
    %178 = tpu.matmul %176, %177, %cst_107 {dimension_numbers = #tpu.dot_dimension_numbers<[1], [0], [0], [1], [0, 0, 1, 1], [], []>} : vector<8x128xbf16>, vector<128x128xbf16>, vector<8x128xf32> -> vector<8x128xf32>
    %c0_108 = arith.constant 0 : index
    %c0_109 = arith.constant 0 : index
    %179 = vector.load %arg16[%c0_108, %c0_109] : memref<1x128xf32, #tpu.memory_space<vmem>>, vector<1x128xf32>
    %180 = vector.broadcast %179 : vector<1x128xf32> to vector<8x128xf32>
    %181 = arith.addf %178, %180 : vector<8x128xf32>
    %182 = arith.addf %167, %181 : vector<8x128xf32>
    %c0_110 = arith.constant 0 : index
    %c0_111 = arith.constant 0 : index
    %183 = vector.load %arg17[%c0_110, %c0_111] : memref<1x128xf32, #tpu.memory_space<vmem>>, vector<1x128xf32>
    %c0_112 = arith.constant 0 : index
    %c0_113 = arith.constant 0 : index
    %184 = vector.load %arg18[%c0_112, %c0_113] : memref<1x128xf32, #tpu.memory_space<vmem>>, vector<1x128xf32>
    %cst_114 = arith.constant dense<0.000000e+00> : vector<8xf32>
    %185 = vector.multi_reduction <add>, %182, %cst_114 [1] : vector<8x128xf32> to vector<8xf32>
    %186 = vector.shape_cast %185 : vector<8xf32> to vector<8x1xf32>
    %cst_115 = arith.constant 3.125000e-02 : f32
    %187 = vector.broadcast %cst_115 : f32 to vector<8x1xf32>
    %188 = arith.mulf %186, %187 : vector<8x1xf32>
    %189 = vector.broadcast %188 : vector<8x1xf32> to vector<8x128xf32>
    %190 = arith.subf %182, %189 : vector<8x128xf32>
    %191 = arith.mulf %190, %190 : vector<8x128xf32>
    %cst_116 = arith.constant dense<0.000000e+00> : vector<8xf32>
    %192 = vector.multi_reduction <add>, %191, %cst_116 [1] : vector<8x128xf32> to vector<8xf32>
    %193 = vector.shape_cast %192 : vector<8xf32> to vector<8x1xf32>
    %194 = arith.mulf %188, %188 : vector<8x1xf32>
    %cst_117 = arith.constant 9.600000e+01 : f32
    %195 = vector.broadcast %cst_117 : f32 to vector<8x1xf32>
    %196 = arith.mulf %195, %194 : vector<8x1xf32>
    %197 = arith.subf %193, %196 : vector<8x1xf32>
    %cst_118 = arith.constant 3.125000e-02 : f32
    %198 = vector.broadcast %cst_118 : f32 to vector<8x1xf32>
    %199 = arith.mulf %197, %198 : vector<8x1xf32>
    %cst_119 = arith.constant 9.99999974E-6 : f32
    %200 = vector.broadcast %cst_119 : f32 to vector<8x1xf32>
    %201 = arith.addf %199, %200 : vector<8x1xf32>
    %202 = math.rsqrt %201 : vector<8x1xf32>
    %203 = vector.broadcast %202 : vector<8x1xf32> to vector<8x128xf32>
    %204 = arith.mulf %190, %203 : vector<8x128xf32>
    %205 = vector.broadcast %183 : vector<1x128xf32> to vector<8x128xf32>
    %206 = arith.mulf %204, %205 : vector<8x128xf32>
    %207 = vector.broadcast %184 : vector<1x128xf32> to vector<8x128xf32>
    %208 = arith.addf %206, %207 : vector<8x128xf32>
    %c0_120 = arith.constant 0 : index
    %c0_121 = arith.constant 0 : index
    %c0_122 = arith.constant 0 : index
    %209 = vector.load %arg19[%c0_120, %c0_121, %c0_122] : memref<1x8x128xf32, #tpu.memory_space<vmem>>, vector<1x8x128xf32>
    %210 = vector.shape_cast %209 : vector<1x8x128xf32> to vector<8x128xf32>
    %211 = vector.shape_cast %208 : vector<8x128xf32> to vector<1x8x128xf32>
    tpu.vector_store %arg19[%c0_120, %c0_121, %c0_122], %211 {strides = array<i32>} : memref<1x8x128xf32, #tpu.memory_space<vmem>>, vector<1x8x128xf32>,
    return
  }
  func.func @transform_0(%arg0: i32, %arg1: i32) -> (i32, i32, i32) {
    %c0_i32 = arith.constant 0 : i32
    %c0_i32_0 = arith.constant 0 : i32
    %c0_i32_1 = arith.constant 0 : i32
    return %arg0, %c0_i32, %c0_i32_0 : i32, i32, i32
  }
  func.func @transform_1(%arg0: i32, %arg1: i32) -> (i32, i32, i32) {
    %c0_i32 = arith.constant 0 : i32
    %c0_i32_0 = arith.constant 0 : i32
    %c0_i32_1 = arith.constant 0 : i32
    %c0_i32_2 = arith.constant 0 : i32
    return %c0_i32, %c0_i32_0, %c0_i32_1 : i32, i32, i32
  }
  func.func @transform_2(%arg0: i32, %arg1: i32) -> (i32, i32, i32) {
    %c0_i32 = arith.constant 0 : i32
    %c0_i32_0 = arith.constant 0 : i32
    %c0_i32_1 = arith.constant 0 : i32
    %c0_i32_2 = arith.constant 0 : i32
    return %c0_i32, %c0_i32_0, %c0_i32_1 : i32, i32, i32
  }
  func.func @transform_3(%arg0: i32, %arg1: i32) -> (i32, i32, i32) {
    %c0_i32 = arith.constant 0 : i32
    %c0_i32_0 = arith.constant 0 : i32
    %c0_i32_1 = arith.constant 0 : i32
    %c0_i32_2 = arith.constant 0 : i32
    return %c0_i32, %c0_i32_0, %c0_i32_1 : i32, i32, i32
  }
  func.func @transform_4(%arg0: i32, %arg1: i32) -> (i32, i32, i32) {
    %c0_i32 = arith.constant 0 : i32
    %c0_i32_0 = arith.constant 0 : i32
    %c0_i32_1 = arith.constant 0 : i32
    %c0_i32_2 = arith.constant 0 : i32
    return %c0_i32, %c0_i32_0, %c0_i32_1 : i32, i32, i32
  }
  func.func @transform_5(%arg0: i32, %arg1: i32) -> (i32, i32, i32) {
    %c0_i32 = arith.constant 0 : i32
    %c0_i32_0 = arith.constant 0 : i32
    %c0_i32_1 = arith.constant 0 : i32
    %c0_i32_2 = arith.constant 0 : i32
    return %c0_i32, %c0_i32_0, %c0_i32_1 : i32, i32, i32
  }
  func.func @transform_6(%arg0: i32, %arg1: i32) -> (i32, i32, i32) {
    %c0_i32 = arith.constant 0 : i32
    %c0_i32_0 = arith.constant 0 : i32
    %c0_i32_1 = arith.constant 0 : i32
    %c0_i32_2 = arith.constant 0 : i32
    return %c0_i32, %c0_i32_0, %c0_i32_1 : i32, i32, i32
  }
  func.func @transform_7(%arg0: i32, %arg1: i32) -> (i32, i32, i32) {
    %c0_i32 = arith.constant 0 : i32
    %c0_i32_0 = arith.constant 0 : i32
    %c0_i32_1 = arith.constant 0 : i32
    %c0_i32_2 = arith.constant 0 : i32
    return %c0_i32, %c0_i32_0, %c0_i32_1 : i32, i32, i32
  }
  func.func @transform_8(%arg0: i32, %arg1: i32) -> (i32, i32) {
    %c0_i32 = arith.constant 0 : i32
    %c0_i32_0 = arith.constant 0 : i32
    %c0_i32_1 = arith.constant 0 : i32
    return %c0_i32, %c0_i32_0 : i32, i32
  }
  func.func @transform_9(%arg0: i32, %arg1: i32) -> (i32, i32) {
    %c0_i32 = arith.constant 0 : i32
    %c0_i32_0 = arith.constant 0 : i32
    %c0_i32_1 = arith.constant 0 : i32
    return %c0_i32, %c0_i32_0 : i32, i32
  }
  func.func @transform_10(%arg0: i32, %arg1: i32) -> (i32, i32) {
    %c0_i32 = arith.constant 0 : i32
    %c0_i32_0 = arith.constant 0 : i32
    %c0_i32_1 = arith.constant 0 : i32
    return %c0_i32, %c0_i32_0 : i32, i32
  }
  func.func @transform_11(%arg0: i32, %arg1: i32) -> (i32, i32) {
    %c0_i32 = arith.constant 0 : i32
    %c0_i32_0 = arith.constant 0 : i32
    %c0_i32_1 = arith.constant 0 : i32
    return %c0_i32, %c0_i32_0 : i32, i32
  }
  func.func @transform_12(%arg0: i32, %arg1: i32) -> (i32, i32) {
    %c0_i32 = arith.constant 0 : i32
    %c0_i32_0 = arith.constant 0 : i32
    %c0_i32_1 = arith.constant 0 : i32
    return %c0_i32, %c0_i32_0 : i32, i32
  }
  func.func @transform_13(%arg0: i32, %arg1: i32) -> (i32, i32) {
    %c0_i32 = arith.constant 0 : i32
    %c0_i32_0 = arith.constant 0 : i32
    %c0_i32_1 = arith.constant 0 : i32
    return %c0_i32, %c0_i32_0 : i32, i32
  }
  func.func @transform_14(%arg0: i32, %arg1: i32) -> (i32, i32) {
    %c0_i32 = arith.constant 0 : i32
    %c0_i32_0 = arith.constant 0 : i32
    %c0_i32_1 = arith.constant 0 : i32
    return %c0_i32, %c0_i32_0 : i32, i32
  }
  func.func @transform_15(%arg0: i32, %arg1: i32) -> (i32, i32) {
    %c0_i32 = arith.constant 0 : i32
    %c0_i32_0 = arith.constant 0 : i32
    %c0_i32_1 = arith.constant 0 : i32
    return %c0_i32, %c0_i32_0 : i32, i32
  }
  func.func @transform_16(%arg0: i32, %arg1: i32) -> (i32, i32) {
    %c0_i32 = arith.constant 0 : i32
    %c0_i32_0 = arith.constant 0 : i32
    %c0_i32_1 = arith.constant 0 : i32
    return %c0_i32, %c0_i32_0 : i32, i32
  }
  func.func @transform_17(%arg0: i32, %arg1: i32) -> (i32, i32, i32) {
    %c0_i32 = arith.constant 0 : i32
    %c0_i32_0 = arith.constant 0 : i32
    return %arg0, %arg1, %c0_i32 : i32, i32, i32
  }
}

module attributes {stable_mosaic.version = 11 : i64} {
  func.func @kernel(%arg0: i32, %arg1: i32, %arg2: memref<1x8x128xf32, #tpu.memory_space<vmem>>, %arg3: memref<4x128x8xbf16, #tpu.memory_space<vmem>>, %arg4: memref<4x1x8xf32, #tpu.memory_space<vmem>>, %arg5: memref<4x128x8xbf16, #tpu.memory_space<vmem>>, %arg6: memref<4x1x8xf32, #tpu.memory_space<vmem>>, %arg7: memref<4x128x8xbf16, #tpu.memory_space<vmem>>, %arg8: memref<4x1x8xf32, #tpu.memory_space<vmem>>, %arg9: memref<4x8x128xbf16, #tpu.memory_space<vmem>>, %arg10: memref<1x128xf32, #tpu.memory_space<vmem>>, %arg11: memref<1x128xf32, #tpu.memory_space<vmem>>, %arg12: memref<1x128xf32, #tpu.memory_space<vmem>>, %arg13: memref<128x128xbf16, #tpu.memory_space<vmem>>, %arg14: memref<1x128xf32, #tpu.memory_space<vmem>>, %arg15: memref<128x128xbf16, #tpu.memory_space<vmem>>, %arg16: memref<1x128xf32, #tpu.memory_space<vmem>>, %arg17: memref<1x128xf32, #tpu.memory_space<vmem>>, %arg18: memref<1x128xf32, #tpu.memory_space<vmem>>, %arg19: memref<1x8x128xf32, #tpu.memory_space<vmem>>, %arg20: memref<4x8x8xbf16, #tpu.memory_space<vmem>>, %arg21: memref<4x8x8xbf16, #tpu.memory_space<vmem>>) attributes {dimension_semantics = [#tpu.dimension_semantics<parallel>, #tpu.dimension_semantics<arbitrary>], iteration_bounds = array<i64: 2, 1>, scalar_prefetch = 0 : i64, scratch_operands = 2 : i64, tpu.core_type = #tpu.core_type<tc>, window_params = [{transform_indices = @transform_0, window_bounds = array<i64: 1, 8, 128>}, {pipeline_mode = #tpu.pipeline_mode<synchronous>, transform_indices = @transform_1, window_bounds = array<i64: 4, 128, 8>}, {pipeline_mode = #tpu.pipeline_mode<synchronous>, transform_indices = @transform_2, window_bounds = array<i64: 4, 1, 8>}, {pipeline_mode = #tpu.pipeline_mode<synchronous>, transform_indices = @transform_3, window_bounds = array<i64: 4, 128, 8>}, {pipeline_mode = #tpu.pipeline_mode<synchronous>, transform_indices = @transform_4, window_bounds = array<i64: 4, 1, 8>}, {pipeline_mode = #tpu.pipeline_mode<synchronous>, transform_indices = @transform_5, window_bounds = array<i64: 4, 128, 8>}, {pipeline_mode = #tpu.pipeline_mode<synchronous>, transform_indices = @transform_6, window_bounds = array<i64: 4, 1, 8>}, {pipeline_mode = #tpu.pipeline_mode<synchronous>, transform_indices = @transform_7, window_bounds = array<i64: 4, 8, 128>}, {pipeline_mode = #tpu.pipeline_mode<synchronous>, transform_indices = @transform_8, window_bounds = array<i64: 1, 128>}, {pipeline_mode = #tpu.pipeline_mode<synchronous>, transform_indices = @transform_9, window_bounds = array<i64: 1, 128>}, {pipeline_mode = #tpu.pipeline_mode<synchronous>, transform_indices = @transform_10, window_bounds = array<i64: 1, 128>}, {pipeline_mode = #tpu.pipeline_mode<synchronous>, transform_indices = @transform_11, window_bounds = array<i64: 128, 128>}, {pipeline_mode = #tpu.pipeline_mode<synchronous>, transform_indices = @transform_12, window_bounds = array<i64: 1, 128>}, {pipeline_mode = #tpu.pipeline_mode<synchronous>, transform_indices = @transform_13, window_bounds = array<i64: 128, 128>}, {pipeline_mode = #tpu.pipeline_mode<synchronous>, transform_indices = @transform_14, window_bounds = array<i64: 1, 128>}, {pipeline_mode = #tpu.pipeline_mode<synchronous>, transform_indices = @transform_15, window_bounds = array<i64: 1, 128>}, {pipeline_mode = #tpu.pipeline_mode<synchronous>, transform_indices = @transform_16, window_bounds = array<i64: 1, 128>}, {transform_indices = @transform_17, window_bounds = array<i64: 1, 8, 128>}]} {
    %c0_i32 = arith.constant 0 : i32
    %0 = arith.cmpi eq, %arg1, %c0_i32 : i32
    %1 = arith.extui %0 : i1 to i32
    %c0_i32_0 = arith.constant 0 : i32
    %2 = arith.cmpi ne, %1, %c0_i32_0 : i32
    scf.if %2 {
      %c0_123 = arith.constant 0 : index
      %c0_124 = arith.constant 0 : index
      %c0_125 = arith.constant 0 : index
      %212 = vector.load %arg2[%c0_123, %c0_124, %c0_125] : memref<1x8x128xf32, #tpu.memory_space<vmem>>, vector<1x8x128xf32>
      %213 = vector.shape_cast %212 : vector<1x8x128xf32> to vector<8x128xf32>
      %214 = arith.truncf %213 : vector<8x128xf32> to vector<8x128xbf16>
      %c0_126 = arith.constant 0 : index
      %c0_127 = arith.constant 0 : index
      %c0_128 = arith.constant 0 : index
      %215 = vector.load %arg5[%c0_126, %c0_127, %c0_128] : memref<4x128x8xbf16, #tpu.memory_space<vmem>>, vector<1x128x8xbf16>
      %216 = vector.shape_cast %215 : vector<1x128x8xbf16> to vector<128x8xbf16>
      %cst_129 = arith.constant dense<0.000000e+00> : vector<8x8xf32>
      %217 = tpu.matmul %214, %216, %cst_129 {dimension_numbers = #tpu.dot_dimension_numbers<[1], [0], [0], [1], [0, 0, 1, 1], [], []>} : vector<8x128xbf16>, vector<128x8xbf16>, vector<8x8xf32> -> vector<8x8xf32>
      %c0_130 = arith.constant 0 : index
      %c0_131 = arith.constant 0 : index
      %c0_132 = arith.constant 0 : index
      %218 = vector.load %arg6[%c0_130, %c0_131, %c0_132] : memref<4x1x8xf32, #tpu.memory_space<vmem>>, vector<1x1x8xf32>
      %219 = vector.shape_cast %218 : vector<1x1x8xf32> to vector<1x8xf32>
      %220 = vector.broadcast %219 : vector<1x8xf32> to vector<8x8xf32>
      %221 = arith.addf %217, %220 : vector<8x8xf32>
      %c0_133 = arith.constant 0 : index
      %c0_134 = arith.constant 0 : index
      %c0_135 = arith.constant 0 : index
      %222 = vector.load %arg7[%c0_133, %c0_134, %c0_135] : memref<4x128x8xbf16, #tpu.memory_space<vmem>>, vector<1x128x8xbf16>
      %223 = vector.shape_cast %222 : vector<1x128x8xbf16> to vector<128x8xbf16>
      %cst_136 = arith.constant dense<0.000000e+00> : vector<8x8xf32>
      %224 = tpu.matmul %214, %223, %cst_136 {dimension_numbers = #tpu.dot_dimension_numbers<[1], [0], [0], [1], [0, 0, 1, 1], [], []>} : vector<8x128xbf16>, vector<128x8xbf16>, vector<8x8xf32> -> vector<8x8xf32>
      %c0_137 = arith.constant 0 : index
      %c0_138 = arith.constant 0 : index
      %c0_139 = arith.constant 0 : index
      %225 = vector.load %arg8[%c0_137, %c0_138, %c0_139] : memref<4x1x8xf32, #tpu.memory_space<vmem>>, vector<1x1x8xf32>
      %226 = vector.shape_cast %225 : vector<1x1x8xf32> to vector<1x8xf32>
      %227 = vector.broadcast %226 : vector<1x8xf32> to vector<8x8xf32>
      %228 = arith.addf %224, %227 : vector<8x8xf32>
      %229 = arith.truncf %221 : vector<8x8xf32> to vector<8x8xbf16>
      %c0_140 = arith.constant 0 : index
      %c0_141 = arith.constant 0 : index
      %c0_142 = arith.constant 0 : index
      %230 = vector.load %arg20[%c0_140, %c0_141, %c0_142] : memref<4x8x8xbf16, #tpu.memory_space<vmem>>, vector<1x8x8xbf16>
      %231 = vector.shape_cast %230 : vector<1x8x8xbf16> to vector<8x8xbf16>
      %232 = vector.shape_cast %229 : vector<8x8xbf16> to vector<1x8x8xbf16>
      tpu.vector_store %arg20[%c0_140, %c0_141, %c0_142], %232 {strides = array<i32>} : memref<4x8x8xbf16, #tpu.memory_space<vmem>>, vector<1x8x8xbf16>,
      %233 = arith.truncf %228 : vector<8x8xf32> to vector<8x8xbf16>
      %c0_143 = arith.constant 0 : index
      %c0_144 = arith.constant 0 : index
      %c0_145 = arith.constant 0 : index
      %234 = vector.load %arg21[%c0_143, %c0_144, %c0_145] : memref<4x8x8xbf16, #tpu.memory_space<vmem>>, vector<1x8x8xbf16>
      %235 = vector.shape_cast %234 : vector<1x8x8xbf16> to vector<8x8xbf16>
      %236 = vector.shape_cast %233 : vector<8x8xbf16> to vector<1x8x8xbf16>
      tpu.vector_store %arg21[%c0_143, %c0_144, %c0_145], %236 {strides = array<i32>} : memref<4x8x8xbf16, #tpu.memory_space<vmem>>, vector<1x8x8xbf16>,
      %c1_146 = arith.constant 1 : index
      %c0_147 = arith.constant 0 : index
      %c0_148 = arith.constant 0 : index
      %237 = vector.load %arg5[%c1_146, %c0_147, %c0_148] : memref<4x128x8xbf16, #tpu.memory_space<vmem>>, vector<1x128x8xbf16>
      %238 = vector.shape_cast %237 : vector<1x128x8xbf16> to vector<128x8xbf16>
      %cst_149 = arith.constant dense<0.000000e+00> : vector<8x8xf32>
      %239 = tpu.matmul %214, %238, %cst_149 {dimension_numbers = #tpu.dot_dimension_numbers<[1], [0], [0], [1], [0, 0, 1, 1], [], []>} : vector<8x128xbf16>, vector<128x8xbf16>, vector<8x8xf32> -> vector<8x8xf32>
      %c1_150 = arith.constant 1 : index
      %c0_151 = arith.constant 0 : index
      %c0_152 = arith.constant 0 : index
      %240 = vector.load %arg6[%c1_150, %c0_151, %c0_152] : memref<4x1x8xf32, #tpu.memory_space<vmem>>, vector<1x1x8xf32>
      %241 = vector.shape_cast %240 : vector<1x1x8xf32> to vector<1x8xf32>
      %242 = vector.broadcast %241 : vector<1x8xf32> to vector<8x8xf32>
      %243 = arith.addf %239, %242 : vector<8x8xf32>
      %c1_153 = arith.constant 1 : index
      %c0_154 = arith.constant 0 : index
      %c0_155 = arith.constant 0 : index
      %244 = vector.load %arg7[%c1_153, %c0_154, %c0_155] : memref<4x128x8xbf16, #tpu.memory_space<vmem>>, vector<1x128x8xbf16>
      %245 = vector.shape_cast %244 : vector<1x128x8xbf16> to vector<128x8xbf16>
      %cst_156 = arith.constant dense<0.000000e+00> : vector<8x8xf32>
      %246 = tpu.matmul %214, %245, %cst_156 {dimension_numbers = #tpu.dot_dimension_numbers<[1], [0], [0], [1], [0, 0, 1, 1], [], []>} : vector<8x128xbf16>, vector<128x8xbf16>, vector<8x8xf32> -> vector<8x8xf32>
      %c1_157 = arith.constant 1 : index
      %c0_158 = arith.constant 0 : index
      %c0_159 = arith.constant 0 : index
      %247 = vector.load %arg8[%c1_157, %c0_158, %c0_159] : memref<4x1x8xf32, #tpu.memory_space<vmem>>, vector<1x1x8xf32>
      %248 = vector.shape_cast %247 : vector<1x1x8xf32> to vector<1x8xf32>
      %249 = vector.broadcast %248 : vector<1x8xf32> to vector<8x8xf32>
      %250 = arith.addf %246, %249 : vector<8x8xf32>
      %251 = arith.truncf %243 : vector<8x8xf32> to vector<8x8xbf16>
      %c1_160 = arith.constant 1 : index
      %c0_161 = arith.constant 0 : index
      %c0_162 = arith.constant 0 : index
      %252 = vector.load %arg20[%c1_160, %c0_161, %c0_162] : memref<4x8x8xbf16, #tpu.memory_space<vmem>>, vector<1x8x8xbf16>
      %253 = vector.shape_cast %252 : vector<1x8x8xbf16> to vector<8x8xbf16>
      %254 = vector.shape_cast %251 : vector<8x8xbf16> to vector<1x8x8xbf16>
      tpu.vector_store %arg20[%c1_160, %c0_161, %c0_162], %254 {strides = array<i32>} : memref<4x8x8xbf16, #tpu.memory_space<vmem>>, vector<1x8x8xbf16>,
      %255 = arith.truncf %250 : vector<8x8xf32> to vector<8x8xbf16>
      %c1_163 = arith.constant 1 : index
      %c0_164 = arith.constant 0 : index
      %c0_165 = arith.constant 0 : index
      %256 = vector.load %arg21[%c1_163, %c0_164, %c0_165] : memref<4x8x8xbf16, #tpu.memory_space<vmem>>, vector<1x8x8xbf16>
      %257 = vector.shape_cast %256 : vector<1x8x8xbf16> to vector<8x8xbf16>
      %258 = vector.shape_cast %255 : vector<8x8xbf16> to vector<1x8x8xbf16>
      tpu.vector_store %arg21[%c1_163, %c0_164, %c0_165], %258 {strides = array<i32>} : memref<4x8x8xbf16, #tpu.memory_space<vmem>>, vector<1x8x8xbf16>,
      %c2_166 = arith.constant 2 : index
      %c0_167 = arith.constant 0 : index
      %c0_168 = arith.constant 0 : index
      %259 = vector.load %arg5[%c2_166, %c0_167, %c0_168] : memref<4x128x8xbf16, #tpu.memory_space<vmem>>, vector<1x128x8xbf16>
      %260 = vector.shape_cast %259 : vector<1x128x8xbf16> to vector<128x8xbf16>
      %cst_169 = arith.constant dense<0.000000e+00> : vector<8x8xf32>
      %261 = tpu.matmul %214, %260, %cst_169 {dimension_numbers = #tpu.dot_dimension_numbers<[1], [0], [0], [1], [0, 0, 1, 1], [], []>} : vector<8x128xbf16>, vector<128x8xbf16>, vector<8x8xf32> -> vector<8x8xf32>
      %c2_170 = arith.constant 2 : index
      %c0_171 = arith.constant 0 : index
      %c0_172 = arith.constant 0 : index
      %262 = vector.load %arg6[%c2_170, %c0_171, %c0_172] : memref<4x1x8xf32, #tpu.memory_space<vmem>>, vector<1x1x8xf32>
      %263 = vector.shape_cast %262 : vector<1x1x8xf32> to vector<1x8xf32>
      %264 = vector.broadcast %263 : vector<1x8xf32> to vector<8x8xf32>
      %265 = arith.addf %261, %264 : vector<8x8xf32>
      %c2_173 = arith.constant 2 : index
      %c0_174 = arith.constant 0 : index
      %c0_175 = arith.constant 0 : index
      %266 = vector.load %arg7[%c2_173, %c0_174, %c0_175] : memref<4x128x8xbf16, #tpu.memory_space<vmem>>, vector<1x128x8xbf16>
      %267 = vector.shape_cast %266 : vector<1x128x8xbf16> to vector<128x8xbf16>
      %cst_176 = arith.constant dense<0.000000e+00> : vector<8x8xf32>
      %268 = tpu.matmul %214, %267, %cst_176 {dimension_numbers = #tpu.dot_dimension_numbers<[1], [0], [0], [1], [0, 0, 1, 1], [], []>} : vector<8x128xbf16>, vector<128x8xbf16>, vector<8x8xf32> -> vector<8x8xf32>
      %c2_177 = arith.constant 2 : index
      %c0_178 = arith.constant 0 : index
      %c0_179 = arith.constant 0 : index
      %269 = vector.load %arg8[%c2_177, %c0_178, %c0_179] : memref<4x1x8xf32, #tpu.memory_space<vmem>>, vector<1x1x8xf32>
      %270 = vector.shape_cast %269 : vector<1x1x8xf32> to vector<1x8xf32>
      %271 = vector.broadcast %270 : vector<1x8xf32> to vector<8x8xf32>
      %272 = arith.addf %268, %271 : vector<8x8xf32>
      %273 = arith.truncf %265 : vector<8x8xf32> to vector<8x8xbf16>
      %c2_180 = arith.constant 2 : index
      %c0_181 = arith.constant 0 : index
      %c0_182 = arith.constant 0 : index
      %274 = vector.load %arg20[%c2_180, %c0_181, %c0_182] : memref<4x8x8xbf16, #tpu.memory_space<vmem>>, vector<1x8x8xbf16>
      %275 = vector.shape_cast %274 : vector<1x8x8xbf16> to vector<8x8xbf16>
      %276 = vector.shape_cast %273 : vector<8x8xbf16> to vector<1x8x8xbf16>
      tpu.vector_store %arg20[%c2_180, %c0_181, %c0_182], %276 {strides = array<i32>} : memref<4x8x8xbf16, #tpu.memory_space<vmem>>, vector<1x8x8xbf16>,
      %277 = arith.truncf %272 : vector<8x8xf32> to vector<8x8xbf16>
      %c2_183 = arith.constant 2 : index
      %c0_184 = arith.constant 0 : index
      %c0_185 = arith.constant 0 : index
      %278 = vector.load %arg21[%c2_183, %c0_184, %c0_185] : memref<4x8x8xbf16, #tpu.memory_space<vmem>>, vector<1x8x8xbf16>
      %279 = vector.shape_cast %278 : vector<1x8x8xbf16> to vector<8x8xbf16>
      %280 = vector.shape_cast %277 : vector<8x8xbf16> to vector<1x8x8xbf16>
      tpu.vector_store %arg21[%c2_183, %c0_184, %c0_185], %280 {strides = array<i32>} : memref<4x8x8xbf16, #tpu.memory_space<vmem>>, vector<1x8x8xbf16>,
      %c3_186 = arith.constant 3 : index
      %c0_187 = arith.constant 0 : index
      %c0_188 = arith.constant 0 : index
      %281 = vector.load %arg5[%c3_186, %c0_187, %c0_188] : memref<4x128x8xbf16, #tpu.memory_space<vmem>>, vector<1x128x8xbf16>
      %282 = vector.shape_cast %281 : vector<1x128x8xbf16> to vector<128x8xbf16>
      %cst_189 = arith.constant dense<0.000000e+00> : vector<8x8xf32>
      %283 = tpu.matmul %214, %282, %cst_189 {dimension_numbers = #tpu.dot_dimension_numbers<[1], [0], [0], [1], [0, 0, 1, 1], [], []>} : vector<8x128xbf16>, vector<128x8xbf16>, vector<8x8xf32> -> vector<8x8xf32>
      %c3_190 = arith.constant 3 : index
      %c0_191 = arith.constant 0 : index
      %c0_192 = arith.constant 0 : index
      %284 = vector.load %arg6[%c3_190, %c0_191, %c0_192] : memref<4x1x8xf32, #tpu.memory_space<vmem>>, vector<1x1x8xf32>
      %285 = vector.shape_cast %284 : vector<1x1x8xf32> to vector<1x8xf32>
      %286 = vector.broadcast %285 : vector<1x8xf32> to vector<8x8xf32>
      %287 = arith.addf %283, %286 : vector<8x8xf32>
      %c3_193 = arith.constant 3 : index
      %c0_194 = arith.constant 0 : index
      %c0_195 = arith.constant 0 : index
      %288 = vector.load %arg7[%c3_193, %c0_194, %c0_195] : memref<4x128x8xbf16, #tpu.memory_space<vmem>>, vector<1x128x8xbf16>
      %289 = vector.shape_cast %288 : vector<1x128x8xbf16> to vector<128x8xbf16>
      %cst_196 = arith.constant dense<0.000000e+00> : vector<8x8xf32>
      %290 = tpu.matmul %214, %289, %cst_196 {dimension_numbers = #tpu.dot_dimension_numbers<[1], [0], [0], [1], [0, 0, 1, 1], [], []>} : vector<8x128xbf16>, vector<128x8xbf16>, vector<8x8xf32> -> vector<8x8xf32>
      %c3_197 = arith.constant 3 : index
      %c0_198 = arith.constant 0 : index
      %c0_199 = arith.constant 0 : index
      %291 = vector.load %arg8[%c3_197, %c0_198, %c0_199] : memref<4x1x8xf32, #tpu.memory_space<vmem>>, vector<1x1x8xf32>
      %292 = vector.shape_cast %291 : vector<1x1x8xf32> to vector<1x8xf32>
      %293 = vector.broadcast %292 : vector<1x8xf32> to vector<8x8xf32>
      %294 = arith.addf %290, %293 : vector<8x8xf32>
      %295 = arith.truncf %287 : vector<8x8xf32> to vector<8x8xbf16>
      %c3_200 = arith.constant 3 : index
      %c0_201 = arith.constant 0 : index
      %c0_202 = arith.constant 0 : index
      %296 = vector.load %arg20[%c3_200, %c0_201, %c0_202] : memref<4x8x8xbf16, #tpu.memory_space<vmem>>, vector<1x8x8xbf16>
      %297 = vector.shape_cast %296 : vector<1x8x8xbf16> to vector<8x8xbf16>
      %298 = vector.shape_cast %295 : vector<8x8xbf16> to vector<1x8x8xbf16>
      tpu.vector_store %arg20[%c3_200, %c0_201, %c0_202], %298 {strides = array<i32>} : memref<4x8x8xbf16, #tpu.memory_space<vmem>>, vector<1x8x8xbf16>,
      %299 = arith.truncf %294 : vector<8x8xf32> to vector<8x8xbf16>
      %c3_203 = arith.constant 3 : index
      %c0_204 = arith.constant 0 : index
      %c0_205 = arith.constant 0 : index
      %300 = vector.load %arg21[%c3_203, %c0_204, %c0_205] : memref<4x8x8xbf16, #tpu.memory_space<vmem>>, vector<1x8x8xbf16>
      %301 = vector.shape_cast %300 : vector<1x8x8xbf16> to vector<8x8xbf16>
      %302 = vector.shape_cast %299 : vector<8x8xbf16> to vector<1x8x8xbf16>
      tpu.vector_store %arg21[%c3_203, %c0_204, %c0_205], %302 {strides = array<i32>} : memref<4x8x8xbf16, #tpu.memory_space<vmem>>, vector<1x8x8xbf16>,
    } else {
    }
    %c8_i32 = arith.constant 8 : i32
    %3 = arith.muli %arg1, %c8_i32 : i32
    %4 = tpu.assume_multiple %3, 8 : i32
    %c0 = arith.constant 0 : index
    %5 = arith.index_cast %4 : i32 to index
    %c0_1 = arith.constant 0 : index
    %6 = vector.load %arg2[%c0, %5, %c0_1] : memref<1x8x128xf32, #tpu.memory_space<vmem>>, vector<1x8x128xf32>
    %7 = vector.shape_cast %6 : vector<1x8x128xf32> to vector<8x128xf32>
    %8 = arith.truncf %7 : vector<8x128xf32> to vector<8x128xbf16>
    %cst = arith.constant 0.000000e+00 : f32
    %9 = vector.broadcast %cst : f32 to vector<8x128xf32>
    %c0_2 = arith.constant 0 : index
    %c0_3 = arith.constant 0 : index
    %c0_4 = arith.constant 0 : index
    %10 = vector.load %arg3[%c0_2, %c0_3, %c0_4] : memref<4x128x8xbf16, #tpu.memory_space<vmem>>, vector<1x128x8xbf16>
    %11 = vector.shape_cast %10 : vector<1x128x8xbf16> to vector<128x8xbf16>
    %cst_5 = arith.constant dense<0.000000e+00> : vector<8x8xf32>
    %12 = tpu.matmul %8, %11, %cst_5 {dimension_numbers = #tpu.dot_dimension_numbers<[1], [0], [0], [1], [0, 0, 1, 1], [], []>} : vector<8x128xbf16>, vector<128x8xbf16>, vector<8x8xf32> -> vector<8x8xf32>
    %c0_6 = arith.constant 0 : index
    %c0_7 = arith.constant 0 : index
    %c0_8 = arith.constant 0 : index
    %13 = vector.load %arg4[%c0_6, %c0_7, %c0_8] : memref<4x1x8xf32, #tpu.memory_space<vmem>>, vector<1x1x8xf32>
    %14 = vector.shape_cast %13 : vector<1x1x8xf32> to vector<1x8xf32>
    %15 = vector.broadcast %14 : vector<1x8xf32> to vector<8x8xf32>
    %16 = arith.addf %12, %15 : vector<8x8xf32>
    %cst_9 = arith.constant 0.353553385 : f32
    %17 = vector.broadcast %cst_9 : f32 to vector<8x8xf32>
    %18 = arith.mulf %16, %17 : vector<8x8xf32>
    %19 = arith.truncf %18 : vector<8x8xf32> to vector<8x8xbf16>
    %c0_10 = arith.constant 0 : index
    %c0_11 = arith.constant 0 : index
    %c0_12 = arith.constant 0 : index
    %20 = vector.load %arg20[%c0_10, %c0_11, %c0_12] : memref<4x8x8xbf16, #tpu.memory_space<vmem>>, vector<1x8x8xbf16>
    %21 = vector.shape_cast %20 : vector<1x8x8xbf16> to vector<8x8xbf16>
    %c0_13 = arith.constant 0 : index
    %c0_14 = arith.constant 0 : index
    %c0_15 = arith.constant 0 : index
    %22 = vector.load %arg21[%c0_13, %c0_14, %c0_15] : memref<4x8x8xbf16, #tpu.memory_space<vmem>>, vector<1x8x8xbf16>
    %23 = vector.shape_cast %22 : vector<1x8x8xbf16> to vector<8x8xbf16>
    %cst_16 = arith.constant dense<0.000000e+00> : vector<8x8xf32>
    %24 = tpu.matmul %19, %21, %cst_16 {dimension_numbers = #tpu.dot_dimension_numbers<[1], [1], [0], [0], [0, 0, 1, 0], [], []>} : vector<8x8xbf16>, vector<8x8xbf16>, vector<8x8xf32> -> vector<8x8xf32>
    %cst_17 = arith.constant dense<0xFF800000> : vector<8xf32>
    %25 = vector.multi_reduction <maximumf>, %24, %cst_17 [1] : vector<8x8xf32> to vector<8xf32>
    %26 = vector.shape_cast %25 : vector<8xf32> to vector<8x1xf32>
    %27 = vector.broadcast %26 : vector<8x1xf32> to vector<8x8xf32>
    %28 = arith.subf %24, %27 : vector<8x8xf32>
    %29 = math.exp %28 : vector<8x8xf32>
    %cst_18 = arith.constant dense<0.000000e+00> : vector<8xf32>
    %30 = vector.multi_reduction <add>, %29, %cst_18 [1] : vector<8x8xf32> to vector<8xf32>
    %31 = vector.shape_cast %30 : vector<8xf32> to vector<8x1xf32>
    %32 = tpu.reciprocal %31 {approx = true} : vector<8x1xf32> -> vector<8x1xf32>
    %33 = vector.broadcast %32 : vector<8x1xf32> to vector<8x8xf32>
    %34 = arith.mulf %29, %33 : vector<8x8xf32>
    %35 = arith.truncf %34 : vector<8x8xf32> to vector<8x8xbf16>
    %cst_19 = arith.constant dense<0.000000e+00> : vector<8x8xf32>
    %36 = tpu.matmul %35, %23, %cst_19 {dimension_numbers = #tpu.dot_dimension_numbers<[1], [0], [0], [1], [0, 0, 1, 1], [], []>} : vector<8x8xbf16>, vector<8x8xbf16>, vector<8x8xf32> -> vector<8x8xf32>
    %37 = arith.truncf %36 : vector<8x8xf32> to vector<8x8xbf16>
    %c0_20 = arith.constant 0 : index
    %c0_21 = arith.constant 0 : index
    %c0_22 = arith.constant 0 : index
    %38 = vector.load %arg9[%c0_20, %c0_21, %c0_22] : memref<4x8x128xbf16, #tpu.memory_space<vmem>>, vector<1x8x128xbf16>
    %39 = vector.shape_cast %38 : vector<1x8x128xbf16> to vector<8x128xbf16>
    %cst_23 = arith.constant dense<0.000000e+00> : vector<8x128xf32>
    %40 = tpu.matmul %37, %39, %cst_23 {dimension_numbers = #tpu.dot_dimension_numbers<[1], [0], [0], [1], [0, 0, 1, 1], [], []>} : vector<8x8xbf16>, vector<8x128xbf16>, vector<8x128xf32> -> vector<8x128xf32>
    %41 = arith.addf %9, %40 : vector<8x128xf32>
    %c1 = arith.constant 1 : index
    %c0_24 = arith.constant 0 : index
    %c0_25 = arith.constant 0 : index
    %42 = vector.load %arg3[%c1, %c0_24, %c0_25] : memref<4x128x8xbf16, #tpu.memory_space<vmem>>, vector<1x128x8xbf16>
    %43 = vector.shape_cast %42 : vector<1x128x8xbf16> to vector<128x8xbf16>
    %cst_26 = arith.constant dense<0.000000e+00> : vector<8x8xf32>
    %44 = tpu.matmul %8, %43, %cst_26 {dimension_numbers = #tpu.dot_dimension_numbers<[1], [0], [0], [1], [0, 0, 1, 1], [], []>} : vector<8x128xbf16>, vector<128x8xbf16>, vector<8x8xf32> -> vector<8x8xf32>
    %c1_27 = arith.constant 1 : index
    %c0_28 = arith.constant 0 : index
    %c0_29 = arith.constant 0 : index
    %45 = vector.load %arg4[%c1_27, %c0_28, %c0_29] : memref<4x1x8xf32, #tpu.memory_space<vmem>>, vector<1x1x8xf32>
    %46 = vector.shape_cast %45 : vector<1x1x8xf32> to vector<1x8xf32>
    %47 = vector.broadcast %46 : vector<1x8xf32> to vector<8x8xf32>
    %48 = arith.addf %44, %47 : vector<8x8xf32>
    %cst_30 = arith.constant 0.353553385 : f32
    %49 = vector.broadcast %cst_30 : f32 to vector<8x8xf32>
    %50 = arith.mulf %48, %49 : vector<8x8xf32>
    %51 = arith.truncf %50 : vector<8x8xf32> to vector<8x8xbf16>
    %c1_31 = arith.constant 1 : index
    %c0_32 = arith.constant 0 : index
    %c0_33 = arith.constant 0 : index
    %52 = vector.load %arg20[%c1_31, %c0_32, %c0_33] : memref<4x8x8xbf16, #tpu.memory_space<vmem>>, vector<1x8x8xbf16>
    %53 = vector.shape_cast %52 : vector<1x8x8xbf16> to vector<8x8xbf16>
    %c1_34 = arith.constant 1 : index
    %c0_35 = arith.constant 0 : index
    %c0_36 = arith.constant 0 : index
    %54 = vector.load %arg21[%c1_34, %c0_35, %c0_36] : memref<4x8x8xbf16, #tpu.memory_space<vmem>>, vector<1x8x8xbf16>
    %55 = vector.shape_cast %54 : vector<1x8x8xbf16> to vector<8x8xbf16>
    %cst_37 = arith.constant dense<0.000000e+00> : vector<8x8xf32>
    %56 = tpu.matmul %51, %53, %cst_37 {dimension_numbers = #tpu.dot_dimension_numbers<[1], [1], [0], [0], [0, 0, 1, 0], [], []>} : vector<8x8xbf16>, vector<8x8xbf16>, vector<8x8xf32> -> vector<8x8xf32>
    %cst_38 = arith.constant dense<0xFF800000> : vector<8xf32>
    %57 = vector.multi_reduction <maximumf>, %56, %cst_38 [1] : vector<8x8xf32> to vector<8xf32>
    %58 = vector.shape_cast %57 : vector<8xf32> to vector<8x1xf32>
    %59 = vector.broadcast %58 : vector<8x1xf32> to vector<8x8xf32>
    %60 = arith.subf %56, %59 : vector<8x8xf32>
    %61 = math.exp %60 : vector<8x8xf32>
    %cst_39 = arith.constant dense<0.000000e+00> : vector<8xf32>
    %62 = vector.multi_reduction <add>, %61, %cst_39 [1] : vector<8x8xf32> to vector<8xf32>
    %63 = vector.shape_cast %62 : vector<8xf32> to vector<8x1xf32>
    %64 = tpu.reciprocal %63 {approx = true} : vector<8x1xf32> -> vector<8x1xf32>
    %65 = vector.broadcast %64 : vector<8x1xf32> to vector<8x8xf32>
    %66 = arith.mulf %61, %65 : vector<8x8xf32>
    %67 = arith.truncf %66 : vector<8x8xf32> to vector<8x8xbf16>
    %cst_40 = arith.constant dense<0.000000e+00> : vector<8x8xf32>
    %68 = tpu.matmul %67, %55, %cst_40 {dimension_numbers = #tpu.dot_dimension_numbers<[1], [0], [0], [1], [0, 0, 1, 1], [], []>} : vector<8x8xbf16>, vector<8x8xbf16>, vector<8x8xf32> -> vector<8x8xf32>
    %69 = arith.truncf %68 : vector<8x8xf32> to vector<8x8xbf16>
    %c1_41 = arith.constant 1 : index
    %c0_42 = arith.constant 0 : index
    %c0_43 = arith.constant 0 : index
    %70 = vector.load %arg9[%c1_41, %c0_42, %c0_43] : memref<4x8x128xbf16, #tpu.memory_space<vmem>>, vector<1x8x128xbf16>
    %71 = vector.shape_cast %70 : vector<1x8x128xbf16> to vector<8x128xbf16>
    %cst_44 = arith.constant dense<0.000000e+00> : vector<8x128xf32>
    %72 = tpu.matmul %69, %71, %cst_44 {dimension_numbers = #tpu.dot_dimension_numbers<[1], [0], [0], [1], [0, 0, 1, 1], [], []>} : vector<8x8xbf16>, vector<8x128xbf16>, vector<8x128xf32> -> vector<8x128xf32>
    %73 = arith.addf %41, %72 : vector<8x128xf32>
    %c2 = arith.constant 2 : index
    %c0_45 = arith.constant 0 : index
    %c0_46 = arith.constant 0 : index
    %74 = vector.load %arg3[%c2, %c0_45, %c0_46] : memref<4x128x8xbf16, #tpu.memory_space<vmem>>, vector<1x128x8xbf16>
    %75 = vector.shape_cast %74 : vector<1x128x8xbf16> to vector<128x8xbf16>
    %cst_47 = arith.constant dense<0.000000e+00> : vector<8x8xf32>
    %76 = tpu.matmul %8, %75, %cst_47 {dimension_numbers = #tpu.dot_dimension_numbers<[1], [0], [0], [1], [0, 0, 1, 1], [], []>} : vector<8x128xbf16>, vector<128x8xbf16>, vector<8x8xf32> -> vector<8x8xf32>
    %c2_48 = arith.constant 2 : index
    %c0_49 = arith.constant 0 : index
    %c0_50 = arith.constant 0 : index
    %77 = vector.load %arg4[%c2_48, %c0_49, %c0_50] : memref<4x1x8xf32, #tpu.memory_space<vmem>>, vector<1x1x8xf32>
    %78 = vector.shape_cast %77 : vector<1x1x8xf32> to vector<1x8xf32>
    %79 = vector.broadcast %78 : vector<1x8xf32> to vector<8x8xf32>
    %80 = arith.addf %76, %79 : vector<8x8xf32>
    %cst_51 = arith.constant 0.353553385 : f32
    %81 = vector.broadcast %cst_51 : f32 to vector<8x8xf32>
    %82 = arith.mulf %80, %81 : vector<8x8xf32>
    %83 = arith.truncf %82 : vector<8x8xf32> to vector<8x8xbf16>
    %c2_52 = arith.constant 2 : index
    %c0_53 = arith.constant 0 : index
    %c0_54 = arith.constant 0 : index
    %84 = vector.load %arg20[%c2_52, %c0_53, %c0_54] : memref<4x8x8xbf16, #tpu.memory_space<vmem>>, vector<1x8x8xbf16>
    %85 = vector.shape_cast %84 : vector<1x8x8xbf16> to vector<8x8xbf16>
    %c2_55 = arith.constant 2 : index
    %c0_56 = arith.constant 0 : index
    %c0_57 = arith.constant 0 : index
    %86 = vector.load %arg21[%c2_55, %c0_56, %c0_57] : memref<4x8x8xbf16, #tpu.memory_space<vmem>>, vector<1x8x8xbf16>
    %87 = vector.shape_cast %86 : vector<1x8x8xbf16> to vector<8x8xbf16>
    %cst_58 = arith.constant dense<0.000000e+00> : vector<8x8xf32>
    %88 = tpu.matmul %83, %85, %cst_58 {dimension_numbers = #tpu.dot_dimension_numbers<[1], [1], [0], [0], [0, 0, 1, 0], [], []>} : vector<8x8xbf16>, vector<8x8xbf16>, vector<8x8xf32> -> vector<8x8xf32>
    %cst_59 = arith.constant dense<0xFF800000> : vector<8xf32>
    %89 = vector.multi_reduction <maximumf>, %88, %cst_59 [1] : vector<8x8xf32> to vector<8xf32>
    %90 = vector.shape_cast %89 : vector<8xf32> to vector<8x1xf32>
    %91 = vector.broadcast %90 : vector<8x1xf32> to vector<8x8xf32>
    %92 = arith.subf %88, %91 : vector<8x8xf32>
    %93 = math.exp %92 : vector<8x8xf32>
    %cst_60 = arith.constant dense<0.000000e+00> : vector<8xf32>
    %94 = vector.multi_reduction <add>, %93, %cst_60 [1] : vector<8x8xf32> to vector<8xf32>
    %95 = vector.shape_cast %94 : vector<8xf32> to vector<8x1xf32>
    %96 = tpu.reciprocal %95 {approx = true} : vector<8x1xf32> -> vector<8x1xf32>
    %97 = vector.broadcast %96 : vector<8x1xf32> to vector<8x8xf32>
    %98 = arith.mulf %93, %97 : vector<8x8xf32>
    %99 = arith.truncf %98 : vector<8x8xf32> to vector<8x8xbf16>
    %cst_61 = arith.constant dense<0.000000e+00> : vector<8x8xf32>
    %100 = tpu.matmul %99, %87, %cst_61 {dimension_numbers = #tpu.dot_dimension_numbers<[1], [0], [0], [1], [0, 0, 1, 1], [], []>} : vector<8x8xbf16>, vector<8x8xbf16>, vector<8x8xf32> -> vector<8x8xf32>
    %101 = arith.truncf %100 : vector<8x8xf32> to vector<8x8xbf16>
    %c2_62 = arith.constant 2 : index
    %c0_63 = arith.constant 0 : index
    %c0_64 = arith.constant 0 : index
    %102 = vector.load %arg9[%c2_62, %c0_63, %c0_64] : memref<4x8x128xbf16, #tpu.memory_space<vmem>>, vector<1x8x128xbf16>
    %103 = vector.shape_cast %102 : vector<1x8x128xbf16> to vector<8x128xbf16>
    %cst_65 = arith.constant dense<0.000000e+00> : vector<8x128xf32>
    %104 = tpu.matmul %101, %103, %cst_65 {dimension_numbers = #tpu.dot_dimension_numbers<[1], [0], [0], [1], [0, 0, 1, 1], [], []>} : vector<8x8xbf16>, vector<8x128xbf16>, vector<8x128xf32> -> vector<8x128xf32>
    %105 = arith.addf %73, %104 : vector<8x128xf32>
    %c3 = arith.constant 3 : index
    %c0_66 = arith.constant 0 : index
    %c0_67 = arith.constant 0 : index
    %106 = vector.load %arg3[%c3, %c0_66, %c0_67] : memref<4x128x8xbf16, #tpu.memory_space<vmem>>, vector<1x128x8xbf16>
    %107 = vector.shape_cast %106 : vector<1x128x8xbf16> to vector<128x8xbf16>
    %cst_68 = arith.constant dense<0.000000e+00> : vector<8x8xf32>
    %108 = tpu.matmul %8, %107, %cst_68 {dimension_numbers = #tpu.dot_dimension_numbers<[1], [0], [0], [1], [0, 0, 1, 1], [], []>} : vector<8x128xbf16>, vector<128x8xbf16>, vector<8x8xf32> -> vector<8x8xf32>
    %c3_69 = arith.constant 3 : index
    %c0_70 = arith.constant 0 : index
    %c0_71 = arith.constant 0 : index
    %109 = vector.load %arg4[%c3_69, %c0_70, %c0_71] : memref<4x1x8xf32, #tpu.memory_space<vmem>>, vector<1x1x8xf32>
    %110 = vector.shape_cast %109 : vector<1x1x8xf32> to vector<1x8xf32>
    %111 = vector.broadcast %110 : vector<1x8xf32> to vector<8x8xf32>
    %112 = arith.addf %108, %111 : vector<8x8xf32>
    %cst_72 = arith.constant 0.353553385 : f32
    %113 = vector.broadcast %cst_72 : f32 to vector<8x8xf32>
    %114 = arith.mulf %112, %113 : vector<8x8xf32>
    %115 = arith.truncf %114 : vector<8x8xf32> to vector<8x8xbf16>
    %c3_73 = arith.constant 3 : index
    %c0_74 = arith.constant 0 : index
    %c0_75 = arith.constant 0 : index
    %116 = vector.load %arg20[%c3_73, %c0_74, %c0_75] : memref<4x8x8xbf16, #tpu.memory_space<vmem>>, vector<1x8x8xbf16>
    %117 = vector.shape_cast %116 : vector<1x8x8xbf16> to vector<8x8xbf16>
    %c3_76 = arith.constant 3 : index
    %c0_77 = arith.constant 0 : index
    %c0_78 = arith.constant 0 : index
    %118 = vector.load %arg21[%c3_76, %c0_77, %c0_78] : memref<4x8x8xbf16, #tpu.memory_space<vmem>>, vector<1x8x8xbf16>
    %119 = vector.shape_cast %118 : vector<1x8x8xbf16> to vector<8x8xbf16>
    %cst_79 = arith.constant dense<0.000000e+00> : vector<8x8xf32>
    %120 = tpu.matmul %115, %117, %cst_79 {dimension_numbers = #tpu.dot_dimension_numbers<[1], [1], [0], [0], [0, 0, 1, 0], [], []>} : vector<8x8xbf16>, vector<8x8xbf16>, vector<8x8xf32> -> vector<8x8xf32>
    %cst_80 = arith.constant dense<0xFF800000> : vector<8xf32>
    %121 = vector.multi_reduction <maximumf>, %120, %cst_80 [1] : vector<8x8xf32> to vector<8xf32>
    %122 = vector.shape_cast %121 : vector<8xf32> to vector<8x1xf32>
    %123 = vector.broadcast %122 : vector<8x1xf32> to vector<8x8xf32>
    %124 = arith.subf %120, %123 : vector<8x8xf32>
    %125 = math.exp %124 : vector<8x8xf32>
    %cst_81 = arith.constant dense<0.000000e+00> : vector<8xf32>
    %126 = vector.multi_reduction <add>, %125, %cst_81 [1] : vector<8x8xf32> to vector<8xf32>
    %127 = vector.shape_cast %126 : vector<8xf32> to vector<8x1xf32>
    %128 = tpu.reciprocal %127 {approx = true} : vector<8x1xf32> -> vector<8x1xf32>
    %129 = vector.broadcast %128 : vector<8x1xf32> to vector<8x8xf32>
    %130 = arith.mulf %125, %129 : vector<8x8xf32>
    %131 = arith.truncf %130 : vector<8x8xf32> to vector<8x8xbf16>
    %cst_82 = arith.constant dense<0.000000e+00> : vector<8x8xf32>
    %132 = tpu.matmul %131, %119, %cst_82 {dimension_numbers = #tpu.dot_dimension_numbers<[1], [0], [0], [1], [0, 0, 1, 1], [], []>} : vector<8x8xbf16>, vector<8x8xbf16>, vector<8x8xf32> -> vector<8x8xf32>
    %133 = arith.truncf %132 : vector<8x8xf32> to vector<8x8xbf16>
    %c3_83 = arith.constant 3 : index
    %c0_84 = arith.constant 0 : index
    %c0_85 = arith.constant 0 : index
    %134 = vector.load %arg9[%c3_83, %c0_84, %c0_85] : memref<4x8x128xbf16, #tpu.memory_space<vmem>>, vector<1x8x128xbf16>
    %135 = vector.shape_cast %134 : vector<1x8x128xbf16> to vector<8x128xbf16>
    %cst_86 = arith.constant dense<0.000000e+00> : vector<8x128xf32>
    %136 = tpu.matmul %133, %135, %cst_86 {dimension_numbers = #tpu.dot_dimension_numbers<[1], [0], [0], [1], [0, 0, 1, 1], [], []>} : vector<8x8xbf16>, vector<8x128xbf16>, vector<8x128xf32> -> vector<8x128xf32>
    %137 = arith.addf %105, %136 : vector<8x128xf32>
    %c0_87 = arith.constant 0 : index
    %c0_88 = arith.constant 0 : index
    %138 = vector.load %arg10[%c0_87, %c0_88] : memref<1x128xf32, #tpu.memory_space<vmem>>, vector<1x128xf32>
    %139 = vector.broadcast %138 : vector<1x128xf32> to vector<8x128xf32>
    %140 = arith.addf %137, %139 : vector<8x128xf32>
    %141 = arith.addf %7, %140 : vector<8x128xf32>
    %c0_89 = arith.constant 0 : index
    %c0_90 = arith.constant 0 : index
    %142 = vector.load %arg11[%c0_89, %c0_90] : memref<1x128xf32, #tpu.memory_space<vmem>>, vector<1x128xf32>
    %c0_91 = arith.constant 0 : index
    %c0_92 = arith.constant 0 : index
    %143 = vector.load %arg12[%c0_91, %c0_92] : memref<1x128xf32, #tpu.memory_space<vmem>>, vector<1x128xf32>
    %cst_93 = arith.constant dense<0.000000e+00> : vector<8xf32>
    %144 = vector.multi_reduction <add>, %141, %cst_93 [1] : vector<8x128xf32> to vector<8xf32>
    %145 = vector.shape_cast %144 : vector<8xf32> to vector<8x1xf32>
    %cst_94 = arith.constant 3.125000e-02 : f32
    %146 = vector.broadcast %cst_94 : f32 to vector<8x1xf32>
    %147 = arith.mulf %145, %146 : vector<8x1xf32>
    %148 = vector.broadcast %147 : vector<8x1xf32> to vector<8x128xf32>
    %149 = arith.subf %141, %148 : vector<8x128xf32>
    %150 = arith.mulf %149, %149 : vector<8x128xf32>
    %cst_95 = arith.constant dense<0.000000e+00> : vector<8xf32>
    %151 = vector.multi_reduction <add>, %150, %cst_95 [1] : vector<8x128xf32> to vector<8xf32>
    %152 = vector.shape_cast %151 : vector<8xf32> to vector<8x1xf32>
    %153 = arith.mulf %147, %147 : vector<8x1xf32>
    %cst_96 = arith.constant 9.600000e+01 : f32
    %154 = vector.broadcast %cst_96 : f32 to vector<8x1xf32>
    %155 = arith.mulf %154, %153 : vector<8x1xf32>
    %156 = arith.subf %152, %155 : vector<8x1xf32>
    %cst_97 = arith.constant 3.125000e-02 : f32
    %157 = vector.broadcast %cst_97 : f32 to vector<8x1xf32>
    %158 = arith.mulf %156, %157 : vector<8x1xf32>
    %cst_98 = arith.constant 9.99999974E-6 : f32
    %159 = vector.broadcast %cst_98 : f32 to vector<8x1xf32>
    %160 = arith.addf %158, %159 : vector<8x1xf32>
    %161 = math.rsqrt %160 : vector<8x1xf32>
    %162 = vector.broadcast %161 : vector<8x1xf32> to vector<8x128xf32>
    %163 = arith.mulf %149, %162 : vector<8x128xf32>
    %164 = vector.broadcast %142 : vector<1x128xf32> to vector<8x128xf32>
    %165 = arith.mulf %163, %164 : vector<8x128xf32>
    %166 = vector.broadcast %143 : vector<1x128xf32> to vector<8x128xf32>
    %167 = arith.addf %165, %166 : vector<8x128xf32>
    %168 = arith.truncf %167 : vector<8x128xf32> to vector<8x128xbf16>
    %c0_99 = arith.constant 0 : index
    %c0_100 = arith.constant 0 : index
    %169 = vector.load %arg13[%c0_99, %c0_100] : memref<128x128xbf16, #tpu.memory_space<vmem>>, vector<128x128xbf16>
    %cst_101 = arith.constant dense<0.000000e+00> : vector<8x128xf32>
    %170 = tpu.matmul %168, %169, %cst_101 {dimension_numbers = #tpu.dot_dimension_numbers<[1], [0], [0], [1], [0, 0, 1, 1], [], []>} : vector<8x128xbf16>, vector<128x128xbf16>, vector<8x128xf32> -> vector<8x128xf32>
    %c0_102 = arith.constant 0 : index
    %c0_103 = arith.constant 0 : index
    %171 = vector.load %arg14[%c0_102, %c0_103] : memref<1x128xf32, #tpu.memory_space<vmem>>, vector<1x128xf32>
    %172 = vector.broadcast %171 : vector<1x128xf32> to vector<8x128xf32>
    %173 = arith.addf %170, %172 : vector<8x128xf32>
    %cst_104 = arith.constant 0.000000e+00 : f32
    %174 = vector.broadcast %cst_104 : f32 to vector<8x128xf32>
    %175 = arith.maximumf %173, %174 : vector<8x128xf32>
    %176 = arith.truncf %175 : vector<8x128xf32> to vector<8x128xbf16>
    %c0_105 = arith.constant 0 : index
    %c0_106 = arith.constant 0 : index
    %177 = vector.load %arg15[%c0_105, %c0_106] : memref<128x128xbf16, #tpu.memory_space<vmem>>, vector<128x128xbf16>
    %cst_107 = arith.constant dense<0.000000e+00> : vector<8x128xf32>
    %178 = tpu.matmul %176, %177, %cst_107 {dimension_numbers = #tpu.dot_dimension_numbers<[1], [0], [0], [1], [0, 0, 1, 1], [], []>} : vector<8x128xbf16>, vector<128x128xbf16>, vector<8x128xf32> -> vector<8x128xf32>
    %c0_108 = arith.constant 0 : index
    %c0_109 = arith.constant 0 : index
    %179 = vector.load %arg16[%c0_108, %c0_109] : memref<1x128xf32, #tpu.memory_space<vmem>>, vector<1x128xf32>
    %180 = vector.broadcast %179 : vector<1x128xf32> to vector<8x128xf32>
    %181 = arith.addf %178, %180 : vector<8x128xf32>
    %182 = arith.addf %167, %181 : vector<8x128xf32>
    %c0_110 = arith.constant 0 : index
    %c0_111 = arith.constant 0 : index
    %183 = vector.load %arg17[%c0_110, %c0_111] : memref<1x128xf32, #tpu.memory_space<vmem>>, vector<1x128xf32>
    %c0_112 = arith.constant 0 : index
    %c0_113 = arith.constant 0 : index
    %184 = vector.load %arg18[%c0_112, %c0_113] : memref<1x128xf32, #tpu.memory_space<vmem>>, vector<1x128xf32>
    %cst_114 = arith.constant dense<0.000000e+00> : vector<8xf32>
    %185 = vector.multi_reduction <add>, %182, %cst_114 [1] : vector<8x128xf32> to vector<8xf32>
    %186 = vector.shape_cast %185 : vector<8xf32> to vector<8x1xf32>
    %cst_115 = arith.constant 3.125000e-02 : f32
    %187 = vector.broadcast %cst_115 : f32 to vector<8x1xf32>
    %188 = arith.mulf %186, %187 : vector<8x1xf32>
    %189 = vector.broadcast %188 : vector<8x1xf32> to vector<8x128xf32>
    %190 = arith.subf %182, %189 : vector<8x128xf32>
    %191 = arith.mulf %190, %190 : vector<8x128xf32>
    %cst_116 = arith.constant dense<0.000000e+00> : vector<8xf32>
    %192 = vector.multi_reduction <add>, %191, %cst_116 [1] : vector<8x128xf32> to vector<8xf32>
    %193 = vector.shape_cast %192 : vector<8xf32> to vector<8x1xf32>
    %194 = arith.mulf %188, %188 : vector<8x1xf32>
    %cst_117 = arith.constant 9.600000e+01 : f32
    %195 = vector.broadcast %cst_117 : f32 to vector<8x1xf32>
    %196 = arith.mulf %195, %194 : vector<8x1xf32>
    %197 = arith.subf %193, %196 : vector<8x1xf32>
    %cst_118 = arith.constant 3.125000e-02 : f32
    %198 = vector.broadcast %cst_118 : f32 to vector<8x1xf32>
    %199 = arith.mulf %197, %198 : vector<8x1xf32>
    %cst_119 = arith.constant 9.99999974E-6 : f32
    %200 = vector.broadcast %cst_119 : f32 to vector<8x1xf32>
    %201 = arith.addf %199, %200 : vector<8x1xf32>
    %202 = math.rsqrt %201 : vector<8x1xf32>
    %203 = vector.broadcast %202 : vector<8x1xf32> to vector<8x128xf32>
    %204 = arith.mulf %190, %203 : vector<8x128xf32>
    %205 = vector.broadcast %183 : vector<1x128xf32> to vector<8x128xf32>
    %206 = arith.mulf %204, %205 : vector<8x128xf32>
    %207 = vector.broadcast %184 : vector<1x128xf32> to vector<8x128xf32>
    %208 = arith.addf %206, %207 : vector<8x128xf32>
    %c0_120 = arith.constant 0 : index
    %c0_121 = arith.constant 0 : index
    %c0_122 = arith.constant 0 : index
    %209 = vector.load %arg19[%c0_120, %c0_121, %c0_122] : memref<1x8x128xf32, #tpu.memory_space<vmem>>, vector<1x8x128xf32>
    %210 = vector.shape_cast %209 : vector<1x8x128xf32> to vector<8x128xf32>
    %211 = vector.shape_cast %208 : vector<8x128xf32> to vector<1x8x128xf32>
    tpu.vector_store %arg19[%c0_120, %c0_121, %c0_122], %211 {strides = array<i32>} : memref<1x8x128xf32, #tpu.memory_space<vmem>>, vector<1x8x128xf32>,
    return
  }
  func.func @transform_0(%arg0: i32, %arg1: i32) -> (i32, i32, i32) {
    %c0_i32 = arith.constant 0 : i32
    %c0_i32_0 = arith.constant 0 : i32
    %c0_i32_1 = arith.constant 0 : i32
    return %arg0, %c0_i32, %c0_i32_0 : i32, i32, i32
  }
  func.func @transform_1(%arg0: i32, %arg1: i32) -> (i32, i32, i32) {
    %c0_i32 = arith.constant 0 : i32
    %c0_i32_0 = arith.constant 0 : i32
    %c0_i32_1 = arith.constant 0 : i32
    %c0_i32_2 = arith.constant 0 : i32
    return %c0_i32, %c0_i32_0, %c0_i32_1 : i32, i32, i32
  }
  func.func @transform_2(%arg0: i32, %arg1: i32) -> (i32, i32, i32) {
    %c0_i32 = arith.constant 0 : i32
    %c0_i32_0 = arith.constant 0 : i32
    %c0_i32_1 = arith.constant 0 : i32
    %c0_i32_2 = arith.constant 0 : i32
    return %c0_i32, %c0_i32_0, %c0_i32_1 : i32, i32, i32
  }
  func.func @transform_3(%arg0: i32, %arg1: i32) -> (i32, i32, i32) {
    %c0_i32 = arith.constant 0 : i32
    %c0_i32_0 = arith.constant 0 : i32
    %c0_i32_1 = arith.constant 0 : i32
    %c0_i32_2 = arith.constant 0 : i32
    return %c0_i32, %c0_i32_0, %c0_i32_1 : i32, i32, i32
  }
  func.func @transform_4(%arg0: i32, %arg1: i32) -> (i32, i32, i32) {
    %c0_i32 = arith.constant 0 : i32
    %c0_i32_0 = arith.constant 0 : i32
    %c0_i32_1 = arith.constant 0 : i32
    %c0_i32_2 = arith.constant 0 : i32
    return %c0_i32, %c0_i32_0, %c0_i32_1 : i32, i32, i32
  }
  func.func @transform_5(%arg0: i32, %arg1: i32) -> (i32, i32, i32) {
    %c0_i32 = arith.constant 0 : i32
    %c0_i32_0 = arith.constant 0 : i32
    %c0_i32_1 = arith.constant 0 : i32
    %c0_i32_2 = arith.constant 0 : i32
    return %c0_i32, %c0_i32_0, %c0_i32_1 : i32, i32, i32
  }
  func.func @transform_6(%arg0: i32, %arg1: i32) -> (i32, i32, i32) {
    %c0_i32 = arith.constant 0 : i32
    %c0_i32_0 = arith.constant 0 : i32
    %c0_i32_1 = arith.constant 0 : i32
    %c0_i32_2 = arith.constant 0 : i32
    return %c0_i32, %c0_i32_0, %c0_i32_1 : i32, i32, i32
  }
  func.func @transform_7(%arg0: i32, %arg1: i32) -> (i32, i32, i32) {
    %c0_i32 = arith.constant 0 : i32
    %c0_i32_0 = arith.constant 0 : i32
    %c0_i32_1 = arith.constant 0 : i32
    %c0_i32_2 = arith.constant 0 : i32
    return %c0_i32, %c0_i32_0, %c0_i32_1 : i32, i32, i32
  }
  func.func @transform_8(%arg0: i32, %arg1: i32) -> (i32, i32) {
    %c0_i32 = arith.constant 0 : i32
    %c0_i32_0 = arith.constant 0 : i32
    %c0_i32_1 = arith.constant 0 : i32
    return %c0_i32, %c0_i32_0 : i32, i32
  }
  func.func @transform_9(%arg0: i32, %arg1: i32) -> (i32, i32) {
    %c0_i32 = arith.constant 0 : i32
    %c0_i32_0 = arith.constant 0 : i32
    %c0_i32_1 = arith.constant 0 : i32
    return %c0_i32, %c0_i32_0 : i32, i32
  }
  func.func @transform_10(%arg0: i32, %arg1: i32) -> (i32, i32) {
    %c0_i32 = arith.constant 0 : i32
    %c0_i32_0 = arith.constant 0 : i32
    %c0_i32_1 = arith.constant 0 : i32
    return %c0_i32, %c0_i32_0 : i32, i32
  }
  func.func @transform_11(%arg0: i32, %arg1: i32) -> (i32, i32) {
    %c0_i32 = arith.constant 0 : i32
    %c0_i32_0 = arith.constant 0 : i32
    %c0_i32_1 = arith.constant 0 : i32
    return %c0_i32, %c0_i32_0 : i32, i32
  }
  func.func @transform_12(%arg0: i32, %arg1: i32) -> (i32, i32) {
    %c0_i32 = arith.constant 0 : i32
    %c0_i32_0 = arith.constant 0 : i32
    %c0_i32_1 = arith.constant 0 : i32
    return %c0_i32, %c0_i32_0 : i32, i32
  }
  func.func @transform_13(%arg0: i32, %arg1: i32) -> (i32, i32) {
    %c0_i32 = arith.constant 0 : i32
    %c0_i32_0 = arith.constant 0 : i32
    %c0_i32_1 = arith.constant 0 : i32
    return %c0_i32, %c0_i32_0 : i32, i32
  }
  func.func @transform_14(%arg0: i32, %arg1: i32) -> (i32, i32) {
    %c0_i32 = arith.constant 0 : i32
    %c0_i32_0 = arith.constant 0 : i32
    %c0_i32_1 = arith.constant 0 : i32
    return %c0_i32, %c0_i32_0 : i32, i32
  }
  func.func @transform_15(%arg0: i32, %arg1: i32) -> (i32, i32) {
    %c0_i32 = arith.constant 0 : i32
    %c0_i32_0 = arith.constant 0 : i32
    %c0_i32_1 = arith.constant 0 : i32
    return %c0_i32, %c0_i32_0 : i32, i32
  }
  func.func @transform_16(%arg0: i32, %arg1: i32) -> (i32, i32) {
    %c0_i32 = arith.constant 0 : i32
    %c0_i32_0 = arith.constant 0 : i32
    %c0_i32_1 = arith.constant 0 : i32
    return %c0_i32, %c0_i32_0 : i32, i32
  }
  func.func @transform_17(%arg0: i32, %arg1: i32) -> (i32, i32, i32) {
    %c0_i32 = arith.constant 0 : i32
    %c0_i32_0 = arith.constant 0 : i32
    return %arg0, %arg1, %c0_i32 : i32, i32, i32
  }
}

</mosaic_0001>

<llo_original>
// kernel: tpu_custom_call.1
$region0: #{tpu_custom_call.1}
  #allocation0 [shape = 'u32[]', space=smem, size = 0x4, offset = 0x4, fixed_abs, tag = 'smem constant byte address 0x4 - core index']
  #allocation1 [shape = 'u32[72,128]{1,0:T(1,128)}', space=vmem, size = 0x9000, scoped, tag = 'internal scratch']
  #allocation2 [shape = 'bf16[4,8,8]{2,1,0:T(8,128)(2,1)}', space=vmem, size = 0x2000, scoped, tag = 'scratch operand']
  #allocation3 [shape = 'bf16[4,8,8]{2,1,0:T(8,128)(2,1)}', space=vmem, size = 0x2000, scoped, tag = 'scratch operand']
  %s0 = inlined_call_operand.vmem [shape: f32[2,8,128], index: 0, kind: input, shape index: {}]
  %s1 = inlined_call_operand.vmem [shape: bf16[4,128,8], index: 1, kind: input, shape index: {}]
  %s2 = inlined_call_operand.vmem [shape: f32[4,1,8], index: 2, kind: input, shape index: {}]
  %s3 = inlined_call_operand.vmem [shape: bf16[4,128,8], index: 3, kind: input, shape index: {}]
  %s4 = inlined_call_operand.vmem [shape: f32[4,1,8], index: 4, kind: input, shape index: {}]
  %s5 = inlined_call_operand.vmem [shape: bf16[4,128,8], index: 5, kind: input, shape index: {}]
  %s6 = inlined_call_operand.vmem [shape: f32[4,1,8], index: 6, kind: input, shape index: {}]
  %s7 = inlined_call_operand.vmem [shape: bf16[4,8,128], index: 7, kind: input, shape index: {}]
  %s8 = inlined_call_operand.vmem [shape: f32[1,128], index: 8, kind: input, shape index: {}]
  %s9 = inlined_call_operand.vmem [shape: f32[1,128], index: 9, kind: input, shape index: {}]
  %s10 = inlined_call_operand.vmem [shape: f32[1,128], index: 10, kind: input, shape index: {}]
  %s11 = inlined_call_operand.vmem [shape: bf16[128,128], index: 11, kind: input, shape index: {}]
  %s12 = inlined_call_operand.vmem [shape: f32[1,128], index: 12, kind: input, shape index: {}]
  %s13 = inlined_call_operand.vmem [shape: bf16[128,128], index: 13, kind: input, shape index: {}]
  %s14 = inlined_call_operand.vmem [shape: f32[1,128], index: 14, kind: input, shape index: {}]
  %s15 = inlined_call_operand.vmem [shape: f32[1,128], index: 15, kind: input, shape index: {}]
  %s16 = inlined_call_operand.vmem [shape: f32[1,128], index: 16, kind: input, shape index: {}]
  %s17 = inlined_call_operand.hbm [shape: f32[2,8,128], index: 17, kind: output, shape index: {}]
  %s18 = sld [smem:[#allocation0]]
  $region105: #{tpu_custom_call.1} parent=0
    _
  %s20 = ssub.s32 1, %s18
  %s21 = scalar_select 0, %s20, %s18
  $region1: #{tpu_custom_call.1} parent=0
    #allocation4 [shape = 'u8[8192]{0}', space=vmem, size = 0x2000, scoped, tag = 'output window, operand 0']
    #allocation5 [shape = 's32[2]{0}', space=sflag, size = 0x8, scoped, tag = 'scoped memory for tpu_custom_call.1']
    %22 = vsyncpa [#allocation5], 0
    %s23 = scalar_lea.sflag [#allocation5], 1
    %24 = vsyncpa %s23, 0
    loop: start=0, step=1, limit=4
    $region2: #{tpu_custom_call.1} parent=1 // loop_pre_header
      _
    $region3: #{tpu_custom_call.1} parent=1 // loop_header
      %s26 = sphi 0, %s30
      %p27 = scmp.ge.s32.totalorder %s26, 4
      %s33 = sphi 0, %s45
      %s34 = sphi 0, %s41
      %s35 = sphi 0, %s33
      %s36 = sphi 0, %s34
      %s37 = sphi 0, %s35
      %s38 = sphi 0, %s36
      %s48 = sphi 0, %s50
      %s51 = sphi 0, %s48
      %s52 = sphi 0, %s51
      %s68 = sphi 0, %s52
      %s72 = sphi 0, %s72
      %s74 = sphi 0, %s72
      %s75 = sphi 0, %s74
      %s89 = sphi 0, %s75
      %s93 = sphi 0, %s93
      %s95 = sphi 0, %s93
      %s96 = sphi 0, %s95
      %s110 = sphi 0, %s96
      %s114 = sphi 0, %s114
      %s116 = sphi 0, %s114
      %s117 = sphi 0, %s116
      %s131 = sphi 0, %s117
      %s135 = sphi 0, %s135
      %s137 = sphi 0, %s135
      %s138 = sphi 0, %s137
      %s152 = sphi 0, %s138
      %s156 = sphi 0, %s156
      %s158 = sphi 0, %s156
      %s159 = sphi 0, %s158
      %s173 = sphi 0, %s159
      %s177 = sphi 0, %s177
      %s179 = sphi 0, %s177
      %s180 = sphi 0, %s179
      %s194 = sphi 0, %s180
      %s198 = sphi 0, %s198
      %s200 = sphi 0, %s198
      %s201 = sphi 0, %s200
      %s215 = sphi 0, %s201
      %s219 = sphi 0, %s219
      %s221 = sphi 0, %s219
      %s222 = sphi 0, %s221
      %s236 = sphi 0, %s222
      %s240 = sphi 0, %s240
      %s242 = sphi 0, %s240
      %s243 = sphi 0, %s242
      %s257 = sphi 0, %s243
      %s261 = sphi 0, %s261
      %s263 = sphi 0, %s261
      %s264 = sphi 0, %s263
      %s278 = sphi 0, %s264
      %s282 = sphi 0, %s282
      %s284 = sphi 0, %s282
      %s285 = sphi 0, %s284
      %s299 = sphi 0, %s285
      %s303 = sphi 0, %s303
      %s305 = sphi 0, %s303
      %s306 = sphi 0, %s305
      %s320 = sphi 0, %s306
      %s324 = sphi 0, %s324
      %s326 = sphi 0, %s324
      %s327 = sphi 0, %s326
      %s341 = sphi 0, %s327
      %s345 = sphi 0, %s345
      %s347 = sphi 0, %s345
      %s348 = sphi 0, %s347
      %s362 = sphi 0, %s348
      %s366 = sphi 0, %s366
      %s368 = sphi 0, %s366
      %s369 = sphi 0, %s368
      %s383 = sphi 0, %s369
      %s387 = sphi 0, %s387
      %s389 = sphi 0, %s387
      %s390 = sphi 0, %s389
      %s404 = sphi 0, %s390
      %s412 = sphi 0, %s414
      %s415 = sphi 0, %s412
      %s416 = sphi 0, %s415
      %s432 = sphi 0, %s416
    $region4: #{tpu_custom_call.1} parent=1 // loop_header_branch
      %29 = sbr.rel (%p27) target = $region8
    $region5: #{tpu_custom_call.1} parent=1 // loop_body
      %s31 = ssub.s32 %s26, 1
      %s32 = ssub.s32 %s26, 2
      %s39 = sadd.s32 1, %s34
      %p40 = scmp.ge.s32.totalorder %s39, 1
      %s41 = scalar_select %p40, 0, %s39
      %s42 = sadd.s32 1, %s33
      %s43 = scalar_select %p40, %s42, %s33
      %p44 = scmp.ge.s32.totalorder %s43, 2
      %s45 = scalar_select %p44, 0, %s43
      %s46 = ssub.s32 %s33, %s45
      %p47 = scmp.eq.s32.totalorder %s46, 0
      %s49 = sadd.s32 %s48, 1
      %s50 = scalar_select %p47, %s48, %s49
      %p53 = pneg %p47
      %p54 = scmp.eq.s32.totalorder %s26, 1
      %p55 = por %p53, %p54
      %p56 = scmp.ne.s32.totalorder %s48, %s51
      %p57 = scmp.eq.s32.totalorder %s26, 0
      %p58 = por %p56, %p57
      %p59 = scmp.ne.s32.totalorder %s48, %s51
      %p60 = scmp.eq.s32.totalorder %s31, 1
      %p61 = por %p59, %p60
      %p62 = scmp.ne.s32.totalorder %s51, %s52
      %p63 = scmp.eq.s32.totalorder %s31, 0
      %p64 = por %p62, %p63
      %p65 = scmp.ne.s32.totalorder %s51, %s52
      %p66 = scmp.eq.s32.totalorder %s32, 1
      %p67 = por %p65, %p66
      %p69 = scmp.ne.s32.totalorder %s52, %s68
      %p70 = scmp.eq.s32.totalorder %s32, 0
      %p71 = por %p69, %p70
      %s73 = sadd.s32 %s72, 1
      %p76 = scmp.eq.s32.totalorder %s26, 1
      %p77 = scmp.ne.s32.totalorder %s72, %s74
      %p78 = scmp.eq.s32.totalorder %s26, 0
      %p79 = por %p77, %p78
      %p80 = scmp.ne.s32.totalorder %s72, %s74
      %p81 = scmp.eq.s32.totalorder %s31, 1
      %p82 = por %p80, %p81
      %p83 = scmp.ne.s32.totalorder %s74, %s75
      %p84 = scmp.eq.s32.totalorder %s31, 0
      %p85 = por %p83, %p84
      %p86 = scmp.ne.s32.totalorder %s74, %s75
      %p87 = scmp.eq.s32.totalorder %s32, 1
      %p88 = por %p86, %p87
      %p90 = scmp.ne.s32.totalorder %s75, %s89
      %p91 = scmp.eq.s32.totalorder %s32, 0
      %p92 = por %p90, %p91
      %s94 = sadd.s32 %s93, 1
      %p97 = scmp.eq.s32.totalorder %s26, 1
      %p98 = scmp.ne.s32.totalorder %s93, %s95
      %p99 = scmp.eq.s32.totalorder %s26, 0
      %p100 = por %p98, %p99
      %p101 = scmp.ne.s32.totalorder %s93, %s95
      %p102 = scmp.eq.s32.totalorder %s31, 1
      %p103 = por %p101, %p102
      %p104 = scmp.ne.s32.totalorder %s95, %s96
      %p105 = scmp.eq.s32.totalorder %s31, 0
      %p106 = por %p104, %p105
      %p107 = scmp.ne.s32.totalorder %s95, %s96
      %p108 = scmp.eq.s32.totalorder %s32, 1
      %p109 = por %p107, %p108
      %p111 = scmp.ne.s32.totalorder %s96, %s110
      %p112 = scmp.eq.s32.totalorder %s32, 0
      %p113 = por %p111, %p112
      %s115 = sadd.s32 %s114, 1
      %p118 = scmp.eq.s32.totalorder %s26, 1
      %p119 = scmp.ne.s32.totalorder %s114, %s116
      %p120 = scmp.eq.s32.totalorder %s26, 0
      %p121 = por %p119, %p120
      %p122 = scmp.ne.s32.totalorder %s114, %s116
      %p123 = scmp.eq.s32.totalorder %s31, 1
      %p124 = por %p122, %p123
      %p125 = scmp.ne.s32.totalorder %s116, %s117
      %p126 = scmp.eq.s32.totalorder %s31, 0
      %p127 = por %p125, %p126
      %p128 = scmp.ne.s32.totalorder %s116, %s117
      %p129 = scmp.eq.s32.totalorder %s32, 1
      %p130 = por %p128, %p129
      %p132 = scmp.ne.s32.totalorder %s117, %s131
      %p133 = scmp.eq.s32.totalorder %s32, 0
      %p134 = por %p132, %p133
      %s136 = sadd.s32 %s135, 1
      %p139 = scmp.eq.s32.totalorder %s26, 1
      %p140 = scmp.ne.s32.totalorder %s135, %s137
      %p141 = scmp.eq.s32.totalorder %s26, 0
      %p142 = por %p140, %p141
      %p143 = scmp.ne.s32.totalorder %s135, %s137
      %p144 = scmp.eq.s32.totalorder %s31, 1
      %p145 = por %p143, %p144
      %p146 = scmp.ne.s32.totalorder %s137, %s138
      %p147 = scmp.eq.s32.totalorder %s31, 0
      %p148 = por %p146, %p147
      %p149 = scmp.ne.s32.totalorder %s137, %s138
      %p150 = scmp.eq.s32.totalorder %s32, 1
      %p151 = por %p149, %p150
      %p153 = scmp.ne.s32.totalorder %s138, %s152
      %p154 = scmp.eq.s32.totalorder %s32, 0
      %p155 = por %p153, %p154
      %s157 = sadd.s32 %s156, 1
      %p160 = scmp.eq.s32.totalorder %s26, 1
      %p161 = scmp.ne.s32.totalorder %s156, %s158
      %p162 = scmp.eq.s32.totalorder %s26, 0
      %p163 = por %p161, %p162
      %p164 = scmp.ne.s32.totalorder %s156, %s158
      %p165 = scmp.eq.s32.totalorder %s31, 1
      %p166 = por %p164, %p165
      %p167 = scmp.ne.s32.totalorder %s158, %s159
      %p168 = scmp.eq.s32.totalorder %s31, 0
      %p169 = por %p167, %p168
      %p170 = scmp.ne.s32.totalorder %s158, %s159
      %p171 = scmp.eq.s32.totalorder %s32, 1
      %p172 = por %p170, %p171
      %p174 = scmp.ne.s32.totalorder %s159, %s173
      %p175 = scmp.eq.s32.totalorder %s32, 0
      %p176 = por %p174, %p175
      %s178 = sadd.s32 %s177, 1
      %p181 = scmp.eq.s32.totalorder %s26, 1
      %p182 = scmp.ne.s32.totalorder %s177, %s179
      %p183 = scmp.eq.s32.totalorder %s26, 0
      %p184 = por %p182, %p183
      %p185 = scmp.ne.s32.totalorder %s177, %s179
      %p186 = scmp.eq.s32.totalorder %s31, 1
      %p187 = por %p185, %p186
      %p188 = scmp.ne.s32.totalorder %s179, %s180
      %p189 = scmp.eq.s32.totalorder %s31, 0
      %p190 = por %p188, %p189
      %p191 = scmp.ne.s32.totalorder %s179, %s180
      %p192 = scmp.eq.s32.totalorder %s32, 1
      %p193 = por %p191, %p192
      %p195 = scmp.ne.s32.totalorder %s180, %s194
      %p196 = scmp.eq.s32.totalorder %s32, 0
      %p197 = por %p195, %p196
      %s199 = sadd.s32 %s198, 1
      %p202 = scmp.eq.s32.totalorder %s26, 1
      %p203 = scmp.ne.s32.totalorder %s198, %s200
      %p204 = scmp.eq.s32.totalorder %s26, 0
      %p205 = por %p203, %p204
      %p206 = scmp.ne.s32.totalorder %s198, %s200
      %p207 = scmp.eq.s32.totalorder %s31, 1
      %p208 = por %p206, %p207
      %p209 = scmp.ne.s32.totalorder %s200, %s201
      %p210 = scmp.eq.s32.totalorder %s31, 0
      %p211 = por %p209, %p210
      %p212 = scmp.ne.s32.totalorder %s200, %s201
      %p213 = scmp.eq.s32.totalorder %s32, 1
      %p214 = por %p212, %p213
      %p216 = scmp.ne.s32.totalorder %s201, %s215
      %p217 = scmp.eq.s32.totalorder %s32, 0
      %p218 = por %p216, %p217
      %s220 = sadd.s32 %s219, 1
      %p223 = scmp.eq.s32.totalorder %s26, 1
      %p224 = scmp.ne.s32.totalorder %s219, %s221
      %p225 = scmp.eq.s32.totalorder %s26, 0
      %p226 = por %p224, %p225
      %p227 = scmp.ne.s32.totalorder %s219, %s221
      %p228 = scmp.eq.s32.totalorder %s31, 1
      %p229 = por %p227, %p228
      %p230 = scmp.ne.s32.totalorder %s221, %s222
      %p231 = scmp.eq.s32.totalorder %s31, 0
      %p232 = por %p230, %p231
      %p233 = scmp.ne.s32.totalorder %s221, %s222
      %p234 = scmp.eq.s32.totalorder %s32, 1
      %p235 = por %p233, %p234
      %p237 = scmp.ne.s32.totalorder %s222, %s236
      %p238 = scmp.eq.s32.totalorder %s32, 0
      %p239 = por %p237, %p238
      %s241 = sadd.s32 %s240, 1
      %p244 = scmp.eq.s32.totalorder %s26, 1
      %p245 = scmp.ne.s32.totalorder %s240, %s242
      %p246 = scmp.eq.s32.totalorder %s26, 0
      %p247 = por %p245, %p246
      %p248 = scmp.ne.s32.totalorder %s240, %s242
      %p249 = scmp.eq.s32.totalorder %s31, 1
      %p250 = por %p248, %p249
      %p251 = scmp.ne.s32.totalorder %s242, %s243
      %p252 = scmp.eq.s32.totalorder %s31, 0
      %p253 = por %p251, %p252
      %p254 = scmp.ne.s32.totalorder %s242, %s243
      %p255 = scmp.eq.s32.totalorder %s32, 1
      %p256 = por %p254, %p255
      %p258 = scmp.ne.s32.totalorder %s243, %s257
      %p259 = scmp.eq.s32.totalorder %s32, 0
      %p260 = por %p258, %p259
      %s262 = sadd.s32 %s261, 1
      %p265 = scmp.eq.s32.totalorder %s26, 1
      %p266 = scmp.ne.s32.totalorder %s261, %s263
      %p267 = scmp.eq.s32.totalorder %s26, 0
      %p268 = por %p266, %p267
      %p269 = scmp.ne.s32.totalorder %s261, %s263
      %p270 = scmp.eq.s32.totalorder %s31, 1
      %p271 = por %p269, %p270
      %p272 = scmp.ne.s32.totalorder %s263, %s264
      %p273 = scmp.eq.s32.totalorder %s31, 0
      %p274 = por %p272, %p273
      %p275 = scmp.ne.s32.totalorder %s263, %s264
      %p276 = scmp.eq.s32.totalorder %s32, 1
      %p277 = por %p275, %p276
      %p279 = scmp.ne.s32.totalorder %s264, %s278
      %p280 = scmp.eq.s32.totalorder %s32, 0
      %p281 = por %p279, %p280
      %s283 = sadd.s32 %s282, 1
      %p286 = scmp.eq.s32.totalorder %s26, 1
      %p287 = scmp.ne.s32.totalorder %s282, %s284
      %p288 = scmp.eq.s32.totalorder %s26, 0
      %p289 = por %p287, %p288
      %p290 = scmp.ne.s32.totalorder %s282, %s284
      %p291 = scmp.eq.s32.totalorder %s31, 1
      %p292 = por %p290, %p291
      %p293 = scmp.ne.s32.totalorder %s284, %s285
      %p294 = scmp.eq.s32.totalorder %s31, 0
      %p295 = por %p293, %p294
      %p296 = scmp.ne.s32.totalorder %s284, %s285
      %p297 = scmp.eq.s32.totalorder %s32, 1
      %p298 = por %p296, %p297
      %p300 = scmp.ne.s32.totalorder %s285, %s299
      %p301 = scmp.eq.s32.totalorder %s32, 0
      %p302 = por %p300, %p301
      %s304 = sadd.s32 %s303, 1
      %p307 = scmp.eq.s32.totalorder %s26, 1
      %p308 = scmp.ne.s32.totalorder %s303, %s305
      %p309 = scmp.eq.s32.totalorder %s26, 0
      %p310 = por %p308, %p309
      %p311 = scmp.ne.s32.totalorder %s303, %s305
      %p312 = scmp.eq.s32.totalorder %s31, 1
      %p313 = por %p311, %p312
      %p314 = scmp.ne.s32.totalorder %s305, %s306
      %p315 = scmp.eq.s32.totalorder %s31, 0
      %p316 = por %p314, %p315
      %p317 = scmp.ne.s32.totalorder %s305, %s306
      %p318 = scmp.eq.s32.totalorder %s32, 1
      %p319 = por %p317, %p318
      %p321 = scmp.ne.s32.totalorder %s306, %s320
      %p322 = scmp.eq.s32.totalorder %s32, 0
      %p323 = por %p321, %p322
      %s325 = sadd.s32 %s324, 1
      %p328 = scmp.eq.s32.totalorder %s26, 1
      %p329 = scmp.ne.s32.totalorder %s324, %s326
      %p330 = scmp.eq.s32.totalorder %s26, 0
      %p331 = por %p329, %p330
      %p332 = scmp.ne.s32.totalorder %s324, %s326
      %p333 = scmp.eq.s32.totalorder %s31, 1
      %p334 = por %p332, %p333
      %p335 = scmp.ne.s32.totalorder %s326, %s327
      %p336 = scmp.eq.s32.totalorder %s31, 0
      %p337 = por %p335, %p336
      %p338 = scmp.ne.s32.totalorder %s326, %s327
      %p339 = scmp.eq.s32.totalorder %s32, 1
      %p340 = por %p338, %p339
      %p342 = scmp.ne.s32.totalorder %s327, %s341
      %p343 = scmp.eq.s32.totalorder %s32, 0
      %p344 = por %p342, %p343
      %s346 = sadd.s32 %s345, 1
      %p349 = scmp.eq.s32.totalorder %s26, 1
      %p350 = scmp.ne.s32.totalorder %s345, %s347
      %p351 = scmp.eq.s32.totalorder %s26, 0
      %p352 = por %p350, %p351
      %p353 = scmp.ne.s32.totalorder %s345, %s347
      %p354 = scmp.eq.s32.totalorder %s31, 1
      %p355 = por %p353, %p354
      %p356 = scmp.ne.s32.totalorder %s347, %s348
      %p357 = scmp.eq.s32.totalorder %s31, 0
      %p358 = por %p356, %p357
      %p359 = scmp.ne.s32.totalorder %s347, %s348
      %p360 = scmp.eq.s32.totalorder %s32, 1
      %p361 = por %p359, %p360
      %p363 = scmp.ne.s32.totalorder %s348, %s362
      %p364 = scmp.eq.s32.totalorder %s32, 0
      %p365 = por %p363, %p364
      %s367 = sadd.s32 %s366, 1
      %p370 = scmp.eq.s32.totalorder %s26, 1
      %p371 = scmp.ne.s32.totalorder %s366, %s368
      %p372 = scmp.eq.s32.totalorder %s26, 0
      %p373 = por %p371, %p372
      %p374 = scmp.ne.s32.totalorder %s366, %s368
      %p375 = scmp.eq.s32.totalorder %s31, 1
      %p376 = por %p374, %p375
      %p377 = scmp.ne.s32.totalorder %s368, %s369
      %p378 = scmp.eq.s32.totalorder %s31, 0
      %p379 = por %p377, %p378
      %p380 = scmp.ne.s32.totalorder %s368, %s369
      %p381 = scmp.eq.s32.totalorder %s32, 1
      %p382 = por %p380, %p381
      %p384 = scmp.ne.s32.totalorder %s369, %s383
      %p385 = scmp.eq.s32.totalorder %s32, 0
      %p386 = por %p384, %p385
      %s388 = sadd.s32 %s387, 1
      %p391 = scmp.eq.s32.totalorder %s26, 1
      %p392 = scmp.ne.s32.totalorder %s387, %s389
      %p393 = scmp.eq.s32.totalorder %s26, 0
      %p394 = por %p392, %p393
      %p395 = scmp.ne.s32.totalorder %s387, %s389
      %p396 = scmp.eq.s32.totalorder %s31, 1
      %p397 = por %p395, %p396
      %p398 = scmp.ne.s32.totalorder %s389, %s390
      %p399 = scmp.eq.s32.totalorder %s31, 0
      %p400 = por %p398, %p399
      %p401 = scmp.ne.s32.totalorder %s389, %s390
      %p402 = scmp.eq.s32.totalorder %s32, 1
      %p403 = por %p401, %p402
      %p405 = scmp.ne.s32.totalorder %s390, %s404
      %p406 = scmp.eq.s32.totalorder %s32, 0
      %p407 = por %p405, %p406
      %s408 = ssub.s32 %s33, %s45
      %s409 = ssub.s32 %s34, %s41
      %s410 = sor.u32 %s408, %s409
      %p411 = scmp.eq.s32.totalorder %s410, 0
      %s413 = sadd.s32 %s412, 1
      %s414 = scalar_select %p411, %s412, %s413
      %p417 = pneg %p411
      %p418 = scmp.eq.s32.totalorder %s26, 1
      %p419 = por %p417, %p418
      %p420 = scmp.ne.s32.totalorder %s412, %s415
      %p421 = scmp.eq.s32.totalorder %s26, 0
      %p422 = por %p420, %p421
      %p423 = scmp.ne.s32.totalorder %s412, %s415
      %p424 = scmp.eq.s32.totalorder %s31, 1
      %p425 = por %p423, %p424
      %p426 = scmp.ne.s32.totalorder %s415, %s416
      %p427 = scmp.eq.s32.totalorder %s31, 0
      %p428 = por %p426, %p427
      %p429 = scmp.ne.s32.totalorder %s415, %s416
      %p430 = scmp.eq.s32.totalorder %s32, 1
      %p431 = por %p429, %p430
      %p433 = scmp.ne.s32.totalorder %s416, %s432
      %p434 = scmp.eq.s32.totalorder %s32, 0
      %p435 = por %p433, %p434
      %p436 = scmp.le.s32.totalorder 1, %s26
      %p437 = scmp.lt.s32.totalorder %s26, 3
      %p438 = pnand %p436, %p437
      %p439 = pneg %p438
      // Predicated region
      $region9: #{tpu_custom_call.1} parent=5 // pred_check
        _
      $region10: #{tpu_custom_call.1} parent=5 // pred_check_branch
        %441 = sbr.rel (%p438) target = $region12
      $region11: #{tpu_custom_call.1} parent=5 // pred_region
        %s442 = ssub.s32 %s26, 1
        // Predicated region
        $region13: #{tpu_custom_call.1} parent=11 // pred_check
          %p443 = pneg %p85
        $region14: #{tpu_custom_call.1} parent=11 // pred_check_branch
          %445 = sbr.rel (%p443) target = $region16
        $region15: #{tpu_custom_call.1} parent=11 // pred_region
          _
        $region16: #{tpu_custom_call.1} parent=11 // pred_fallthru
          _
        // Predicated region
        $region17: #{tpu_custom_call.1} parent=11 // pred_check
          %p446 = pneg %p106
        $region18: #{tpu_custom_call.1} parent=11 // pred_check_branch
          %448 = sbr.rel (%p446) target = $region20
        $region19: #{tpu_custom_call.1} parent=11 // pred_region
          _
        $region20: #{tpu_custom_call.1} parent=11 // pred_fallthru
          _
        // Predicated region
        $region21: #{tpu_custom_call.1} parent=11 // pred_check
          %p449 = pneg %p127
        $region22: #{tpu_custom_call.1} parent=11 // pred_check_branch
          %451 = sbr.rel (%p449) target = $region24
        $region23: #{tpu_custom_call.1} parent=11 // pred_region
          _
        $region24: #{tpu_custom_call.1} parent=11 // pred_fallthru
          _
        // Predicated region
        $region25: #{tpu_custom_call.1} parent=11 // pred_check
          %p452 = pneg %p148
        $region26: #{tpu_custom_call.1} parent=11 // pred_check_branch
          %454 = sbr.rel (%p452) target = $region28
        $region27: #{tpu_custom_call.1} parent=11 // pred_region
          _
        $region28: #{tpu_custom_call.1} parent=11 // pred_fallthru
          _
        // Predicated region
        $region29: #{tpu_custom_call.1} parent=11 // pred_check
          %p455 = pneg %p169
        $region30: #{tpu_custom_call.1} parent=11 // pred_check_branch
          %457 = sbr.rel (%p455) target = $region32
        $region31: #{tpu_custom_call.1} parent=11 // pred_region
          _
        $region32: #{tpu_custom_call.1} parent=11 // pred_fallthru
          _
        // Predicated region
        $region33: #{tpu_custom_call.1} parent=11 // pred_check
          %p458 = pneg %p190
        $region34: #{tpu_custom_call.1} parent=11 // pred_check_branch
          %460 = sbr.rel (%p458) target = $region36
        $region35: #{tpu_custom_call.1} parent=11 // pred_region
          _
        $region36: #{tpu_custom_call.1} parent=11 // pred_fallthru
          _
        // Predicated region
        $region37: #{tpu_custom_call.1} parent=11 // pred_check
          %p461 = pneg %p211
        $region38: #{tpu_custom_call.1} parent=11 // pred_check_branch
          %463 = sbr.rel (%p461) target = $region40
        $region39: #{tpu_custom_call.1} parent=11 // pred_region
          _
        $region40: #{tpu_custom_call.1} parent=11 // pred_fallthru
          _
        // Predicated region
        $region41: #{tpu_custom_call.1} parent=11 // pred_check
          %p464 = pneg %p232
        $region42: #{tpu_custom_call.1} parent=11 // pred_check_branch
          %466 = sbr.rel (%p464) target = $region44
        $region43: #{tpu_custom_call.1} parent=11 // pred_region
          _
        $region44: #{tpu_custom_call.1} parent=11 // pred_fallthru
          _
        // Predicated region
        $region45: #{tpu_custom_call.1} parent=11 // pred_check
          %p467 = pneg %p253
        $region46: #{tpu_custom_call.1} parent=11 // pred_check_branch
          %469 = sbr.rel (%p467) target = $region48
        $region47: #{tpu_custom_call.1} parent=11 // pred_region
          _
        $region48: #{tpu_custom_call.1} parent=11 // pred_fallthru
          _
        // Predicated region
        $region49: #{tpu_custom_call.1} parent=11 // pred_check
          %p470 = pneg %p274
        $region50: #{tpu_custom_call.1} parent=11 // pred_check_branch
          %472 = sbr.rel (%p470) target = $region52
        $region51: #{tpu_custom_call.1} parent=11 // pred_region
          _
        $region52: #{tpu_custom_call.1} parent=11 // pred_fallthru
          _
        // Predicated region
        $region53: #{tpu_custom_call.1} parent=11 // pred_check
          %p473 = pneg %p295
        $region54: #{tpu_custom_call.1} parent=11 // pred_check_branch
          %475 = sbr.rel (%p473) target = $region56
        $region55: #{tpu_custom_call.1} parent=11 // pred_region
          _
        $region56: #{tpu_custom_call.1} parent=11 // pred_fallthru
          _
        // Predicated region
        $region57: #{tpu_custom_call.1} parent=11 // pred_check
          %p476 = pneg %p316
        $region58: #{tpu_custom_call.1} parent=11 // pred_check_branch
          %478 = sbr.rel (%p476) target = $region60
        $region59: #{tpu_custom_call.1} parent=11 // pred_region
          _
        $region60: #{tpu_custom_call.1} parent=11 // pred_fallthru
          _
        // Predicated region
        $region61: #{tpu_custom_call.1} parent=11 // pred_check
          %p479 = pneg %p337
        $region62: #{tpu_custom_call.1} parent=11 // pred_check_branch
          %481 = sbr.rel (%p479) target = $region64
        $region63: #{tpu_custom_call.1} parent=11 // pred_region
          _
        $region64: #{tpu_custom_call.1} parent=11 // pred_fallthru
          _
        // Predicated region
        $region65: #{tpu_custom_call.1} parent=11 // pred_check
          %p482 = pneg %p358
        $region66: #{tpu_custom_call.1} parent=11 // pred_check_branch
          %484 = sbr.rel (%p482) target = $region68
        $region67: #{tpu_custom_call.1} parent=11 // pred_region
          _
        $region68: #{tpu_custom_call.1} parent=11 // pred_fallthru
          _
        // Predicated region
        $region69: #{tpu_custom_call.1} parent=11 // pred_check
          %p485 = pneg %p379
        $region70: #{tpu_custom_call.1} parent=11 // pred_check_branch
          %487 = sbr.rel (%p485) target = $region72
        $region71: #{tpu_custom_call.1} parent=11 // pred_region
          _
        $region72: #{tpu_custom_call.1} parent=11 // pred_fallthru
          _
        // Predicated region
        $region73: #{tpu_custom_call.1} parent=11 // pred_check
          %p488 = pneg %p400
        $region74: #{tpu_custom_call.1} parent=11 // pred_check_branch
          %490 = sbr.rel (%p488) target = $region76
        $region75: #{tpu_custom_call.1} parent=11 // pred_region
          _
        $region76: #{tpu_custom_call.1} parent=11 // pred_fallthru
          _
      $region12: #{tpu_custom_call.1} parent=5 // pred_fallthru
        _
      %p491 = scmp.lt.s32.totalorder %s26, 2
      // Predicated region
      $region77: #{tpu_custom_call.1} parent=5 // pred_check
        %p492 = pneg %p491
      $region78: #{tpu_custom_call.1} parent=5 // pred_check_branch
        %494 = sbr.rel (%p492) target = $region80
      $region79: #{tpu_custom_call.1} parent=5 // pred_region
        // Predicated region
        $region81: #{tpu_custom_call.1} parent=79 // pred_check
          %p495 = pneg %p58
        $region82: #{tpu_custom_call.1} parent=79 // pred_check_branch
          %497 = sbr.rel (%p495) target = $region84
        $region83: #{tpu_custom_call.1} parent=79 // pred_region
          %p498 = scmp.lt.s32.totalorder %s33, 1
          %s499 = scalar_select %p498, %s33, 1
          %s500 = smul.addr %s499, 8
          %s501 = scalar_lea.vmem %s0, %s500
        $region84: #{tpu_custom_call.1} parent=79 // pred_fallthru
          _
      $region80: #{tpu_custom_call.1} parent=5 // pred_fallthru
        _
      %p502 = scmp.le.s32.totalorder 1, %s26
      %p503 = scmp.lt.s32.totalorder %s26, 3
      %p504 = pnand %p502, %p503
      %p505 = pneg %p504
      // Predicated region
      $region85: #{tpu_custom_call.1} parent=5 // pred_check
        _
      $region86: #{tpu_custom_call.1} parent=5 // pred_check_branch
        %507 = sbr.rel (%p504) target = $region88
      $region87: #{tpu_custom_call.1} parent=5 // pred_region
        %s508 = ssub.s32 %s26, 1
        %p509 = scmp.lt.s32.totalorder %s35, 1
        %s510 = scalar_select %p509, %s35, 1
        %s511 = smul.addr %s510, 8
        %s512 = scalar_lea.vmem %s0, %s511
        %p513 = pneg %p64
        %p514 = pneg %p61
        %p515 = pneg %p85
        %p516 = pneg %p82
        %p517 = pneg %p106
        %p518 = pneg %p103
        %p519 = pneg %p127
        %p520 = pneg %p124
        %p521 = pneg %p148
        %p522 = pneg %p145
        %p523 = pneg %p169
        %p524 = pneg %p166
        %p525 = pneg %p190
        %p526 = pneg %p187
        %p527 = pneg %p211
        %p528 = pneg %p208
        %p529 = pneg %p232
        %p530 = pneg %p229
        %p531 = pneg %p253
        %p532 = pneg %p250
        %p533 = pneg %p274
        %p534 = pneg %p271
        %p535 = pneg %p295
        %p536 = pneg %p292
        %p537 = pneg %p316
        %p538 = pneg %p313
        %p539 = pneg %p337
        %p540 = pneg %p334
        %p541 = pneg %p358
        %p542 = pneg %p355
        %p543 = pneg %p379
        %p544 = pneg %p376
        %p545 = pneg %p400
        %p546 = pneg %p397
        %p547 = pneg %p428
        %p548 = pneg %p425
        %s549 = sand.u32 %s415, 1
        %s550 = scalar_lea.sflag [#allocation5], %s549
        %s551 = sand.u32 %s415, 1
        %s552 = smul.addr %s551, 8
        %s553 = scalar_lea.vmem [#allocation4], %s552
        %p554 = scmp.lt.s32.totalorder %s35, 1
        %s555 = scalar_select %p554, %s35, 1
        %s556 = smul.addr %s555, 8
        %s557 = scalar_lea.vmem %s0, %s556
        %p559 = scmp.eq.s32.totalorder %s36, 0
        // Predicated region
        $region89: #{tpu_custom_call.1} parent=87 // pred_check
          %p560 = pneg %p559
        $region90: #{tpu_custom_call.1} parent=87 // pred_check_branch
          %562 = sbr.rel (%p560) target = $region92
        $region91: #{tpu_custom_call.1} parent=87 // pred_region
          %v563 = vld [vmem:[%s557] sm:$0xff]
          %v564 = vpack.c.bf16 %v563, %v563
          %v565 = vld [vmem:[%s3] sm:$0xf]
          %v566 = vld [vmem:[%s3 + $0x4] sm:$0xf]
          %v567 = vld [vmem:[%s3 + $0x8] sm:$0xf]
          %v568 = vld [vmem:[%s3 + $0xc] sm:$0xf]
          %v569 = vld [vmem:[%s3 + $0x10] sm:$0xf]
          %v570 = vld [vmem:[%s3 + $0x14] sm:$0xf]
          %v571 = vld [vmem:[%s3 + $0x18] sm:$0xf]
          %v572 = vld [vmem:[%s3 + $0x1c] sm:$0xf]
          %v573 = vld [vmem:[%s3 + $0x20] sm:$0xf]
          %v574 = vld [vmem:[%s3 + $0x24] sm:$0xf]
          %v575 = vld [vmem:[%s3 + $0x28] sm:$0xf]
          %v576 = vld [vmem:[%s3 + $0x2c] sm:$0xf]
          %v577 = vld [vmem:[%s3 + $0x30] sm:$0xf]
          %v578 = vld [vmem:[%s3 + $0x34] sm:$0xf]
          %v579 = vld [vmem:[%s3 + $0x38] sm:$0xf]
          %v580 = vld [vmem:[%s3 + $0x3c] sm:$0xf]
          %v581 = vld [vmem:[%s4] sm:$0x1]
          %v583 = vperm.slane %v581, 0
          %v601 = vunpack.c.l.b16 %v565
          %v602 = vunpack.c.l.b16 %v566
          %v603 = vunpack.c.l.b16 %v567
          %v604 = vunpack.c.l.b16 %v568
          %v605 = vunpack.c.l.b16 %v569
          %v606 = vunpack.c.l.b16 %v570
          %v607 = vunpack.c.l.b16 %v571
          %v608 = vunpack.c.l.b16 %v572
          %v609 = vunpack.c.l.b16 %v573
          %v610 = vunpack.c.l.b16 %v574
          %v611 = vunpack.c.l.b16 %v575
          %v612 = vunpack.c.l.b16 %v576
          %v613 = vunpack.c.l.b16 %v577
          %v614 = vunpack.c.l.b16 %v578
          %v615 = vunpack.c.l.b16 %v579
          %v616 = vunpack.c.l.b16 %v580
          %v617 = vpack.c.b16 %v602, %v601
          %v618 = vpack.c.b16 %v604, %v603
          %v619 = vpack.c.b16 %v606, %v605
          %v620 = vpack.c.b16 %v608, %v607
          %v621 = vpack.c.b16 %v610, %v609
          %v622 = vpack.c.b16 %v612, %v611
          %v623 = vpack.c.b16 %v614, %v613
          %v624 = vpack.c.b16 %v616, %v615
          %633 = vmatpush.bf16.msra.mxu0 %v624
          %634 = vmatpush.bf16.msra.mxu0 %v623
          %635 = vmatpush.bf16.msra.mxu0 %v622
          %636 = vmatpush.bf16.msra.mxu0 %v621
          %637 = vmatpush.bf16.msra.mxu0 %v620
          %638 = vmatpush.bf16.msra.mxu0 %v619
          %639 = vmatpush.bf16.msra.mxu0 %v618
          %640 = vmatpush.bf16.msra.mxu0 %v617
          %641 = vmatmul.bf16.gmra.mxu0 %v564
          %v642 = vpop.f32.mrf.mxu0
          %v643 = vadd.f32 %v583, %v642
          %v644 = vpop.f32.mrf.mxu0
          %645 = vdwg.mxu0
          %v646 = vld [vmem:[%s5] sm:$0xf]
          %v647 = vld [vmem:[%s5 + $0x4] sm:$0xf]
          %v648 = vld [vmem:[%s5 + $0x8] sm:$0xf]
          %v649 = vld [vmem:[%s5 + $0xc] sm:$0xf]
          %v650 = vld [vmem:[%s5 + $0x10] sm:$0xf]
          %v651 = vld [vmem:[%s5 + $0x14] sm:$0xf]
          %v652 = vld [vmem:[%s5 + $0x18] sm:$0xf]
          %v653 = vld [vmem:[%s5 + $0x1c] sm:$0xf]
          %v654 = vld [vmem:[%s5 + $0x20] sm:$0xf]
          %v655 = vld [vmem:[%s5 + $0x24] sm:$0xf]
          %v656 = vld [vmem:[%s5 + $0x28] sm:$0xf]
          %v657 = vld [vmem:[%s5 + $0x2c] sm:$0xf]
          %v658 = vld [vmem:[%s5 + $0x30] sm:$0xf]
          %v659 = vld [vmem:[%s5 + $0x34] sm:$0xf]
          %v660 = vld [vmem:[%s5 + $0x38] sm:$0xf]
          %v661 = vld [vmem:[%s5 + $0x3c] sm:$0xf]
          %v662 = vld [vmem:[%s6] sm:$0x1]
          %v664 = vperm.slane %v662, 0
          %v682 = vunpack.c.l.b16 %v646
          %v683 = vunpack.c.l.b16 %v647
          %v684 = vunpack.c.l.b16 %v648
          %v685 = vunpack.c.l.b16 %v649
          %v686 = vunpack.c.l.b16 %v650
          %v687 = vunpack.c.l.b16 %v651
          %v688 = vunpack.c.l.b16 %v652
          %v689 = vunpack.c.l.b16 %v653
          %v690 = vunpack.c.l.b16 %v654
          %v691 = vunpack.c.l.b16 %v655
          %v692 = vunpack.c.l.b16 %v656
          %v693 = vunpack.c.l.b16 %v657
          %v694 = vunpack.c.l.b16 %v658
          %v695 = vunpack.c.l.b16 %v659
          %v696 = vunpack.c.l.b16 %v660
          %v697 = vunpack.c.l.b16 %v661
          %v698 = vpack.c.b16 %v683, %v682
          %v699 = vpack.c.b16 %v685, %v684
          %v700 = vpack.c.b16 %v687, %v686
          %v701 = vpack.c.b16 %v689, %v688
          %v702 = vpack.c.b16 %v691, %v690
          %v703 = vpack.c.b16 %v693, %v692
          %v704 = vpack.c.b16 %v695, %v694
          %v705 = vpack.c.b16 %v697, %v696
          %714 = vmatpush.bf16.msra.mxu0 %v705
          %715 = vmatpush.bf16.msra.mxu0 %v704
          %716 = vmatpush.bf16.msra.mxu0 %v703
          %717 = vmatpush.bf16.msra.mxu0 %v702
          %718 = vmatpush.bf16.msra.mxu0 %v701
          %719 = vmatpush.bf16.msra.mxu0 %v700
          %720 = vmatpush.bf16.msra.mxu0 %v699
          %721 = vmatpush.bf16.msra.mxu0 %v698
          %722 = vmatmul.bf16.gmra.mxu0 %v564
          %v723 = vpop.f32.mrf.mxu0
          %v724 = vadd.f32 %v664, %v723
          %v725 = vpop.f32.mrf.mxu0
          %726 = vdwg.mxu0
          %v727 = vpack.c.bf16 %v643, %v643
          %vm728 = vcmask 60416
          %729 = vst.msk [vmem:[#allocation2] sm:$0xf] %vm728, %v727
          %v730 = vpack.c.bf16 %v724, %v724
          %731 = vst.msk [vmem:[#allocation3] sm:$0xf] %vm728, %v730
          %s732 = scalar_lea.vmem %s3, 64
          %v733 = vld [vmem:[%s732] sm:$0xf]
          %v734 = vld [vmem:[%s732 + $0x4] sm:$0xf]
          %v735 = vld [vmem:[%s732 + $0x8] sm:$0xf]
          %v736 = vld [vmem:[%s732 + $0xc] sm:$0xf]
          %v737 = vld [vmem:[%s732 + $0x10] sm:$0xf]
          %v738 = vld [vmem:[%s732 + $0x14] sm:$0xf]
          %v739 = vld [vmem:[%s732 + $0x18] sm:$0xf]
          %v740 = vld [vmem:[%s732 + $0x1c] sm:$0xf]
          %v741 = vld [vmem:[%s732 + $0x20] sm:$0xf]
          %v742 = vld [vmem:[%s732 + $0x24] sm:$0xf]
          %v743 = vld [vmem:[%s732 + $0x28] sm:$0xf]
          %v744 = vld [vmem:[%s732 + $0x2c] sm:$0xf]
          %v745 = vld [vmem:[%s732 + $0x30] sm:$0xf]
          %v746 = vld [vmem:[%s732 + $0x34] sm:$0xf]
          %v747 = vld [vmem:[%s732 + $0x38] sm:$0xf]
          %v748 = vld [vmem:[%s732 + $0x3c] sm:$0xf]
          %s749 = scalar_lea.vmem %s4, 1
          %v750 = vld [vmem:[%s749] sm:$0x1]
          %v752 = vperm.slane %v750, 0
          %v770 = vunpack.c.l.b16 %v733
          %v771 = vunpack.c.l.b16 %v734
          %v772 = vunpack.c.l.b16 %v735
          %v773 = vunpack.c.l.b16 %v736
          %v774 = vunpack.c.l.b16 %v737
          %v775 = vunpack.c.l.b16 %v738
          %v776 = vunpack.c.l.b16 %v739
          %v777 = vunpack.c.l.b16 %v740
          %v778 = vunpack.c.l.b16 %v741
          %v779 = vunpack.c.l.b16 %v742
          %v780 = vunpack.c.l.b16 %v743
          %v781 = vunpack.c.l.b16 %v744
          %v782 = vunpack.c.l.b16 %v745
          %v783 = vunpack.c.l.b16 %v746
          %v784 = vunpack.c.l.b16 %v747
          %v785 = vunpack.c.l.b16 %v748
          %v786 = vpack.c.b16 %v771, %v770
          %v787 = vpack.c.b16 %v773, %v772
          %v788 = vpack.c.b16 %v775, %v774
          %v789 = vpack.c.b16 %v777, %v776
          %v790 = vpack.c.b16 %v779, %v778
          %v791 = vpack.c.b16 %v781, %v780
          %v792 = vpack.c.b16 %v783, %v782
          %v793 = vpack.c.b16 %v785, %v784
          %802 = vmatpush.bf16.msra.mxu0 %v793
          %803 = vmatpush.bf16.msra.mxu0 %v792
          %804 = vmatpush.bf16.msra.mxu0 %v791
          %805 = vmatpush.bf16.msra.mxu0 %v790
          %806 = vmatpush.bf16.msra.mxu0 %v789
          %807 = vmatpush.bf16.msra.mxu0 %v788
          %808 = vmatpush.bf16.msra.mxu0 %v787
          %809 = vmatpush.bf16.msra.mxu0 %v786
          %810 = vmatmul.bf16.gmra.mxu0 %v564
          %v811 = vpop.f32.mrf.mxu0
          %v812 = vadd.f32 %v752, %v811
          %v813 = vpop.f32.mrf.mxu0
          %814 = vdwg.mxu0
          %s815 = scalar_lea.vmem %s5, 64
          %v816 = vld [vmem:[%s815] sm:$0xf]
          %v817 = vld [vmem:[%s815 + $0x4] sm:$0xf]
          %v818 = vld [vmem:[%s815 + $0x8] sm:$0xf]
          %v819 = vld [vmem:[%s815 + $0xc] sm:$0xf]
          %v820 = vld [vmem:[%s815 + $0x10] sm:$0xf]
          %v821 = vld [vmem:[%s815 + $0x14] sm:$0xf]
          %v822 = vld [vmem:[%s815 + $0x18] sm:$0xf]
          %v823 = vld [vmem:[%s815 + $0x1c] sm:$0xf]
          %v824 = vld [vmem:[%s815 + $0x20] sm:$0xf]
          %v825 = vld [vmem:[%s815 + $0x24] sm:$0xf]
          %v826 = vld [vmem:[%s815 + $0x28] sm:$0xf]
          %v827 = vld [vmem:[%s815 + $0x2c] sm:$0xf]
          %v828 = vld [vmem:[%s815 + $0x30] sm:$0xf]
          %v829 = vld [vmem:[%s815 + $0x34] sm:$0xf]
          %v830 = vld [vmem:[%s815 + $0x38] sm:$0xf]
          %v831 = vld [vmem:[%s815 + $0x3c] sm:$0xf]
          %s832 = scalar_lea.vmem %s6, 1
          %v833 = vld [vmem:[%s832] sm:$0x1]
          %v835 = vperm.slane %v833, 0
          %v853 = vunpack.c.l.b16 %v816
          %v854 = vunpack.c.l.b16 %v817
          %v855 = vunpack.c.l.b16 %v818
          %v856 = vunpack.c.l.b16 %v819
          %v857 = vunpack.c.l.b16 %v820
          %v858 = vunpack.c.l.b16 %v821
          %v859 = vunpack.c.l.b16 %v822
          %v860 = vunpack.c.l.b16 %v823
          %v861 = vunpack.c.l.b16 %v824
          %v862 = vunpack.c.l.b16 %v825
          %v863 = vunpack.c.l.b16 %v826
          %v864 = vunpack.c.l.b16 %v827
          %v865 = vunpack.c.l.b16 %v828
          %v866 = vunpack.c.l.b16 %v829
          %v867 = vunpack.c.l.b16 %v830
          %v868 = vunpack.c.l.b16 %v831
          %v869 = vpack.c.b16 %v854, %v853
          %v870 = vpack.c.b16 %v856, %v855
          %v871 = vpack.c.b16 %v858, %v857
          %v872 = vpack.c.b16 %v860, %v859
          %v873 = vpack.c.b16 %v862, %v861
          %v874 = vpack.c.b16 %v864, %v863
          %v875 = vpack.c.b16 %v866, %v865
          %v876 = vpack.c.b16 %v868, %v867
          %885 = vmatpush.bf16.msra.mxu0 %v876
          %886 = vmatpush.bf16.msra.mxu0 %v875
          %887 = vmatpush.bf16.msra.mxu0 %v874
          %888 = vmatpush.bf16.msra.mxu0 %v873
          %889 = vmatpush.bf16.msra.mxu0 %v872
          %890 = vmatpush.bf16.msra.mxu0 %v871
          %891 = vmatpush.bf16.msra.mxu0 %v870
          %892 = vmatpush.bf16.msra.mxu0 %v869
          %893 = vmatmul.bf16.gmra.mxu0 %v564
          %v894 = vpop.f32.mrf.mxu0
          %v895 = vadd.f32 %v835, %v894
          %v896 = vpop.f32.mrf.mxu0
          %897 = vdwg.mxu0
          %v898 = vpack.c.bf16 %v812, %v812
          %s899 = scalar_lea.vmem [#allocation2], 4
          %900 = vst.msk [vmem:[%s899] sm:$0xf] %vm728, %v898
          %v901 = vpack.c.bf16 %v895, %v895
          %s902 = scalar_lea.vmem [#allocation3], 4
          %903 = vst.msk [vmem:[%s902] sm:$0xf] %vm728, %v901
          %s904 = scalar_lea.vmem %s3, 128
          %v905 = vld [vmem:[%s904] sm:$0xf]
          %v906 = vld [vmem:[%s904 + $0x4] sm:$0xf]
          %v907 = vld [vmem:[%s904 + $0x8] sm:$0xf]
          %v908 = vld [vmem:[%s904 + $0xc] sm:$0xf]
          %v909 = vld [vmem:[%s904 + $0x10] sm:$0xf]
          %v910 = vld [vmem:[%s904 + $0x14] sm:$0xf]
          %v911 = vld [vmem:[%s904 + $0x18] sm:$0xf]
          %v912 = vld [vmem:[%s904 + $0x1c] sm:$0xf]
          %v913 = vld [vmem:[%s904 + $0x20] sm:$0xf]
          %v914 = vld [vmem:[%s904 + $0x24] sm:$0xf]
          %v915 = vld [vmem:[%s904 + $0x28] sm:$0xf]
          %v916 = vld [vmem:[%s904 + $0x2c] sm:$0xf]
          %v917 = vld [vmem:[%s904 + $0x30] sm:$0xf]
          %v918 = vld [vmem:[%s904 + $0x34] sm:$0xf]
          %v919 = vld [vmem:[%s904 + $0x38] sm:$0xf]
          %v920 = vld [vmem:[%s904 + $0x3c] sm:$0xf]
          %s921 = scalar_lea.vmem %s4, 2
          %v922 = vld [vmem:[%s921] sm:$0x1]
          %v924 = vperm.slane %v922, 0
          %v942 = vunpack.c.l.b16 %v905
          %v943 = vunpack.c.l.b16 %v906
          %v944 = vunpack.c.l.b16 %v907
          %v945 = vunpack.c.l.b16 %v908
          %v946 = vunpack.c.l.b16 %v909
          %v947 = vunpack.c.l.b16 %v910
          %v948 = vunpack.c.l.b16 %v911
          %v949 = vunpack.c.l.b16 %v912
          %v950 = vunpack.c.l.b16 %v913
          %v951 = vunpack.c.l.b16 %v914
          %v952 = vunpack.c.l.b16 %v915
          %v953 = vunpack.c.l.b16 %v916
          %v954 = vunpack.c.l.b16 %v917
          %v955 = vunpack.c.l.b16 %v918
          %v956 = vunpack.c.l.b16 %v919
          %v957 = vunpack.c.l.b16 %v920
          %v958 = vpack.c.b16 %v943, %v942
          %v959 = vpack.c.b16 %v945, %v944
          %v960 = vpack.c.b16 %v947, %v946
          %v961 = vpack.c.b16 %v949, %v948
          %v962 = vpack.c.b16 %v951, %v950
          %v963 = vpack.c.b16 %v953, %v952
          %v964 = vpack.c.b16 %v955, %v954
          %v965 = vpack.c.b16 %v957, %v956
          %974 = vmatpush.bf16.msra.mxu0 %v965
          %975 = vmatpush.bf16.msra.mxu0 %v964
          %976 = vmatpush.bf16.msra.mxu0 %v963
          %977 = vmatpush.bf16.msra.mxu0 %v962
          %978 = vmatpush.bf16.msra.mxu0 %v961
          %979 = vmatpush.bf16.msra.mxu0 %v960
          %980 = vmatpush.bf16.msra.mxu0 %v959
          %981 = vmatpush.bf16.msra.mxu0 %v958
          %982 = vmatmul.bf16.gmra.mxu0 %v564
          %v983 = vpop.f32.mrf.mxu0
          %v984 = vadd.f32 %v924, %v983
          %v985 = vpop.f32.mrf.mxu0
          %986 = vdwg.mxu0
          %s987 = scalar_lea.vmem %s5, 128
          %v988 = vld [vmem:[%s987] sm:$0xf]
          %v989 = vld [vmem:[%s987 + $0x4] sm:$0xf]
          %v990 = vld [vmem:[%s987 + $0x8] sm:$0xf]
          %v991 = vld [vmem:[%s987 + $0xc] sm:$0xf]
          %v992 = vld [vmem:[%s987 + $0x10] sm:$0xf]
          %v993 = vld [vmem:[%s987 + $0x14] sm:$0xf]
          %v994 = vld [vmem:[%s987 + $0x18] sm:$0xf]
          %v995 = vld [vmem:[%s987 + $0x1c] sm:$0xf]
          %v996 = vld [vmem:[%s987 + $0x20] sm:$0xf]
          %v997 = vld [vmem:[%s987 + $0x24] sm:$0xf]
          %v998 = vld [vmem:[%s987 + $0x28] sm:$0xf]
          %v999 = vld [vmem:[%s987 + $0x2c] sm:$0xf]
          %v1000 = vld [vmem:[%s987 + $0x30] sm:$0xf]
          %v1001 = vld [vmem:[%s987 + $0x34] sm:$0xf]
          %v1002 = vld [vmem:[%s987 + $0x38] sm:$0xf]
          %v1003 = vld [vmem:[%s987 + $0x3c] sm:$0xf]
          %s1004 = scalar_lea.vmem %s6, 2
          %v1005 = vld [vmem:[%s1004] sm:$0x1]
          %v1007 = vperm.slane %v1005, 0
          %v1025 = vunpack.c.l.b16 %v988
          %v1026 = vunpack.c.l.b16 %v989
          %v1027 = vunpack.c.l.b16 %v990
          %v1028 = vunpack.c.l.b16 %v991
          %v1029 = vunpack.c.l.b16 %v992
          %v1030 = vunpack.c.l.b16 %v993
          %v1031 = vunpack.c.l.b16 %v994
          %v1032 = vunpack.c.l.b16 %v995
          %v1033 = vunpack.c.l.b16 %v996
          %v1034 = vunpack.c.l.b16 %v997
          %v1035 = vunpack.c.l.b16 %v998
          %v1036 = vunpack.c.l.b16 %v999
          %v1037 = vunpack.c.l.b16 %v1000
          %v1038 = vunpack.c.l.b16 %v1001
          %v1039 = vunpack.c.l.b16 %v1002
          %v1040 = vunpack.c.l.b16 %v1003
          %v1041 = vpack.c.b16 %v1026, %v1025
          %v1042 = vpack.c.b16 %v1028, %v1027
          %v1043 = vpack.c.b16 %v1030, %v1029
          %v1044 = vpack.c.b16 %v1032, %v1031
          %v1045 = vpack.c.b16 %v1034, %v1033
          %v1046 = vpack.c.b16 %v1036, %v1035
          %v1047 = vpack.c.b16 %v1038, %v1037
          %v1048 = vpack.c.b16 %v1040, %v1039
          %1057 = vmatpush.bf16.msra.mxu0 %v1048
          %1058 = vmatpush.bf16.msra.mxu0 %v1047
          %1059 = vmatpush.bf16.msra.mxu0 %v1046
          %1060 = vmatpush.bf16.msra.mxu0 %v1045
          %1061 = vmatpush.bf16.msra.mxu0 %v1044
          %1062 = vmatpush.bf16.msra.mxu0 %v1043
          %1063 = vmatpush.bf16.msra.mxu0 %v1042
          %1064 = vmatpush.bf16.msra.mxu0 %v1041
          %1065 = vmatmul.bf16.gmra.mxu0 %v564
          %v1066 = vpop.f32.mrf.mxu0
          %v1067 = vadd.f32 %v1007, %v1066
          %v1068 = vpop.f32.mrf.mxu0
          %1069 = vdwg.mxu0
          %v1070 = vpack.c.bf16 %v984, %v984
          %s1071 = scalar_lea.vmem [#allocation2], 8
          %1072 = vst.msk [vmem:[%s1071] sm:$0xf] %vm728, %v1070
          %v1073 = vpack.c.bf16 %v1067, %v1067
          %s1074 = scalar_lea.vmem [#allocation3], 8
          %1075 = vst.msk [vmem:[%s1074] sm:$0xf] %vm728, %v1073
          %s1076 = scalar_lea.vmem %s3, 192
          %v1077 = vld [vmem:[%s1076] sm:$0xf]
          %v1078 = vld [vmem:[%s1076 + $0x4] sm:$0xf]
          %v1079 = vld [vmem:[%s1076 + $0x8] sm:$0xf]
          %v1080 = vld [vmem:[%s1076 + $0xc] sm:$0xf]
          %v1081 = vld [vmem:[%s1076 + $0x10] sm:$0xf]
          %v1082 = vld [vmem:[%s1076 + $0x14] sm:$0xf]
          %v1083 = vld [vmem:[%s1076 + $0x18] sm:$0xf]
          %v1084 = vld [vmem:[%s1076 + $0x1c] sm:$0xf]
          %v1085 = vld [vmem:[%s1076 + $0x20] sm:$0xf]
          %v1086 = vld [vmem:[%s1076 + $0x24] sm:$0xf]
          %v1087 = vld [vmem:[%s1076 + $0x28] sm:$0xf]
          %v1088 = vld [vmem:[%s1076 + $0x2c] sm:$0xf]
          %v1089 = vld [vmem:[%s1076 + $0x30] sm:$0xf]
          %v1090 = vld [vmem:[%s1076 + $0x34] sm:$0xf]
          %v1091 = vld [vmem:[%s1076 + $0x38] sm:$0xf]
          %v1092 = vld [vmem:[%s1076 + $0x3c] sm:$0xf]
          %s1093 = scalar_lea.vmem %s4, 3
          %v1094 = vld [vmem:[%s1093] sm:$0x1]
          %v1096 = vperm.slane %v1094, 0
          %v1114 = vunpack.c.l.b16 %v1077
          %v1115 = vunpack.c.l.b16 %v1078
          %v1116 = vunpack.c.l.b16 %v1079
          %v1117 = vunpack.c.l.b16 %v1080
          %v1118 = vunpack.c.l.b16 %v1081
          %v1119 = vunpack.c.l.b16 %v1082
          %v1120 = vunpack.c.l.b16 %v1083
          %v1121 = vunpack.c.l.b16 %v1084
          %v1122 = vunpack.c.l.b16 %v1085
          %v1123 = vunpack.c.l.b16 %v1086
          %v1124 = vunpack.c.l.b16 %v1087
          %v1125 = vunpack.c.l.b16 %v1088
          %v1126 = vunpack.c.l.b16 %v1089
          %v1127 = vunpack.c.l.b16 %v1090
          %v1128 = vunpack.c.l.b16 %v1091
          %v1129 = vunpack.c.l.b16 %v1092
          %v1130 = vpack.c.b16 %v1115, %v1114
          %v1131 = vpack.c.b16 %v1117, %v1116
          %v1132 = vpack.c.b16 %v1119, %v1118
          %v1133 = vpack.c.b16 %v1121, %v1120
          %v1134 = vpack.c.b16 %v1123, %v1122
          %v1135 = vpack.c.b16 %v1125, %v1124
          %v1136 = vpack.c.b16 %v1127, %v1126
          %v1137 = vpack.c.b16 %v1129, %v1128
          %1146 = vmatpush.bf16.msra.mxu0 %v1137
          %1147 = vmatpush.bf16.msra.mxu0 %v1136
          %1148 = vmatpush.bf16.msra.mxu0 %v1135
          %1149 = vmatpush.bf16.msra.mxu0 %v1134
          %1150 = vmatpush.bf16.msra.mxu0 %v1133
          %1151 = vmatpush.bf16.msra.mxu0 %v1132
          %1152 = vmatpush.bf16.msra.mxu0 %v1131
          %1153 = vmatpush.bf16.msra.mxu0 %v1130
          %1154 = vmatmul.bf16.gmra.mxu0 %v564
          %v1155 = vpop.f32.mrf.mxu0
          %v1156 = vadd.f32 %v1096, %v1155
          %v1157 = vpop.f32.mrf.mxu0
          %1158 = vdwg.mxu0
          %s1159 = scalar_lea.vmem %s5, 192
          %v1160 = vld [vmem:[%s1159] sm:$0xf]
          %v1161 = vld [vmem:[%s1159 + $0x4] sm:$0xf]
          %v1162 = vld [vmem:[%s1159 + $0x8] sm:$0xf]
          %v1163 = vld [vmem:[%s1159 + $0xc] sm:$0xf]
          %v1164 = vld [vmem:[%s1159 + $0x10] sm:$0xf]
          %v1165 = vld [vmem:[%s1159 + $0x14] sm:$0xf]
          %v1166 = vld [vmem:[%s1159 + $0x18] sm:$0xf]
          %v1167 = vld [vmem:[%s1159 + $0x1c] sm:$0xf]
          %v1168 = vld [vmem:[%s1159 + $0x20] sm:$0xf]
          %v1169 = vld [vmem:[%s1159 + $0x24] sm:$0xf]
          %v1170 = vld [vmem:[%s1159 + $0x28] sm:$0xf]
          %v1171 = vld [vmem:[%s1159 + $0x2c] sm:$0xf]
          %v1172 = vld [vmem:[%s1159 + $0x30] sm:$0xf]
          %v1173 = vld [vmem:[%s1159 + $0x34] sm:$0xf]
          %v1174 = vld [vmem:[%s1159 + $0x38] sm:$0xf]
          %v1175 = vld [vmem:[%s1159 + $0x3c] sm:$0xf]
          %s1176 = scalar_lea.vmem %s6, 3
          %v1177 = vld [vmem:[%s1176] sm:$0x1]
          %v1179 = vperm.slane %v1177, 0
          %v1197 = vunpack.c.l.b16 %v1160
          %v1198 = vunpack.c.l.b16 %v1161
          %v1199 = vunpack.c.l.b16 %v1162
          %v1200 = vunpack.c.l.b16 %v1163
          %v1201 = vunpack.c.l.b16 %v1164
          %v1202 = vunpack.c.l.b16 %v1165
          %v1203 = vunpack.c.l.b16 %v1166
          %v1204 = vunpack.c.l.b16 %v1167
          %v1205 = vunpack.c.l.b16 %v1168
          %v1206 = vunpack.c.l.b16 %v1169
          %v1207 = vunpack.c.l.b16 %v1170
          %v1208 = vunpack.c.l.b16 %v1171
          %v1209 = vunpack.c.l.b16 %v1172
          %v1210 = vunpack.c.l.b16 %v1173
          %v1211 = vunpack.c.l.b16 %v1174
          %v1212 = vunpack.c.l.b16 %v1175
          %v1213 = vpack.c.b16 %v1198, %v1197
          %v1214 = vpack.c.b16 %v1200, %v1199
          %v1215 = vpack.c.b16 %v1202, %v1201
          %v1216 = vpack.c.b16 %v1204, %v1203
          %v1217 = vpack.c.b16 %v1206, %v1205
          %v1218 = vpack.c.b16 %v1208, %v1207
          %v1219 = vpack.c.b16 %v1210, %v1209
          %v1220 = vpack.c.b16 %v1212, %v1211
          %1229 = vmatpush.bf16.msra.mxu0 %v1220
          %1230 = vmatpush.bf16.msra.mxu0 %v1219
          %1231 = vmatpush.bf16.msra.mxu0 %v1218
          %1232 = vmatpush.bf16.msra.mxu0 %v1217
          %1233 = vmatpush.bf16.msra.mxu0 %v1216
          %1234 = vmatpush.bf16.msra.mxu0 %v1215
          %1235 = vmatpush.bf16.msra.mxu0 %v1214
          %1236 = vmatpush.bf16.msra.mxu0 %v1213
          %1237 = vmatmul.bf16.gmra.mxu0 %v564
          %v1238 = vpop.f32.mrf.mxu0
          %v1239 = vadd.f32 %v1179, %v1238
          %v1240 = vpop.f32.mrf.mxu0
          %1241 = vdwg.mxu0
          %v1242 = vpack.c.bf16 %v1156, %v1156
          %s1243 = scalar_lea.vmem [#allocation2], 12
          %1244 = vst.msk [vmem:[%s1243] sm:$0xf] %vm728, %v1242
          %v1245 = vpack.c.bf16 %v1239, %v1239
          %s1246 = scalar_lea.vmem [#allocation3], 12
          %1247 = vst.msk [vmem:[%s1246] sm:$0xf] %vm728, %v1245
        $region92: #{tpu_custom_call.1} parent=87 // pred_fallthru
          _
        %s1248 = smul.u32 %s36, 8
        %s1249 = scalar_lea.vmem %s557, %s1248
        %v1250 = vld [vmem:[%s1249] sm:$0xff]
        %v1251 = vpack.c.bf16 %v1250, %v1250
        %v1252 = vld [vmem:[%s1] sm:$0xf]
        %v1253 = vld [vmem:[%s1 + $0x4] sm:$0xf]
        %v1254 = vld [vmem:[%s1 + $0x8] sm:$0xf]
        %v1255 = vld [vmem:[%s1 + $0xc] sm:$0xf]
        %v1256 = vld [vmem:[%s1 + $0x10] sm:$0xf]
        %v1257 = vld [vmem:[%s1 + $0x14] sm:$0xf]
        %v1258 = vld [vmem:[%s1 + $0x18] sm:$0xf]
        %v1259 = vld [vmem:[%s1 + $0x1c] sm:$0xf]
        %v1260 = vld [vmem:[%s1 + $0x20] sm:$0xf]
        %v1261 = vld [vmem:[%s1 + $0x24] sm:$0xf]
        %v1262 = vld [vmem:[%s1 + $0x28] sm:$0xf]
        %v1263 = vld [vmem:[%s1 + $0x2c] sm:$0xf]
        %v1264 = vld [vmem:[%s1 + $0x30] sm:$0xf]
        %v1265 = vld [vmem:[%s1 + $0x34] sm:$0xf]
        %v1266 = vld [vmem:[%s1 + $0x38] sm:$0xf]
        %v1267 = vld [vmem:[%s1 + $0x3c] sm:$0xf]
        %v1268 = vld [vmem:[%s2] sm:$0x1]
        %v1270 = vperm.slane %v1268, 0
        %v1288 = vunpack.c.l.b16 %v1252
        %v1289 = vunpack.c.l.b16 %v1253
        %v1290 = vunpack.c.l.b16 %v1254
        %v1291 = vunpack.c.l.b16 %v1255
        %v1292 = vunpack.c.l.b16 %v1256
        %v1293 = vunpack.c.l.b16 %v1257
        %v1294 = vunpack.c.l.b16 %v1258
        %v1295 = vunpack.c.l.b16 %v1259
        %v1296 = vunpack.c.l.b16 %v1260
        %v1297 = vunpack.c.l.b16 %v1261
        %v1298 = vunpack.c.l.b16 %v1262
        %v1299 = vunpack.c.l.b16 %v1263
        %v1300 = vunpack.c.l.b16 %v1264
        %v1301 = vunpack.c.l.b16 %v1265
        %v1302 = vunpack.c.l.b16 %v1266
        %v1303 = vunpack.c.l.b16 %v1267
        %v1304 = vpack.c.b16 %v1289, %v1288
        %v1305 = vpack.c.b16 %v1291, %v1290
        %v1306 = vpack.c.b16 %v1293, %v1292
        %v1307 = vpack.c.b16 %v1295, %v1294
        %v1308 = vpack.c.b16 %v1297, %v1296
        %v1309 = vpack.c.b16 %v1299, %v1298
        %v1310 = vpack.c.b16 %v1301, %v1300
        %v1311 = vpack.c.b16 %v1303, %v1302
        %1320 = vmatpush.bf16.msra.mxu0 %v1311
        %1321 = vmatpush.bf16.msra.mxu0 %v1310
        %1322 = vmatpush.bf16.msra.mxu0 %v1309
        %1323 = vmatpush.bf16.msra.mxu0 %v1308
        %1324 = vmatpush.bf16.msra.mxu0 %v1307
        %1325 = vmatpush.bf16.msra.mxu0 %v1306
        %1326 = vmatpush.bf16.msra.mxu0 %v1305
        %1327 = vmatpush.bf16.msra.mxu0 %v1304
        %1328 = vmatmul.bf16.gmra.mxu0 %v1251
        %v1329 = vpop.f32.mrf.mxu0
        %v1330 = vadd.f32 %v1270, %v1329
        %v1331 = vpop.f32.mrf.mxu0
        %1332 = vdwg.mxu0
        %v1333 = vmul.f32 %v1330, 0.35355338
        %v1334 = vpack.c.bf16 %v1333, %v1333
        %v1335 = vld [vmem:[#allocation2] sm:$0xf]
        %v1336 = vld [vmem:[#allocation3] sm:$0xf]
        %vm1337 = vcmask 64512
        %v1339 = vsel %vm1337, %v1334, 0
        %v1342 = vsel %vm1337, %v1335, 0
        %1344 = vmatpush.bf16.xpose.msra.mxu0 0
        %1345 = vmatpush.bf16.xpose.msra.mxu0 0
        %1346 = vmatpush.bf16.xpose.msra.mxu0 0
        %1347 = vmatpush.bf16.xpose.msra.mxu0 0
        %1348 = vmatpush.bf16.xpose.msra.mxu0 0
        %1349 = vmatpush.bf16.xpose.msra.mxu0 0
        %1350 = vmatpush.bf16.xpose.msra.mxu0 0
        %1351 = vmatpush.bf16.xpose.msra.mxu0 %v1342
        %1352 = vmatmul.bf16.gmra.mxu0 %v1339
        %v1353 = vpop.f32.mrf.mxu0
        %v1354 = vadd.f32 0.0, %v1353
        %v1355 = vpop.f32.mrf.mxu0
        %1356 = vdwg.mxu0
        %v1357 = vsel %vm1337, %v1354, -inf
        %1358 = vmax.xlane.f32.xlu0 %v1357
        %v1359 = vpop.xlane.xlu0 %1358
        %v1360 = vsub.f32 %v1354, %v1359
        %v1361 = vmul.f32 %v1360, 1.442695
        %v1362 = vpow.pop %v1361
        %v1363 = vsel %vm1337, %v1362, 0.0
        %1364 = vadd.xlane.f32.xlu0 %v1363
        %v1365 = vpop.xlane.xlu0 %1364
        %v1366 = vrcp.pop %v1365
        %v1367 = vmul.f32 %v1362, %v1366
        %v1368 = vpack.c.bf16 %v1367, %v1367
        %v1370 = vsel %vm1337, %v1368, 0
        %vm1372 = vcmask 1043456
        %v1374 = vsel %vm1372, %v1336, 0
        %1376 = vmatpush.bf16.msra.mxu0 0
        %1377 = vmatpush.bf16.msra.mxu0 0
        %1378 = vmatpush.bf16.msra.mxu0 0
        %1379 = vmatpush.bf16.msra.mxu0 0
        %1380 = vmatpush.bf16.msra.mxu0 0
        %1381 = vmatpush.bf16.msra.mxu0 0
        %1382 = vmatpush.bf16.msra.mxu0 0
        %1383 = vmatpush.bf16.msra.mxu0 %v1374
        %1384 = vmatmul.bf16.gmra.mxu0 %v1370
        %v1385 = vpop.f32.mrf.mxu0
        %v1386 = vadd.f32 0.0, %v1385
        %v1387 = vpop.f32.mrf.mxu0
        %1388 = vdwg.mxu0
        %v1389 = vpack.c.bf16 %v1386, %v1386
        %v1390 = vld [vmem:[%s7] sm:$0xf]
        %s1391 = scalar_lea.vmem %s1, 64
        %v1392 = vld [vmem:[%s1391] sm:$0xf]
        %v1393 = vld [vmem:[%s1391 + $0x4] sm:$0xf]
        %v1394 = vld [vmem:[%s1391 + $0x8] sm:$0xf]
        %v1395 = vld [vmem:[%s1391 + $0xc] sm:$0xf]
        %v1396 = vld [vmem:[%s1391 + $0x10] sm:$0xf]
        %v1397 = vld [vmem:[%s1391 + $0x14] sm:$0xf]
        %v1398 = vld [vmem:[%s1391 + $0x18] sm:$0xf]
        %v1399 = vld [vmem:[%s1391 + $0x1c] sm:$0xf]
        %v1400 = vld [vmem:[%s1391 + $0x20] sm:$0xf]
        %v1401 = vld [vmem:[%s1391 + $0x24] sm:$0xf]
        %v1402 = vld [vmem:[%s1391 + $0x28] sm:$0xf]
        %v1403 = vld [vmem:[%s1391 + $0x2c] sm:$0xf]
        %v1404 = vld [vmem:[%s1391 + $0x30] sm:$0xf]
        %v1405 = vld [vmem:[%s1391 + $0x34] sm:$0xf]
        %v1406 = vld [vmem:[%s1391 + $0x38] sm:$0xf]
        %v1407 = vld [vmem:[%s1391 + $0x3c] sm:$0xf]
        %s1408 = scalar_lea.vmem %s2, 1
        %v1409 = vld [vmem:[%s1408] sm:$0x1]
        %v1411 = vperm.slane %v1409, 0
        %v1429 = vunpack.c.l.b16 %v1392
        %v1430 = vunpack.c.l.b16 %v1393
        %v1431 = vunpack.c.l.b16 %v1394
        %v1432 = vunpack.c.l.b16 %v1395
        %v1433 = vunpack.c.l.b16 %v1396
        %v1434 = vunpack.c.l.b16 %v1397
        %v1435 = vunpack.c.l.b16 %v1398
        %v1436 = vunpack.c.l.b16 %v1399
        %v1437 = vunpack.c.l.b16 %v1400
        %v1438 = vunpack.c.l.b16 %v1401
        %v1439 = vunpack.c.l.b16 %v1402
        %v1440 = vunpack.c.l.b16 %v1403
        %v1441 = vunpack.c.l.b16 %v1404
        %v1442 = vunpack.c.l.b16 %v1405
        %v1443 = vunpack.c.l.b16 %v1406
        %v1444 = vunpack.c.l.b16 %v1407
        %v1445 = vpack.c.b16 %v1430, %v1429
        %v1446 = vpack.c.b16 %v1432, %v1431
        %v1447 = vpack.c.b16 %v1434, %v1433
        %v1448 = vpack.c.b16 %v1436, %v1435
        %v1449 = vpack.c.b16 %v1438, %v1437
        %v1450 = vpack.c.b16 %v1440, %v1439
        %v1451 = vpack.c.b16 %v1442, %v1441
        %v1452 = vpack.c.b16 %v1444, %v1443
        %1461 = vmatpush.bf16.msra.mxu0 %v1452
        %1462 = vmatpush.bf16.msra.mxu0 %v1451
        %1463 = vmatpush.bf16.msra.mxu0 %v1450
        %1464 = vmatpush.bf16.msra.mxu0 %v1449
        %1465 = vmatpush.bf16.msra.mxu0 %v1448
        %1466 = vmatpush.bf16.msra.mxu0 %v1447
        %1467 = vmatpush.bf16.msra.mxu0 %v1446
        %1468 = vmatpush.bf16.msra.mxu0 %v1445
        %1469 = vmatmul.bf16.gmra.mxu0 %v1251
        %v1470 = vpop.f32.mrf.mxu0
        %v1471 = vadd.f32 %v1411, %v1470
        %v1472 = vpop.f32.mrf.mxu0
        %1473 = vdwg.mxu0
        %v1474 = vmul.f32 %v1471, 0.35355338
        %v1475 = vpack.c.bf16 %v1474, %v1474
        %s1476 = scalar_lea.vmem [#allocation2], 4
        %v1477 = vld [vmem:[%s1476] sm:$0xf]
        %s1478 = scalar_lea.vmem [#allocation3], 4
        %v1479 = vld [vmem:[%s1478] sm:$0xf]
        %v1481 = vsel %vm1337, %v1475, 0
        %v1484 = vsel %vm1337, %v1477, 0
        %1486 = vmatpush.bf16.xpose.msra.mxu0 0
        %1487 = vmatpush.bf16.xpose.msra.mxu0 0
        %1488 = vmatpush.bf16.xpose.msra.mxu0 0
        %1489 = vmatpush.bf16.xpose.msra.mxu0 0
        %1490 = vmatpush.bf16.xpose.msra.mxu0 0
        %1491 = vmatpush.bf16.xpose.msra.mxu0 0
        %1492 = vmatpush.bf16.xpose.msra.mxu0 0
        %1493 = vmatpush.bf16.xpose.msra.mxu0 %v1484
        %1494 = vmatmul.bf16.gmra.mxu0 %v1481
        %v1495 = vpop.f32.mrf.mxu0
        %v1496 = vadd.f32 0.0, %v1495
        %v1497 = vpop.f32.mrf.mxu0
        %1498 = vdwg.mxu0
        %v1499 = vsel %vm1337, %v1496, -inf
        %1500 = vmax.xlane.f32.xlu0 %v1499
        %v1501 = vpop.xlane.xlu0 %1500
        %v1502 = vsub.f32 %v1496, %v1501
        %v1503 = vmul.f32 %v1502, 1.442695
        %v1504 = vpow.pop %v1503
        %v1505 = vsel %vm1337, %v1504, 0.0
        %1506 = vadd.xlane.f32.xlu0 %v1505
        %v1507 = vpop.xlane.xlu0 %1506
        %v1508 = vrcp.pop %v1507
        %v1509 = vmul.f32 %v1504, %v1508
        %v1510 = vpack.c.bf16 %v1509, %v1509
        %v1512 = vsel %vm1337, %v1510, 0
        %v1515 = vsel %vm1372, %v1479, 0
        %1517 = vmatpush.bf16.msra.mxu0 0
        %1518 = vmatpush.bf16.msra.mxu0 0
        %1519 = vmatpush.bf16.msra.mxu0 0
        %1520 = vmatpush.bf16.msra.mxu0 0
        %1521 = vmatpush.bf16.msra.mxu0 0
        %1522 = vmatpush.bf16.msra.mxu0 0
        %1523 = vmatpush.bf16.msra.mxu0 0
        %1524 = vmatpush.bf16.msra.mxu0 %v1515
        %1525 = vmatmul.bf16.gmra.mxu0 %v1512
        %v1526 = vpop.f32.mrf.mxu0
        %v1527 = vadd.f32 0.0, %v1526
        %v1528 = vpop.f32.mrf.mxu0
        %1529 = vdwg.mxu0
        %v1530 = vpack.c.bf16 %v1527, %v1527
        %s1531 = scalar_lea.vmem %s7, 4
        %v1532 = vld [vmem:[%s1531] sm:$0xf]
        %v1534 = vsel %vm1337, %v1530, 0
        %v1537 = vsel %vm1372, %v1532, 0
        %1539 = vmatpush.bf16.msra.mxu0 0
        %1540 = vmatpush.bf16.msra.mxu0 0
        %1541 = vmatpush.bf16.msra.mxu0 0
        %1542 = vmatpush.bf16.msra.mxu0 0
        %1543 = vmatpush.bf16.msra.mxu0 0
        %1544 = vmatpush.bf16.msra.mxu0 0
        %1545 = vmatpush.bf16.msra.mxu0 0
        %1546 = vmatpush.bf16.msra.mxu0 %v1537
        %1547 = vmatmul.bf16.gmra.mxu0 %v1534
        %v1548 = vpop.f32.mrf.mxu0
        %v1549 = vadd.f32 0.0, %v1548
        %v1550 = vpop.f32.mrf.mxu0
        %1551 = vdwg.mxu0
        %v1553 = vsel %vm1337, %v1389, 0
        %v1556 = vsel %vm1372, %v1390, 0
        %1558 = vmatpush.bf16.msra.mxu0 0
        %1559 = vmatpush.bf16.msra.mxu0 0
        %1560 = vmatpush.bf16.msra.mxu0 0
        %1561 = vmatpush.bf16.msra.mxu0 0
        %1562 = vmatpush.bf16.msra.mxu0 0
        %1563 = vmatpush.bf16.msra.mxu0 0
        %1564 = vmatpush.bf16.msra.mxu0 0
        %1565 = vmatpush.bf16.msra.mxu0 %v1556
        %1566 = vmatmul.bf16.gmra.mxu0 %v1553
        %v1567 = vpop.f32.mrf.mxu0
        %v1568 = vadd.f32 %v1549, %v1567
        %v1569 = vpop.f32.mrf.mxu0
        %1570 = vdwg.mxu0
        %s1571 = scalar_lea.vmem %s1, 128
        %v1572 = vld [vmem:[%s1571] sm:$0xf]
        %v1573 = vld [vmem:[%s1571 + $0x4] sm:$0xf]
        %v1574 = vld [vmem:[%s1571 + $0x8] sm:$0xf]
        %v1575 = vld [vmem:[%s1571 + $0xc] sm:$0xf]
        %v1576 = vld [vmem:[%s1571 + $0x10] sm:$0xf]
        %v1577 = vld [vmem:[%s1571 + $0x14] sm:$0xf]
        %v1578 = vld [vmem:[%s1571 + $0x18] sm:$0xf]
        %v1579 = vld [vmem:[%s1571 + $0x1c] sm:$0xf]
        %v1580 = vld [vmem:[%s1571 + $0x20] sm:$0xf]
        %v1581 = vld [vmem:[%s1571 + $0x24] sm:$0xf]
        %v1582 = vld [vmem:[%s1571 + $0x28] sm:$0xf]
        %v1583 = vld [vmem:[%s1571 + $0x2c] sm:$0xf]
        %v1584 = vld [vmem:[%s1571 + $0x30] sm:$0xf]
        %v1585 = vld [vmem:[%s1571 + $0x34] sm:$0xf]
        %v1586 = vld [vmem:[%s1571 + $0x38] sm:$0xf]
        %v1587 = vld [vmem:[%s1571 + $0x3c] sm:$0xf]
        %s1588 = scalar_lea.vmem %s2, 2
        %v1589 = vld [vmem:[%s1588] sm:$0x1]
        %v1591 = vperm.slane %v1589, 0
        %v1609 = vunpack.c.l.b16 %v1572
        %v1610 = vunpack.c.l.b16 %v1573
        %v1611 = vunpack.c.l.b16 %v1574
        %v1612 = vunpack.c.l.b16 %v1575
        %v1613 = vunpack.c.l.b16 %v1576
        %v1614 = vunpack.c.l.b16 %v1577
        %v1615 = vunpack.c.l.b16 %v1578
        %v1616 = vunpack.c.l.b16 %v1579
        %v1617 = vunpack.c.l.b16 %v1580
        %v1618 = vunpack.c.l.b16 %v1581
        %v1619 = vunpack.c.l.b16 %v1582
        %v1620 = vunpack.c.l.b16 %v1583
        %v1621 = vunpack.c.l.b16 %v1584
        %v1622 = vunpack.c.l.b16 %v1585
        %v1623 = vunpack.c.l.b16 %v1586
        %v1624 = vunpack.c.l.b16 %v1587
        %v1625 = vpack.c.b16 %v1610, %v1609
        %v1626 = vpack.c.b16 %v1612, %v1611
        %v1627 = vpack.c.b16 %v1614, %v1613
        %v1628 = vpack.c.b16 %v1616, %v1615
        %v1629 = vpack.c.b16 %v1618, %v1617
        %v1630 = vpack.c.b16 %v1620, %v1619
        %v1631 = vpack.c.b16 %v1622, %v1621
        %v1632 = vpack.c.b16 %v1624, %v1623
        %1641 = vmatpush.bf16.msra.mxu0 %v1632
        %1642 = vmatpush.bf16.msra.mxu0 %v1631
        %1643 = vmatpush.bf16.msra.mxu0 %v1630
        %1644 = vmatpush.bf16.msra.mxu0 %v1629
        %1645 = vmatpush.bf16.msra.mxu0 %v1628
        %1646 = vmatpush.bf16.msra.mxu0 %v1627
        %1647 = vmatpush.bf16.msra.mxu0 %v1626
        %1648 = vmatpush.bf16.msra.mxu0 %v1625
        %1649 = vmatmul.bf16.gmra.mxu0 %v1251
        %v1650 = vpop.f32.mrf.mxu0
        %v1651 = vadd.f32 %v1591, %v1650
        %v1652 = vpop.f32.mrf.mxu0
        %1653 = vdwg.mxu0
        %v1654 = vmul.f32 %v1651, 0.35355338
        %v1655 = vpack.c.bf16 %v1654, %v1654
        %s1656 = scalar_lea.vmem [#allocation2], 8
        %v1657 = vld [vmem:[%s1656] sm:$0xf]
        %s1658 = scalar_lea.vmem [#allocation3], 8
        %v1659 = vld [vmem:[%s1658] sm:$0xf]
        %v1661 = vsel %vm1337, %v1655, 0
        %v1664 = vsel %vm1337, %v1657, 0
        %1666 = vmatpush.bf16.xpose.msra.mxu0 0
        %1667 = vmatpush.bf16.xpose.msra.mxu0 0
        %1668 = vmatpush.bf16.xpose.msra.mxu0 0
        %1669 = vmatpush.bf16.xpose.msra.mxu0 0
        %1670 = vmatpush.bf16.xpose.msra.mxu0 0
        %1671 = vmatpush.bf16.xpose.msra.mxu0 0
        %1672 = vmatpush.bf16.xpose.msra.mxu0 0
        %1673 = vmatpush.bf16.xpose.msra.mxu0 %v1664
        %1674 = vmatmul.bf16.gmra.mxu0 %v1661
        %v1675 = vpop.f32.mrf.mxu0
        %v1676 = vadd.f32 0.0, %v1675
        %v1677 = vpop.f32.mrf.mxu0
        %1678 = vdwg.mxu0
        %v1679 = vsel %vm1337, %v1676, -inf
        %1680 = vmax.xlane.f32.xlu0 %v1679
        %v1681 = vpop.xlane.xlu0 %1680
        %v1682 = vsub.f32 %v1676, %v1681
        %v1683 = vmul.f32 %v1682, 1.442695
        %v1684 = vpow.pop %v1683
        %v1685 = vsel %vm1337, %v1684, 0.0
        %1686 = vadd.xlane.f32.xlu0 %v1685
        %v1687 = vpop.xlane.xlu0 %1686
        %v1688 = vrcp.pop %v1687
        %v1689 = vmul.f32 %v1684, %v1688
        %v1690 = vpack.c.bf16 %v1689, %v1689
        %v1692 = vsel %vm1337, %v1690, 0
        %v1695 = vsel %vm1372, %v1659, 0
        %1697 = vmatpush.bf16.msra.mxu0 0
        %1698 = vmatpush.bf16.msra.mxu0 0
        %1699 = vmatpush.bf16.msra.mxu0 0
        %1700 = vmatpush.bf16.msra.mxu0 0
        %1701 = vmatpush.bf16.msra.mxu0 0
        %1702 = vmatpush.bf16.msra.mxu0 0
        %1703 = vmatpush.bf16.msra.mxu0 0
        %1704 = vmatpush.bf16.msra.mxu0 %v1695
        %1705 = vmatmul.bf16.gmra.mxu0 %v1692
        %v1706 = vpop.f32.mrf.mxu0
        %v1707 = vadd.f32 0.0, %v1706
        %v1708 = vpop.f32.mrf.mxu0
        %1709 = vdwg.mxu0
        %v1710 = vpack.c.bf16 %v1707, %v1707
        %s1711 = scalar_lea.vmem %s7, 8
        %v1712 = vld [vmem:[%s1711] sm:$0xf]
        %v1714 = vsel %vm1337, %v1710, 0
        %v1717 = vsel %vm1372, %v1712, 0
        %1719 = vmatpush.bf16.msra.mxu0 0
        %1720 = vmatpush.bf16.msra.mxu0 0
        %1721 = vmatpush.bf16.msra.mxu0 0
        %1722 = vmatpush.bf16.msra.mxu0 0
        %1723 = vmatpush.bf16.msra.mxu0 0
        %1724 = vmatpush.bf16.msra.mxu0 0
        %1725 = vmatpush.bf16.msra.mxu0 0
        %1726 = vmatpush.bf16.msra.mxu0 %v1717
        %1727 = vmatmul.bf16.gmra.mxu0 %v1714
        %v1728 = vpop.f32.mrf.mxu0
        %v1729 = vadd.f32 0.0, %v1728
        %v1730 = vpop.f32.mrf.mxu0
        %1731 = vdwg.mxu0
        %v1732 = vadd.f32 %v1568, %v1729
        %s1733 = scalar_lea.vmem %s1, 192
        %v1734 = vld [vmem:[%s1733] sm:$0xf]
        %v1735 = vld [vmem:[%s1733 + $0x4] sm:$0xf]
        %v1736 = vld [vmem:[%s1733 + $0x8] sm:$0xf]
        %v1737 = vld [vmem:[%s1733 + $0xc] sm:$0xf]
        %v1738 = vld [vmem:[%s1733 + $0x10] sm:$0xf]
        %v1739 = vld [vmem:[%s1733 + $0x14] sm:$0xf]
        %v1740 = vld [vmem:[%s1733 + $0x18] sm:$0xf]
        %v1741 = vld [vmem:[%s1733 + $0x1c] sm:$0xf]
        %v1742 = vld [vmem:[%s1733 + $0x20] sm:$0xf]
        %v1743 = vld [vmem:[%s1733 + $0x24] sm:$0xf]
        %v1744 = vld [vmem:[%s1733 + $0x28] sm:$0xf]
        %v1745 = vld [vmem:[%s1733 + $0x2c] sm:$0xf]
        %v1746 = vld [vmem:[%s1733 + $0x30] sm:$0xf]
        %v1747 = vld [vmem:[%s1733 + $0x34] sm:$0xf]
        %v1748 = vld [vmem:[%s1733 + $0x38] sm:$0xf]
        %v1749 = vld [vmem:[%s1733 + $0x3c] sm:$0xf]
        %s1750 = scalar_lea.vmem %s2, 3
        %v1751 = vld [vmem:[%s1750] sm:$0x1]
        %v1753 = vperm.slane %v1751, 0
        %v1771 = vunpack.c.l.b16 %v1734
        %v1772 = vunpack.c.l.b16 %v1735
        %v1773 = vunpack.c.l.b16 %v1736
        %v1774 = vunpack.c.l.b16 %v1737
        %v1775 = vunpack.c.l.b16 %v1738
        %v1776 = vunpack.c.l.b16 %v1739
        %v1777 = vunpack.c.l.b16 %v1740
        %v1778 = vunpack.c.l.b16 %v1741
        %v1779 = vunpack.c.l.b16 %v1742
        %v1780 = vunpack.c.l.b16 %v1743
        %v1781 = vunpack.c.l.b16 %v1744
        %v1782 = vunpack.c.l.b16 %v1745
        %v1783 = vunpack.c.l.b16 %v1746
        %v1784 = vunpack.c.l.b16 %v1747
        %v1785 = vunpack.c.l.b16 %v1748
        %v1786 = vunpack.c.l.b16 %v1749
        %v1787 = vpack.c.b16 %v1772, %v1771
        %v1788 = vpack.c.b16 %v1774, %v1773
        %v1789 = vpack.c.b16 %v1776, %v1775
        %v1790 = vpack.c.b16 %v1778, %v1777
        %v1791 = vpack.c.b16 %v1780, %v1779
        %v1792 = vpack.c.b16 %v1782, %v1781
        %v1793 = vpack.c.b16 %v1784, %v1783
        %v1794 = vpack.c.b16 %v1786, %v1785
        %1803 = vmatpush.bf16.msra.mxu0 %v1794
        %1804 = vmatpush.bf16.msra.mxu0 %v1793
        %1805 = vmatpush.bf16.msra.mxu0 %v1792
        %1806 = vmatpush.bf16.msra.mxu0 %v1791
        %1807 = vmatpush.bf16.msra.mxu0 %v1790
        %1808 = vmatpush.bf16.msra.mxu0 %v1789
        %1809 = vmatpush.bf16.msra.mxu0 %v1788
        %1810 = vmatpush.bf16.msra.mxu0 %v1787
        %1811 = vmatmul.bf16.gmra.mxu0 %v1251
        %v1812 = vpop.f32.mrf.mxu0
        %v1813 = vadd.f32 %v1753, %v1812
        %v1814 = vpop.f32.mrf.mxu0
        %1815 = vdwg.mxu0
        %v1816 = vmul.f32 %v1813, 0.35355338
        %v1817 = vpack.c.bf16 %v1816, %v1816
        %s1818 = scalar_lea.vmem [#allocation2], 12
        %v1819 = vld [vmem:[%s1818] sm:$0xf]
        %s1820 = scalar_lea.vmem [#allocation3], 12
        %v1821 = vld [vmem:[%s1820] sm:$0xf]
        %v1823 = vsel %vm1337, %v1817, 0
        %v1826 = vsel %vm1337, %v1819, 0
        %1828 = vmatpush.bf16.xpose.msra.mxu0 0
        %1829 = vmatpush.bf16.xpose.msra.mxu0 0
        %1830 = vmatpush.bf16.xpose.msra.mxu0 0
        %1831 = vmatpush.bf16.xpose.msra.mxu0 0
        %1832 = vmatpush.bf16.xpose.msra.mxu0 0
        %1833 = vmatpush.bf16.xpose.msra.mxu0 0
        %1834 = vmatpush.bf16.xpose.msra.mxu0 0
        %1835 = vmatpush.bf16.xpose.msra.mxu0 %v1826
        %1836 = vmatmul.bf16.gmra.mxu0 %v1823
        %v1837 = vpop.f32.mrf.mxu0
        %v1838 = vadd.f32 0.0, %v1837
        %v1839 = vpop.f32.mrf.mxu0
        %1840 = vdwg.mxu0
        %v1841 = vsel %vm1337, %v1838, -inf
        %1842 = vmax.xlane.f32.xlu0 %v1841
        %v1843 = vpop.xlane.xlu0 %1842
        %v1844 = vsub.f32 %v1838, %v1843
        %v1845 = vmul.f32 %v1844, 1.442695
        %v1846 = vpow.pop %v1845
        %v1847 = vsel %vm1337, %v1846, 0.0
        %1848 = vadd.xlane.f32.xlu0 %v1847
        %v1849 = vpop.xlane.xlu0 %1848
        %v1850 = vrcp.pop %v1849
        %v1851 = vmul.f32 %v1846, %v1850
        %v1852 = vpack.c.bf16 %v1851, %v1851
        %v1854 = vsel %vm1337, %v1852, 0
        %v1857 = vsel %vm1372, %v1821, 0
        %1859 = vmatpush.bf16.msra.mxu0 0
        %1860 = vmatpush.bf16.msra.mxu0 0
        %1861 = vmatpush.bf16.msra.mxu0 0
        %1862 = vmatpush.bf16.msra.mxu0 0
        %1863 = vmatpush.bf16.msra.mxu0 0
        %1864 = vmatpush.bf16.msra.mxu0 0
        %1865 = vmatpush.bf16.msra.mxu0 0
        %1866 = vmatpush.bf16.msra.mxu0 %v1857
        %1867 = vmatmul.bf16.gmra.mxu0 %v1854
        %v1868 = vpop.f32.mrf.mxu0
        %v1869 = vadd.f32 0.0, %v1868
        %v1870 = vpop.f32.mrf.mxu0
        %1871 = vdwg.mxu0
        %v1872 = vpack.c.bf16 %v1869, %v1869
        %s1873 = scalar_lea.vmem %s7, 12
        %v1874 = vld [vmem:[%s1873] sm:$0xf]
        %v1876 = vsel %vm1337, %v1872, 0
        %v1879 = vsel %vm1372, %v1874, 0
        %1881 = vmatpush.bf16.msra.mxu0 0
        %1882 = vmatpush.bf16.msra.mxu0 0
        %1883 = vmatpush.bf16.msra.mxu0 0
        %1884 = vmatpush.bf16.msra.mxu0 0
        %1885 = vmatpush.bf16.msra.mxu0 0
        %1886 = vmatpush.bf16.msra.mxu0 0
        %1887 = vmatpush.bf16.msra.mxu0 0
        %1888 = vmatpush.bf16.msra.mxu0 %v1879
        %1889 = vmatmul.bf16.gmra.mxu0 %v1876
        %v1890 = vpop.f32.mrf.mxu0
        %v1891 = vadd.f32 0.0, %v1890
        %v1892 = vpop.f32.mrf.mxu0
        %1893 = vdwg.mxu0
        %v1894 = vadd.f32 %v1732, %v1891
        %v1895 = vld [vmem:[%s8] sm:$0x1]
        %v1897 = vperm.slane %v1895, 0
        %v1899 = vadd.f32 %v1894, %v1897
        %v1900 = vadd.f32 %v1250, %v1899
        %v1901 = vld [vmem:[%s9] sm:$0x1]
        %v1902 = vld [vmem:[%s10] sm:$0x1]
        %1903 = vadd.xlane.f32.xlu0 %v1900
        %v1904 = vpop.xlane.xlu0 %1903
        %v1905 = vmul.f32 %v1904, 0.03125
        %v1906 = vsub.f32 %v1900, %v1905
        %v1907 = vmul.f32 %v1906, %v1906
        %1908 = vadd.xlane.f32.xlu0 %v1907
        %v1909 = vpop.xlane.xlu0 %1908
        %v1910 = vmul.f32 %v1905, %v1905
        %v1911 = vmul.f32 %v1910, 96.0
        %v1912 = vsub.f32 %v1909, %v1911
        %v1913 = vmul.f32 %v1912, 0.03125
        %v1914 = vadd.f32 %v1913, 1e-05
        %v1915 = vrsqrt.pop %v1914
        %v1916 = vmul.f32 %v1915, %v1914
        %v1917 = vmul.f32 %v1916, %v1915
        %v1918 = vmul.f32 0.5, %v1917
        %v1919 = vsub.f32 1.5, %v1918
        %v1920 = vmul.f32 %v1915, %v1919
        %vm1921 = vweird.f32 %v1914
        %vm1922 = vweird.f32 %v1915
        %vm1923 = vmor %vm1921, %vm1922
        %v1924 = vsel %vm1923, %v1915, %v1920
        %v1925 = vmul.f32 %v1906, %v1924
        %v1927 = vperm.slane %v1901, 0
        %v1929 = vmul.f32 %v1925, %v1927
        %v1931 = vperm.slane %v1902, 0
        %v1933 = vadd.f32 %v1929, %v1931
        %v1934 = vpack.c.bf16 %v1933, %v1933
        %v1935 = vld [vmem:[%s11] sm:$0xf]
        %v1936 = vld [vmem:[%s11 + $0x4] sm:$0xf]
        %v1937 = vld [vmem:[%s11 + $0x8] sm:$0xf]
        %v1938 = vld [vmem:[%s11 + $0xc] sm:$0xf]
        %v1939 = vld [vmem:[%s11 + $0x10] sm:$0xf]
        %v1940 = vld [vmem:[%s11 + $0x14] sm:$0xf]
        %v1941 = vld [vmem:[%s11 + $0x18] sm:$0xf]
        %v1942 = vld [vmem:[%s11 + $0x1c] sm:$0xf]
        %v1943 = vld [vmem:[%s11 + $0x20] sm:$0xf]
        %v1944 = vld [vmem:[%s11 + $0x24] sm:$0xf]
        %v1945 = vld [vmem:[%s11 + $0x28] sm:$0xf]
        %v1946 = vld [vmem:[%s11 + $0x2c] sm:$0xf]
        %v1947 = vld [vmem:[%s11 + $0x30] sm:$0xf]
        %v1948 = vld [vmem:[%s11 + $0x34] sm:$0xf]
        %v1949 = vld [vmem:[%s11 + $0x38] sm:$0xf]
        %v1950 = vld [vmem:[%s11 + $0x3c] sm:$0xf]
        %v1951 = vld [vmem:[%s12] sm:$0x1]
        %v1953 = vperm.slane %v1951, 0
        %v1971 = vunpack.c.l.b16 %v1935
        %v1972 = vunpack.c.l.b16 %v1936
        %v1973 = vunpack.c.l.b16 %v1937
        %v1974 = vunpack.c.l.b16 %v1938
        %v1975 = vunpack.c.l.b16 %v1939
        %v1976 = vunpack.c.l.b16 %v1940
        %v1977 = vunpack.c.l.b16 %v1941
        %v1978 = vunpack.c.l.b16 %v1942
        %v1979 = vunpack.c.l.b16 %v1943
        %v1980 = vunpack.c.l.b16 %v1944
        %v1981 = vunpack.c.l.b16 %v1945
        %v1982 = vunpack.c.l.b16 %v1946
        %v1983 = vunpack.c.l.b16 %v1947
        %v1984 = vunpack.c.l.b16 %v1948
        %v1985 = vunpack.c.l.b16 %v1949
        %v1986 = vunpack.c.l.b16 %v1950
        %v1987 = vpack.c.b16 %v1972, %v1971
        %v1988 = vpack.c.b16 %v1974, %v1973
        %v1989 = vpack.c.b16 %v1976, %v1975
        %v1990 = vpack.c.b16 %v1978, %v1977
        %v1991 = vpack.c.b16 %v1980, %v1979
        %v1992 = vpack.c.b16 %v1982, %v1981
        %v1993 = vpack.c.b16 %v1984, %v1983
        %v1994 = vpack.c.b16 %v1986, %v1985
        %2003 = vmatpush.bf16.msra.mxu0 %v1994
        %2004 = vmatpush.bf16.msra.mxu0 %v1993
        %2005 = vmatpush.bf16.msra.mxu0 %v1992
        %2006 = vmatpush.bf16.msra.mxu0 %v1991
        %2007 = vmatpush.bf16.msra.mxu0 %v1990
        %2008 = vmatpush.bf16.msra.mxu0 %v1989
        %2009 = vmatpush.bf16.msra.mxu0 %v1988
        %2010 = vmatpush.bf16.msra.mxu0 %v1987
        %2011 = vmatmul.bf16.gmra.mxu0 %v1934
        %v2012 = vpop.f32.mrf.mxu0
        %v2013 = vadd.f32 %v1953, %v2012
        %v2014 = vpop.f32.mrf.mxu0
        %2015 = vdwg.mxu0
        %v2016 = vmax.f32 %v2013, 0.0
        %v2017 = vpack.c.bf16 %v2016, %v2016
        %v2018 = vld [vmem:[%s13] sm:$0xf]
        %v2019 = vld [vmem:[%s13 + $0x4] sm:$0xf]
        %v2020 = vld [vmem:[%s13 + $0x8] sm:$0xf]
        %v2021 = vld [vmem:[%s13 + $0xc] sm:$0xf]
        %v2022 = vld [vmem:[%s13 + $0x10] sm:$0xf]
        %v2023 = vld [vmem:[%s13 + $0x14] sm:$0xf]
        %v2024 = vld [vmem:[%s13 + $0x18] sm:$0xf]
        %v2025 = vld [vmem:[%s13 + $0x1c] sm:$0xf]
        %v2026 = vld [vmem:[%s13 + $0x20] sm:$0xf]
        %v2027 = vld [vmem:[%s13 + $0x24] sm:$0xf]
        %v2028 = vld [vmem:[%s13 + $0x28] sm:$0xf]
        %v2029 = vld [vmem:[%s13 + $0x2c] sm:$0xf]
        %v2030 = vld [vmem:[%s13 + $0x30] sm:$0xf]
        %v2031 = vld [vmem:[%s13 + $0x34] sm:$0xf]
        %v2032 = vld [vmem:[%s13 + $0x38] sm:$0xf]
        %v2033 = vld [vmem:[%s13 + $0x3c] sm:$0xf]
        %v2034 = vld [vmem:[%s14] sm:$0x1]
        %v2036 = vperm.slane %v2034, 0
        %v2054 = vunpack.c.l.b16 %v2018
        %v2055 = vunpack.c.l.b16 %v2019
        %v2056 = vunpack.c.l.b16 %v2020
        %v2057 = vunpack.c.l.b16 %v2021
        %v2058 = vunpack.c.l.b16 %v2022
        %v2059 = vunpack.c.l.b16 %v2023
        %v2060 = vunpack.c.l.b16 %v2024
        %v2061 = vunpack.c.l.b16 %v2025
        %v2062 = vunpack.c.l.b16 %v2026
        %v2063 = vunpack.c.l.b16 %v2027
        %v2064 = vunpack.c.l.b16 %v2028
        %v2065 = vunpack.c.l.b16 %v2029
        %v2066 = vunpack.c.l.b16 %v2030
        %v2067 = vunpack.c.l.b16 %v2031
        %v2068 = vunpack.c.l.b16 %v2032
        %v2069 = vunpack.c.l.b16 %v2033
        %v2070 = vpack.c.b16 %v2055, %v2054
        %v2071 = vpack.c.b16 %v2057, %v2056
        %v2072 = vpack.c.b16 %v2059, %v2058
        %v2073 = vpack.c.b16 %v2061, %v2060
        %v2074 = vpack.c.b16 %v2063, %v2062
        %v2075 = vpack.c.b16 %v2065, %v2064
        %v2076 = vpack.c.b16 %v2067, %v2066
        %v2077 = vpack.c.b16 %v2069, %v2068
        %2086 = vmatpush.bf16.msra.mxu0 %v2077
        %2087 = vmatpush.bf16.msra.mxu0 %v2076
        %2088 = vmatpush.bf16.msra.mxu0 %v2075
        %2089 = vmatpush.bf16.msra.mxu0 %v2074
        %2090 = vmatpush.bf16.msra.mxu0 %v2073
        %2091 = vmatpush.bf16.msra.mxu0 %v2072
        %2092 = vmatpush.bf16.msra.mxu0 %v2071
        %2093 = vmatpush.bf16.msra.mxu0 %v2070
        %2094 = vmatmul.bf16.gmra.mxu0 %v2017
        %v2095 = vpop.f32.mrf.mxu0
        %v2096 = vadd.f32 %v2036, %v2095
        %v2097 = vpop.f32.mrf.mxu0
        %2098 = vdwg.mxu0
        %v2099 = vadd.f32 %v1933, %v2096
        %v2100 = vld [vmem:[%s15] sm:$0x1]
        %v2101 = vld [vmem:[%s16] sm:$0x1]
        %2102 = vadd.xlane.f32.xlu0 %v2099
        %v2103 = vpop.xlane.xlu0 %2102
        %v2104 = vmul.f32 %v2103, 0.03125
        %v2105 = vsub.f32 %v2099, %v2104
        %v2106 = vmul.f32 %v2105, %v2105
        %2107 = vadd.xlane.f32.xlu0 %v2106
        %v2108 = vpop.xlane.xlu0 %2107
        %v2109 = vmul.f32 %v2104, %v2104
        %v2110 = vmul.f32 %v2109, 96.0
        %v2111 = vsub.f32 %v2108, %v2110
        %v2112 = vmul.f32 %v2111, 0.03125
        %v2113 = vadd.f32 %v2112, 1e-05
        %v2114 = vrsqrt.pop %v2113
        %v2115 = vmul.f32 %v2114, %v2113
        %v2116 = vmul.f32 %v2115, %v2114
        %v2117 = vmul.f32 0.5, %v2116
        %v2118 = vsub.f32 1.5, %v2117
        %v2119 = vmul.f32 %v2114, %v2118
        %vm2120 = vweird.f32 %v2113
        %vm2121 = vweird.f32 %v2114
        %vm2122 = vmor %vm2120, %vm2121
        %v2123 = vsel %vm2122, %v2114, %v2119
        %v2124 = vmul.f32 %v2105, %v2123
        %v2126 = vperm.slane %v2100, 0
        %v2128 = vmul.f32 %v2124, %v2126
        %v2130 = vperm.slane %v2101, 0
        %v2132 = vadd.f32 %v2128, %v2130
        %2133 = vst [vmem:[%s553] sm:$0xff] %v2132
        %s2134 = sand.u32 %s415, 1
        %s2135 = scalar_lea.sflag [#allocation5], %s2134
        %s2136 = sand.u32 %s415, 1
        %s2137 = smul.addr %s2136, 8
        %s2138 = scalar_lea.vmem [#allocation4], %s2137
        // Predicated region
        $region93: #{tpu_custom_call.1} parent=87 // pred_check
          %p2139 = pneg %p425
        $region94: #{tpu_custom_call.1} parent=87 // pred_check_branch
          %2141 = sbr.rel (%p2139) target = $region96
        $region95: #{tpu_custom_call.1} parent=87 // pred_region
          %2143 = vsyncadd %s2135, 0
          %s2144 = sadd.s32 %s36, %s35
          %s2145 = smul.addr %s2144, 8
          %s2146 = scalar_lea.hbm %s17, %s2145
          %s2148 = sshll.u32 %s2138, 4
          %s2149 = int_to_ptr.vmem [resolvable:$true] %s2148
          %s2150 = sshll.u32 %s2146, 4
          %s2151 = int_to_ptr.hbm [resolvable:$true] %s2150
          %2153 = dma.vmem_to_hbm [thread:$0]  %s2149, 128, %s2151, %s2135
        $region96: #{tpu_custom_call.1} parent=87 // pred_fallthru
          _
      $region88: #{tpu_custom_call.1} parent=5 // pred_fallthru
        _
      %p2154 = scmp.le.s32.totalorder 2, %s26
      // Predicated region
      $region97: #{tpu_custom_call.1} parent=5 // pred_check
        %p2155 = pneg %p2154
      $region98: #{tpu_custom_call.1} parent=5 // pred_check_branch
        %2157 = sbr.rel (%p2155) target = $region100
      $region99: #{tpu_custom_call.1} parent=5 // pred_region
        %s2158 = ssub.s32 %s26, 2
        // Predicated region
        $region101: #{tpu_custom_call.1} parent=99 // pred_check
          %p2159 = pneg %p431
        $region102: #{tpu_custom_call.1} parent=99 // pred_check_branch
          %2161 = sbr.rel (%p2159) target = $region104
        $region103: #{tpu_custom_call.1} parent=99 // pred_region
          %s2162 = sand.u32 %s416, 1
          %s2163 = scalar_lea.sflag [#allocation5], %s2162
          %s2164 = sand.u32 %s416, 1
          %s2165 = smul.addr %s2164, 8
          %s2166 = scalar_lea.vmem [#allocation4], %s2165
          %2168 = dma.done %s2163, 128
        $region104: #{tpu_custom_call.1} parent=99 // pred_fallthru
          _
      $region100: #{tpu_custom_call.1} parent=5 // pred_fallthru
        _
    $region6: #{tpu_custom_call.1} parent=1 // loop_footer
      %s30 = sadd.s32 1, %s26
    $region7: #{tpu_custom_call.1} parent=1 // loop_footer_branch
      %25 = sbr.rel target = $region3
    $region8: #{tpu_custom_call.1} parent=1 // loop_exit
      _
    %2169 = vsyncpa [#allocation5], 1
    %s2170 = scalar_lea.sflag [#allocation5], 1
    %2171 = vsyncpa %s2170, 1

// kernel: tpu_custom_call.1
$region0: #{tpu_custom_call.1}
  #allocation0 [shape = 'u32[]', space=smem, size = 0x4, offset = 0x4, fixed_abs, tag = 'smem constant byte address 0x4 - core index']
  #allocation1 [shape = 'u32[72,128]{1,0:T(1,128)}', space=vmem, size = 0x9000, scoped, tag = 'internal scratch']
  #allocation2 [shape = 'bf16[4,8,8]{2,1,0:T(8,128)(2,1)}', space=vmem, size = 0x2000, scoped, tag = 'scratch operand']
  #allocation3 [shape = 'bf16[4,8,8]{2,1,0:T(8,128)(2,1)}', space=vmem, size = 0x2000, scoped, tag = 'scratch operand']
  %s0 = inlined_call_operand.vmem [shape: f32[2,8,128], index: 0, kind: input, shape index: {}]
  %s1 = inlined_call_operand.vmem [shape: bf16[4,128,8], index: 1, kind: input, shape index: {}]
  %s2 = inlined_call_operand.vmem [shape: f32[4,1,8], index: 2, kind: input, shape index: {}]
  %s3 = inlined_call_operand.vmem [shape: bf16[4,128,8], index: 3, kind: input, shape index: {}]
  %s4 = inlined_call_operand.vmem [shape: f32[4,1,8], index: 4, kind: input, shape index: {}]
  %s5 = inlined_call_operand.vmem [shape: bf16[4,128,8], index: 5, kind: input, shape index: {}]
  %s6 = inlined_call_operand.vmem [shape: f32[4,1,8], index: 6, kind: input, shape index: {}]
  %s7 = inlined_call_operand.vmem [shape: bf16[4,8,128], index: 7, kind: input, shape index: {}]
  %s8 = inlined_call_operand.vmem [shape: f32[1,128], index: 8, kind: input, shape index: {}]
  %s9 = inlined_call_operand.vmem [shape: f32[1,128], index: 9, kind: input, shape index: {}]
  %s10 = inlined_call_operand.vmem [shape: f32[1,128], index: 10, kind: input, shape index: {}]
  %s11 = inlined_call_operand.vmem [shape: bf16[128,128], index: 11, kind: input, shape index: {}]
  %s12 = inlined_call_operand.vmem [shape: f32[1,128], index: 12, kind: input, shape index: {}]
  %s13 = inlined_call_operand.vmem [shape: bf16[128,128], index: 13, kind: input, shape index: {}]
  %s14 = inlined_call_operand.vmem [shape: f32[1,128], index: 14, kind: input, shape index: {}]
  %s15 = inlined_call_operand.vmem [shape: f32[1,128], index: 15, kind: input, shape index: {}]
  %s16 = inlined_call_operand.vmem [shape: f32[1,128], index: 16, kind: input, shape index: {}]
  %s17 = inlined_call_operand.hbm [shape: f32[2,8,128], index: 17, kind: output, shape index: {}]
  %s18 = sld [smem:[#allocation0]]
  $region105: #{tpu_custom_call.1} parent=0
    _
  %s20 = ssub.s32 1, %s18
  %s21 = scalar_select 0, %s20, %s18
  $region1: #{tpu_custom_call.1} parent=0
    #allocation4 [shape = 'u8[8192]{0}', space=vmem, size = 0x2000, scoped, tag = 'output window, operand 0']
    #allocation5 [shape = 's32[2]{0}', space=sflag, size = 0x8, scoped, tag = 'scoped memory for tpu_custom_call.1']
    %22 = vsyncpa [#allocation5], 0
    %s23 = scalar_lea.sflag [#allocation5], 1
    %24 = vsyncpa %s23, 0
    loop: start=0, step=1, limit=4
    $region2: #{tpu_custom_call.1} parent=1 // loop_pre_header
      _
    $region3: #{tpu_custom_call.1} parent=1 // loop_header
      %s26 = sphi 0, %s30
      %p27 = scmp.ge.s32.totalorder %s26, 4
      %s33 = sphi 0, %s45
      %s34 = sphi 0, %s41
      %s35 = sphi 0, %s33
      %s36 = sphi 0, %s34
      %s37 = sphi 0, %s35
      %s38 = sphi 0, %s36
      %s48 = sphi 0, %s50
      %s51 = sphi 0, %s48
      %s52 = sphi 0, %s51
      %s68 = sphi 0, %s52
      %s72 = sphi 0, %s72
      %s74 = sphi 0, %s72
      %s75 = sphi 0, %s74
      %s89 = sphi 0, %s75
      %s93 = sphi 0, %s93
      %s95 = sphi 0, %s93
      %s96 = sphi 0, %s95
      %s110 = sphi 0, %s96
      %s114 = sphi 0, %s114
      %s116 = sphi 0, %s114
      %s117 = sphi 0, %s116
      %s131 = sphi 0, %s117
      %s135 = sphi 0, %s135
      %s137 = sphi 0, %s135
      %s138 = sphi 0, %s137
      %s152 = sphi 0, %s138
      %s156 = sphi 0, %s156
      %s158 = sphi 0, %s156
      %s159 = sphi 0, %s158
      %s173 = sphi 0, %s159
      %s177 = sphi 0, %s177
      %s179 = sphi 0, %s177
      %s180 = sphi 0, %s179
      %s194 = sphi 0, %s180
      %s198 = sphi 0, %s198
      %s200 = sphi 0, %s198
      %s201 = sphi 0, %s200
      %s215 = sphi 0, %s201
      %s219 = sphi 0, %s219
      %s221 = sphi 0, %s219
      %s222 = sphi 0, %s221
      %s236 = sphi 0, %s222
      %s240 = sphi 0, %s240
      %s242 = sphi 0, %s240
      %s243 = sphi 0, %s242
      %s257 = sphi 0, %s243
      %s261 = sphi 0, %s261
      %s263 = sphi 0, %s261
      %s264 = sphi 0, %s263
      %s278 = sphi 0, %s264
      %s282 = sphi 0, %s282
      %s284 = sphi 0, %s282
      %s285 = sphi 0, %s284
      %s299 = sphi 0, %s285
      %s303 = sphi 0, %s303
      %s305 = sphi 0, %s303
      %s306 = sphi 0, %s305
      %s320 = sphi 0, %s306
      %s324 = sphi 0, %s324
      %s326 = sphi 0, %s324
      %s327 = sphi 0, %s326
      %s341 = sphi 0, %s327
      %s345 = sphi 0, %s345
      %s347 = sphi 0, %s345
      %s348 = sphi 0, %s347
      %s362 = sphi 0, %s348
      %s366 = sphi 0, %s366
      %s368 = sphi 0, %s366
      %s369 = sphi 0, %s368
      %s383 = sphi 0, %s369
      %s387 = sphi 0, %s387
      %s389 = sphi 0, %s387
      %s390 = sphi 0, %s389
      %s404 = sphi 0, %s390
      %s412 = sphi 0, %s414
      %s415 = sphi 0, %s412
      %s416 = sphi 0, %s415
      %s432 = sphi 0, %s416
    $region4: #{tpu_custom_call.1} parent=1 // loop_header_branch
      %29 = sbr.rel (%p27) target = $region8
    $region5: #{tpu_custom_call.1} parent=1 // loop_body
      %s31 = ssub.s32 %s26, 1
      %s32 = ssub.s32 %s26, 2
      %s39 = sadd.s32 1, %s34
      %p40 = scmp.ge.s32.totalorder %s39, 1
      %s41 = scalar_select %p40, 0, %s39
      %s42 = sadd.s32 1, %s33
      %s43 = scalar_select %p40, %s42, %s33
      %p44 = scmp.ge.s32.totalorder %s43, 2
      %s45 = scalar_select %p44, 0, %s43
      %s46 = ssub.s32 %s33, %s45
      %p47 = scmp.eq.s32.totalorder %s46, 0
      %s49 = sadd.s32 %s48, 1
      %s50 = scalar_select %p47, %s48, %s49
      %p53 = pneg %p47
      %p54 = scmp.eq.s32.totalorder %s26, 1
      %p55 = por %p53, %p54
      %p56 = scmp.ne.s32.totalorder %s48, %s51
      %p57 = scmp.eq.s32.totalorder %s26, 0
      %p58 = por %p56, %p57
      %p59 = scmp.ne.s32.totalorder %s48, %s51
      %p60 = scmp.eq.s32.totalorder %s31, 1
      %p61 = por %p59, %p60
      %p62 = scmp.ne.s32.totalorder %s51, %s52
      %p63 = scmp.eq.s32.totalorder %s31, 0
      %p64 = por %p62, %p63
      %p65 = scmp.ne.s32.totalorder %s51, %s52
      %p66 = scmp.eq.s32.totalorder %s32, 1
      %p67 = por %p65, %p66
      %p69 = scmp.ne.s32.totalorder %s52, %s68
      %p70 = scmp.eq.s32.totalorder %s32, 0
      %p71 = por %p69, %p70
      %s73 = sadd.s32 %s72, 1
      %p76 = scmp.eq.s32.totalorder %s26, 1
      %p77 = scmp.ne.s32.totalorder %s72, %s74
      %p78 = scmp.eq.s32.totalorder %s26, 0
      %p79 = por %p77, %p78
      %p80 = scmp.ne.s32.totalorder %s72, %s74
      %p81 = scmp.eq.s32.totalorder %s31, 1
      %p82 = por %p80, %p81
      %p83 = scmp.ne.s32.totalorder %s74, %s75
      %p84 = scmp.eq.s32.totalorder %s31, 0
      %p85 = por %p83, %p84
      %p86 = scmp.ne.s32.totalorder %s74, %s75
      %p87 = scmp.eq.s32.totalorder %s32, 1
      %p88 = por %p86, %p87
      %p90 = scmp.ne.s32.totalorder %s75, %s89
      %p91 = scmp.eq.s32.totalorder %s32, 0
      %p92 = por %p90, %p91
      %s94 = sadd.s32 %s93, 1
      %p97 = scmp.eq.s32.totalorder %s26, 1
      %p98 = scmp.ne.s32.totalorder %s93, %s95
      %p99 = scmp.eq.s32.totalorder %s26, 0
      %p100 = por %p98, %p99
      %p101 = scmp.ne.s32.totalorder %s93, %s95
      %p102 = scmp.eq.s32.totalorder %s31, 1
      %p103 = por %p101, %p102
      %p104 = scmp.ne.s32.totalorder %s95, %s96
      %p105 = scmp.eq.s32.totalorder %s31, 0
      %p106 = por %p104, %p105
      %p107 = scmp.ne.s32.totalorder %s95, %s96
      %p108 = scmp.eq.s32.totalorder %s32, 1
      %p109 = por %p107, %p108
      %p111 = scmp.ne.s32.totalorder %s96, %s110
      %p112 = scmp.eq.s32.totalorder %s32, 0
      %p113 = por %p111, %p112
      %s115 = sadd.s32 %s114, 1
      %p118 = scmp.eq.s32.totalorder %s26, 1
      %p119 = scmp.ne.s32.totalorder %s114, %s116
      %p120 = scmp.eq.s32.totalorder %s26, 0
      %p121 = por %p119, %p120
      %p122 = scmp.ne.s32.totalorder %s114, %s116
      %p123 = scmp.eq.s32.totalorder %s31, 1
      %p124 = por %p122, %p123
      %p125 = scmp.ne.s32.totalorder %s116, %s117
      %p126 = scmp.eq.s32.totalorder %s31, 0
      %p127 = por %p125, %p126
      %p128 = scmp.ne.s32.totalorder %s116, %s117
      %p129 = scmp.eq.s32.totalorder %s32, 1
      %p130 = por %p128, %p129
      %p132 = scmp.ne.s32.totalorder %s117, %s131
      %p133 = scmp.eq.s32.totalorder %s32, 0
      %p134 = por %p132, %p133
      %s136 = sadd.s32 %s135, 1
      %p139 = scmp.eq.s32.totalorder %s26, 1
      %p140 = scmp.ne.s32.totalorder %s135, %s137
      %p141 = scmp.eq.s32.totalorder %s26, 0
      %p142 = por %p140, %p141
      %p143 = scmp.ne.s32.totalorder %s135, %s137
      %p144 = scmp.eq.s32.totalorder %s31, 1
      %p145 = por %p143, %p144
      %p146 = scmp.ne.s32.totalorder %s137, %s138
      %p147 = scmp.eq.s32.totalorder %s31, 0
      %p148 = por %p146, %p147
      %p149 = scmp.ne.s32.totalorder %s137, %s138
      %p150 = scmp.eq.s32.totalorder %s32, 1
      %p151 = por %p149, %p150
      %p153 = scmp.ne.s32.totalorder %s138, %s152
      %p154 = scmp.eq.s32.totalorder %s32, 0
      %p155 = por %p153, %p154
      %s157 = sadd.s32 %s156, 1
      %p160 = scmp.eq.s32.totalorder %s26, 1
      %p161 = scmp.ne.s32.totalorder %s156, %s158
      %p162 = scmp.eq.s32.totalorder %s26, 0
      %p163 = por %p161, %p162
      %p164 = scmp.ne.s32.totalorder %s156, %s158
      %p165 = scmp.eq.s32.totalorder %s31, 1
      %p166 = por %p164, %p165
      %p167 = scmp.ne.s32.totalorder %s158, %s159
      %p168 = scmp.eq.s32.totalorder %s31, 0
      %p169 = por %p167, %p168
      %p170 = scmp.ne.s32.totalorder %s158, %s159
      %p171 = scmp.eq.s32.totalorder %s32, 1
      %p172 = por %p170, %p171
      %p174 = scmp.ne.s32.totalorder %s159, %s173
      %p175 = scmp.eq.s32.totalorder %s32, 0
      %p176 = por %p174, %p175
      %s178 = sadd.s32 %s177, 1
      %p181 = scmp.eq.s32.totalorder %s26, 1
      %p182 = scmp.ne.s32.totalorder %s177, %s179
      %p183 = scmp.eq.s32.totalorder %s26, 0
      %p184 = por %p182, %p183
      %p185 = scmp.ne.s32.totalorder %s177, %s179
      %p186 = scmp.eq.s32.totalorder %s31, 1
      %p187 = por %p185, %p186
      %p188 = scmp.ne.s32.totalorder %s179, %s180
      %p189 = scmp.eq.s32.totalorder %s31, 0
      %p190 = por %p188, %p189
      %p191 = scmp.ne.s32.totalorder %s179, %s180
      %p192 = scmp.eq.s32.totalorder %s32, 1
      %p193 = por %p191, %p192
      %p195 = scmp.ne.s32.totalorder %s180, %s194
      %p196 = scmp.eq.s32.totalorder %s32, 0
      %p197 = por %p195, %p196
      %s199 = sadd.s32 %s198, 1
      %p202 = scmp.eq.s32.totalorder %s26, 1
      %p203 = scmp.ne.s32.totalorder %s198, %s200
      %p204 = scmp.eq.s32.totalorder %s26, 0
      %p205 = por %p203, %p204
      %p206 = scmp.ne.s32.totalorder %s198, %s200
      %p207 = scmp.eq.s32.totalorder %s31, 1
      %p208 = por %p206, %p207
      %p209 = scmp.ne.s32.totalorder %s200, %s201
      %p210 = scmp.eq.s32.totalorder %s31, 0
      %p211 = por %p209, %p210
      %p212 = scmp.ne.s32.totalorder %s200, %s201
      %p213 = scmp.eq.s32.totalorder %s32, 1
      %p214 = por %p212, %p213
      %p216 = scmp.ne.s32.totalorder %s201, %s215
      %p217 = scmp.eq.s32.totalorder %s32, 0
      %p218 = por %p216, %p217
      %s220 = sadd.s32 %s219, 1
      %p223 = scmp.eq.s32.totalorder %s26, 1
      %p224 = scmp.ne.s32.totalorder %s219, %s221
      %p225 = scmp.eq.s32.totalorder %s26, 0
      %p226 = por %p224, %p225
      %p227 = scmp.ne.s32.totalorder %s219, %s221
      %p228 = scmp.eq.s32.totalorder %s31, 1
      %p229 = por %p227, %p228
      %p230 = scmp.ne.s32.totalorder %s221, %s222
      %p231 = scmp.eq.s32.totalorder %s31, 0
      %p232 = por %p230, %p231
      %p233 = scmp.ne.s32.totalorder %s221, %s222
      %p234 = scmp.eq.s32.totalorder %s32, 1
      %p235 = por %p233, %p234
      %p237 = scmp.ne.s32.totalorder %s222, %s236
      %p238 = scmp.eq.s32.totalorder %s32, 0
      %p239 = por %p237, %p238
      %s241 = sadd.s32 %s240, 1
      %p244 = scmp.eq.s32.totalorder %s26, 1
      %p245 = scmp.ne.s32.totalorder %s240, %s242
      %p246 = scmp.eq.s32.totalorder %s26, 0
      %p247 = por %p245, %p246
      %p248 = scmp.ne.s32.totalorder %s240, %s242
      %p249 = scmp.eq.s32.totalorder %s31, 1
      %p250 = por %p248, %p249
      %p251 = scmp.ne.s32.totalorder %s242, %s243
      %p252 = scmp.eq.s32.totalorder %s31, 0
      %p253 = por %p251, %p252
      %p254 = scmp.ne.s32.totalorder %s242, %s243
      %p255 = scmp.eq.s32.totalorder %s32, 1
      %p256 = por %p254, %p255
      %p258 = scmp.ne.s32.totalorder %s243, %s257
      %p259 = scmp.eq.s32.totalorder %s32, 0
      %p260 = por %p258, %p259
      %s262 = sadd.s32 %s261, 1
      %p265 = scmp.eq.s32.totalorder %s26, 1
      %p266 = scmp.ne.s32.totalorder %s261, %s263
      %p267 = scmp.eq.s32.totalorder %s26, 0
      %p268 = por %p266, %p267
      %p269 = scmp.ne.s32.totalorder %s261, %s263
      %p270 = scmp.eq.s32.totalorder %s31, 1
      %p271 = por %p269, %p270
      %p272 = scmp.ne.s32.totalorder %s263, %s264
      %p273 = scmp.eq.s32.totalorder %s31, 0
      %p274 = por %p272, %p273
      %p275 = scmp.ne.s32.totalorder %s263, %s264
      %p276 = scmp.eq.s32.totalorder %s32, 1
      %p277 = por %p275, %p276
      %p279 = scmp.ne.s32.totalorder %s264, %s278
      %p280 = scmp.eq.s32.totalorder %s32, 0
      %p281 = por %p279, %p280
      %s283 = sadd.s32 %s282, 1
      %p286 = scmp.eq.s32.totalorder %s26, 1
      %p287 = scmp.ne.s32.totalorder %s282, %s284
      %p288 = scmp.eq.s32.totalorder %s26, 0
      %p289 = por %p287, %p288
      %p290 = scmp.ne.s32.totalorder %s282, %s284
      %p291 = scmp.eq.s32.totalorder %s31, 1
      %p292 = por %p290, %p291
      %p293 = scmp.ne.s32.totalorder %s284, %s285
      %p294 = scmp.eq.s32.totalorder %s31, 0
      %p295 = por %p293, %p294
      %p296 = scmp.ne.s32.totalorder %s284, %s285
      %p297 = scmp.eq.s32.totalorder %s32, 1
      %p298 = por %p296, %p297
      %p300 = scmp.ne.s32.totalorder %s285, %s299
      %p301 = scmp.eq.s32.totalorder %s32, 0
      %p302 = por %p300, %p301
      %s304 = sadd.s32 %s303, 1
      %p307 = scmp.eq.s32.totalorder %s26, 1
      %p308 = scmp.ne.s32.totalorder %s303, %s305
      %p309 = scmp.eq.s32.totalorder %s26, 0
      %p310 = por %p308, %p309
      %p311 = scmp.ne.s32.totalorder %s303, %s305
      %p312 = scmp.eq.s32.totalorder %s31, 1
      %p313 = por %p311, %p312
      %p314 = scmp.ne.s32.totalorder %s305, %s306
      %p315 = scmp.eq.s32.totalorder %s31, 0
      %p316 = por %p314, %p315
      %p317 = scmp.ne.s32.totalorder %s305, %s306
      %p318 = scmp.eq.s32.totalorder %s32, 1
      %p319 = por %p317, %p318
      %p321 = scmp.ne.s32.totalorder %s306, %s320
      %p322 = scmp.eq.s32.totalorder %s32, 0
      %p323 = por %p321, %p322
      %s325 = sadd.s32 %s324, 1
      %p328 = scmp.eq.s32.totalorder %s26, 1
      %p329 = scmp.ne.s32.totalorder %s324, %s326
      %p330 = scmp.eq.s32.totalorder %s26, 0
      %p331 = por %p329, %p330
      %p332 = scmp.ne.s32.totalorder %s324, %s326
      %p333 = scmp.eq.s32.totalorder %s31, 1
      %p334 = por %p332, %p333
      %p335 = scmp.ne.s32.totalorder %s326, %s327
      %p336 = scmp.eq.s32.totalorder %s31, 0
      %p337 = por %p335, %p336
      %p338 = scmp.ne.s32.totalorder %s326, %s327
      %p339 = scmp.eq.s32.totalorder %s32, 1
      %p340 = por %p338, %p339
      %p342 = scmp.ne.s32.totalorder %s327, %s341
      %p343 = scmp.eq.s32.totalorder %s32, 0
      %p344 = por %p342, %p343
      %s346 = sadd.s32 %s345, 1
      %p349 = scmp.eq.s32.totalorder %s26, 1
      %p350 = scmp.ne.s32.totalorder %s345, %s347
      %p351 = scmp.eq.s32.totalorder %s26, 0
      %p352 = por %p350, %p351
      %p353 = scmp.ne.s32.totalorder %s345, %s347
      %p354 = scmp.eq.s32.totalorder %s31, 1
      %p355 = por %p353, %p354
      %p356 = scmp.ne.s32.totalorder %s347, %s348
      %p357 = scmp.eq.s32.totalorder %s31, 0
      %p358 = por %p356, %p357
      %p359 = scmp.ne.s32.totalorder %s347, %s348
      %p360 = scmp.eq.s32.totalorder %s32, 1
      %p361 = por %p359, %p360
      %p363 = scmp.ne.s32.totalorder %s348, %s362
      %p364 = scmp.eq.s32.totalorder %s32, 0
      %p365 = por %p363, %p364
      %s367 = sadd.s32 %s366, 1
      %p370 = scmp.eq.s32.totalorder %s26, 1
      %p371 = scmp.ne.s32.totalorder %s366, %s368
      %p372 = scmp.eq.s32.totalorder %s26, 0
      %p373 = por %p371, %p372
      %p374 = scmp.ne.s32.totalorder %s366, %s368
      %p375 = scmp.eq.s32.totalorder %s31, 1
      %p376 = por %p374, %p375
      %p377 = scmp.ne.s32.totalorder %s368, %s369
      %p378 = scmp.eq.s32.totalorder %s31, 0
      %p379 = por %p377, %p378
      %p380 = scmp.ne.s32.totalorder %s368, %s369
      %p381 = scmp.eq.s32.totalorder %s32, 1
      %p382 = por %p380, %p381
      %p384 = scmp.ne.s32.totalorder %s369, %s383
      %p385 = scmp.eq.s32.totalorder %s32, 0
      %p386 = por %p384, %p385
      %s388 = sadd.s32 %s387, 1
      %p391 = scmp.eq.s32.totalorder %s26, 1
      %p392 = scmp.ne.s32.totalorder %s387, %s389
      %p393 = scmp.eq.s32.totalorder %s26, 0
      %p394 = por %p392, %p393
      %p395 = scmp.ne.s32.totalorder %s387, %s389
      %p396 = scmp.eq.s32.totalorder %s31, 1
      %p397 = por %p395, %p396
      %p398 = scmp.ne.s32.totalorder %s389, %s390
      %p399 = scmp.eq.s32.totalorder %s31, 0
      %p400 = por %p398, %p399
      %p401 = scmp.ne.s32.totalorder %s389, %s390
      %p402 = scmp.eq.s32.totalorder %s32, 1
      %p403 = por %p401, %p402
      %p405 = scmp.ne.s32.totalorder %s390, %s404
      %p406 = scmp.eq.s32.totalorder %s32, 0
      %p407 = por %p405, %p406
      %s408 = ssub.s32 %s33, %s45
      %s409 = ssub.s32 %s34, %s41
      %s410 = sor.u32 %s408, %s409
      %p411 = scmp.eq.s32.totalorder %s410, 0
      %s413 = sadd.s32 %s412, 1
      %s414 = scalar_select %p411, %s412, %s413
      %p417 = pneg %p411
      %p418 = scmp.eq.s32.totalorder %s26, 1
      %p419 = por %p417, %p418
      %p420 = scmp.ne.s32.totalorder %s412, %s415
      %p421 = scmp.eq.s32.totalorder %s26, 0
      %p422 = por %p420, %p421
      %p423 = scmp.ne.s32.totalorder %s412, %s415
      %p424 = scmp.eq.s32.totalorder %s31, 1
      %p425 = por %p423, %p424
      %p426 = scmp.ne.s32.totalorder %s415, %s416
      %p427 = scmp.eq.s32.totalorder %s31, 0
      %p428 = por %p426, %p427
      %p429 = scmp.ne.s32.totalorder %s415, %s416
      %p430 = scmp.eq.s32.totalorder %s32, 1
      %p431 = por %p429, %p430
      %p433 = scmp.ne.s32.totalorder %s416, %s432
      %p434 = scmp.eq.s32.totalorder %s32, 0
      %p435 = por %p433, %p434
      %p436 = scmp.le.s32.totalorder 1, %s26
      %p437 = scmp.lt.s32.totalorder %s26, 3
      %p438 = pnand %p436, %p437
      %p439 = pneg %p438
      // Predicated region
      $region9: #{tpu_custom_call.1} parent=5 // pred_check
        _
      $region10: #{tpu_custom_call.1} parent=5 // pred_check_branch
        %441 = sbr.rel (%p438) target = $region12
      $region11: #{tpu_custom_call.1} parent=5 // pred_region
        %s442 = ssub.s32 %s26, 1
        // Predicated region
        $region13: #{tpu_custom_call.1} parent=11 // pred_check
          %p443 = pneg %p85
        $region14: #{tpu_custom_call.1} parent=11 // pred_check_branch
          %445 = sbr.rel (%p443) target = $region16
        $region15: #{tpu_custom_call.1} parent=11 // pred_region
          _
        $region16: #{tpu_custom_call.1} parent=11 // pred_fallthru
          _
        // Predicated region
        $region17: #{tpu_custom_call.1} parent=11 // pred_check
          %p446 = pneg %p106
        $region18: #{tpu_custom_call.1} parent=11 // pred_check_branch
          %448 = sbr.rel (%p446) target = $region20
        $region19: #{tpu_custom_call.1} parent=11 // pred_region
          _
        $region20: #{tpu_custom_call.1} parent=11 // pred_fallthru
          _
        // Predicated region
        $region21: #{tpu_custom_call.1} parent=11 // pred_check
          %p449 = pneg %p127
        $region22: #{tpu_custom_call.1} parent=11 // pred_check_branch
          %451 = sbr.rel (%p449) target = $region24
        $region23: #{tpu_custom_call.1} parent=11 // pred_region
          _
        $region24: #{tpu_custom_call.1} parent=11 // pred_fallthru
          _
        // Predicated region
        $region25: #{tpu_custom_call.1} parent=11 // pred_check
          %p452 = pneg %p148
        $region26: #{tpu_custom_call.1} parent=11 // pred_check_branch
          %454 = sbr.rel (%p452) target = $region28
        $region27: #{tpu_custom_call.1} parent=11 // pred_region
          _
        $region28: #{tpu_custom_call.1} parent=11 // pred_fallthru
          _
        // Predicated region
        $region29: #{tpu_custom_call.1} parent=11 // pred_check
          %p455 = pneg %p169
        $region30: #{tpu_custom_call.1} parent=11 // pred_check_branch
          %457 = sbr.rel (%p455) target = $region32
        $region31: #{tpu_custom_call.1} parent=11 // pred_region
          _
        $region32: #{tpu_custom_call.1} parent=11 // pred_fallthru
          _
        // Predicated region
        $region33: #{tpu_custom_call.1} parent=11 // pred_check
          %p458 = pneg %p190
        $region34: #{tpu_custom_call.1} parent=11 // pred_check_branch
          %460 = sbr.rel (%p458) target = $region36
        $region35: #{tpu_custom_call.1} parent=11 // pred_region
          _
        $region36: #{tpu_custom_call.1} parent=11 // pred_fallthru
          _
        // Predicated region
        $region37: #{tpu_custom_call.1} parent=11 // pred_check
          %p461 = pneg %p211
        $region38: #{tpu_custom_call.1} parent=11 // pred_check_branch
          %463 = sbr.rel (%p461) target = $region40
        $region39: #{tpu_custom_call.1} parent=11 // pred_region
          _
        $region40: #{tpu_custom_call.1} parent=11 // pred_fallthru
          _
        // Predicated region
        $region41: #{tpu_custom_call.1} parent=11 // pred_check
          %p464 = pneg %p232
        $region42: #{tpu_custom_call.1} parent=11 // pred_check_branch
          %466 = sbr.rel (%p464) target = $region44
        $region43: #{tpu_custom_call.1} parent=11 // pred_region
          _
        $region44: #{tpu_custom_call.1} parent=11 // pred_fallthru
          _
        // Predicated region
        $region45: #{tpu_custom_call.1} parent=11 // pred_check
          %p467 = pneg %p253
        $region46: #{tpu_custom_call.1} parent=11 // pred_check_branch
          %469 = sbr.rel (%p467) target = $region48
        $region47: #{tpu_custom_call.1} parent=11 // pred_region
          _
        $region48: #{tpu_custom_call.1} parent=11 // pred_fallthru
          _
        // Predicated region
        $region49: #{tpu_custom_call.1} parent=11 // pred_check
          %p470 = pneg %p274
        $region50: #{tpu_custom_call.1} parent=11 // pred_check_branch
          %472 = sbr.rel (%p470) target = $region52
        $region51: #{tpu_custom_call.1} parent=11 // pred_region
          _
        $region52: #{tpu_custom_call.1} parent=11 // pred_fallthru
          _
        // Predicated region
        $region53: #{tpu_custom_call.1} parent=11 // pred_check
          %p473 = pneg %p295
        $region54: #{tpu_custom_call.1} parent=11 // pred_check_branch
          %475 = sbr.rel (%p473) target = $region56
        $region55: #{tpu_custom_call.1} parent=11 // pred_region
          _
        $region56: #{tpu_custom_call.1} parent=11 // pred_fallthru
          _
        // Predicated region
        $region57: #{tpu_custom_call.1} parent=11 // pred_check
          %p476 = pneg %p316
        $region58: #{tpu_custom_call.1} parent=11 // pred_check_branch
          %478 = sbr.rel (%p476) target = $region60
        $region59: #{tpu_custom_call.1} parent=11 // pred_region
          _
        $region60: #{tpu_custom_call.1} parent=11 // pred_fallthru
          _
        // Predicated region
        $region61: #{tpu_custom_call.1} parent=11 // pred_check
          %p479 = pneg %p337
        $region62: #{tpu_custom_call.1} parent=11 // pred_check_branch
          %481 = sbr.rel (%p479) target = $region64
        $region63: #{tpu_custom_call.1} parent=11 // pred_region
          _
        $region64: #{tpu_custom_call.1} parent=11 // pred_fallthru
          _
        // Predicated region
        $region65: #{tpu_custom_call.1} parent=11 // pred_check
          %p482 = pneg %p358
        $region66: #{tpu_custom_call.1} parent=11 // pred_check_branch
          %484 = sbr.rel (%p482) target = $region68
        $region67: #{tpu_custom_call.1} parent=11 // pred_region
          _
        $region68: #{tpu_custom_call.1} parent=11 // pred_fallthru
          _
        // Predicated region
        $region69: #{tpu_custom_call.1} parent=11 // pred_check
          %p485 = pneg %p379
        $region70: #{tpu_custom_call.1} parent=11 // pred_check_branch
          %487 = sbr.rel (%p485) target = $region72
        $region71: #{tpu_custom_call.1} parent=11 // pred_region
          _
        $region72: #{tpu_custom_call.1} parent=11 // pred_fallthru
          _
        // Predicated region
        $region73: #{tpu_custom_call.1} parent=11 // pred_check
          %p488 = pneg %p400
        $region74: #{tpu_custom_call.1} parent=11 // pred_check_branch
          %490 = sbr.rel (%p488) target = $region76
        $region75: #{tpu_custom_call.1} parent=11 // pred_region
          _
        $region76: #{tpu_custom_call.1} parent=11 // pred_fallthru
          _
      $region12: #{tpu_custom_call.1} parent=5 // pred_fallthru
        _
      %p491 = scmp.lt.s32.totalorder %s26, 2
      // Predicated region
      $region77: #{tpu_custom_call.1} parent=5 // pred_check
        %p492 = pneg %p491
      $region78: #{tpu_custom_call.1} parent=5 // pred_check_branch
        %494 = sbr.rel (%p492) target = $region80
      $region79: #{tpu_custom_call.1} parent=5 // pred_region
        // Predicated region
        $region81: #{tpu_custom_call.1} parent=79 // pred_check
          %p495 = pneg %p58
        $region82: #{tpu_custom_call.1} parent=79 // pred_check_branch
          %497 = sbr.rel (%p495) target = $region84
        $region83: #{tpu_custom_call.1} parent=79 // pred_region
          %p498 = scmp.lt.s32.totalorder %s33, 1
          %s499 = scalar_select %p498, %s33, 1
          %s500 = smul.addr %s499, 8
          %s501 = scalar_lea.vmem %s0, %s500
        $region84: #{tpu_custom_call.1} parent=79 // pred_fallthru
          _
      $region80: #{tpu_custom_call.1} parent=5 // pred_fallthru
        _
      %p502 = scmp.le.s32.totalorder 1, %s26
      %p503 = scmp.lt.s32.totalorder %s26, 3
      %p504 = pnand %p502, %p503
      %p505 = pneg %p504
      // Predicated region
      $region85: #{tpu_custom_call.1} parent=5 // pred_check
        _
      $region86: #{tpu_custom_call.1} parent=5 // pred_check_branch
        %507 = sbr.rel (%p504) target = $region88
      $region87: #{tpu_custom_call.1} parent=5 // pred_region
        %s508 = ssub.s32 %s26, 1
        %p509 = scmp.lt.s32.totalorder %s35, 1
        %s510 = scalar_select %p509, %s35, 1
        %s511 = smul.addr %s510, 8
        %s512 = scalar_lea.vmem %s0, %s511
        %p513 = pneg %p64
        %p514 = pneg %p61
        %p515 = pneg %p85
        %p516 = pneg %p82
        %p517 = pneg %p106
        %p518 = pneg %p103
        %p519 = pneg %p127
        %p520 = pneg %p124
        %p521 = pneg %p148
        %p522 = pneg %p145
        %p523 = pneg %p169
        %p524 = pneg %p166
        %p525 = pneg %p190
        %p526 = pneg %p187
        %p527 = pneg %p211
        %p528 = pneg %p208
        %p529 = pneg %p232
        %p530 = pneg %p229
        %p531 = pneg %p253
        %p532 = pneg %p250
        %p533 = pneg %p274
        %p534 = pneg %p271
        %p535 = pneg %p295
        %p536 = pneg %p292
        %p537 = pneg %p316
        %p538 = pneg %p313
        %p539 = pneg %p337
        %p540 = pneg %p334
        %p541 = pneg %p358
        %p542 = pneg %p355
        %p543 = pneg %p379
        %p544 = pneg %p376
        %p545 = pneg %p400
        %p546 = pneg %p397
        %p547 = pneg %p428
        %p548 = pneg %p425
        %s549 = sand.u32 %s415, 1
        %s550 = scalar_lea.sflag [#allocation5], %s549
        %s551 = sand.u32 %s415, 1
        %s552 = smul.addr %s551, 8
        %s553 = scalar_lea.vmem [#allocation4], %s552
        %p554 = scmp.lt.s32.totalorder %s35, 1
        %s555 = scalar_select %p554, %s35, 1
        %s556 = smul.addr %s555, 8
        %s557 = scalar_lea.vmem %s0, %s556
        %p559 = scmp.eq.s32.totalorder %s36, 0
        // Predicated region
        $region89: #{tpu_custom_call.1} parent=87 // pred_check
          %p560 = pneg %p559
        $region90: #{tpu_custom_call.1} parent=87 // pred_check_branch
          %562 = sbr.rel (%p560) target = $region92
        $region91: #{tpu_custom_call.1} parent=87 // pred_region
          %v563 = vld [vmem:[%s557] sm:$0xff]
          %v564 = vpack.c.bf16 %v563, %v563
          %v565 = vld [vmem:[%s3] sm:$0xf]
          %v566 = vld [vmem:[%s3 + $0x4] sm:$0xf]
          %v567 = vld [vmem:[%s3 + $0x8] sm:$0xf]
          %v568 = vld [vmem:[%s3 + $0xc] sm:$0xf]
          %v569 = vld [vmem:[%s3 + $0x10] sm:$0xf]
          %v570 = vld [vmem:[%s3 + $0x14] sm:$0xf]
          %v571 = vld [vmem:[%s3 + $0x18] sm:$0xf]
          %v572 = vld [vmem:[%s3 + $0x1c] sm:$0xf]
          %v573 = vld [vmem:[%s3 + $0x20] sm:$0xf]
          %v574 = vld [vmem:[%s3 + $0x24] sm:$0xf]
          %v575 = vld [vmem:[%s3 + $0x28] sm:$0xf]
          %v576 = vld [vmem:[%s3 + $0x2c] sm:$0xf]
          %v577 = vld [vmem:[%s3 + $0x30] sm:$0xf]
          %v578 = vld [vmem:[%s3 + $0x34] sm:$0xf]
          %v579 = vld [vmem:[%s3 + $0x38] sm:$0xf]
          %v580 = vld [vmem:[%s3 + $0x3c] sm:$0xf]
          %v581 = vld [vmem:[%s4] sm:$0x1]
          %v583 = vperm.slane %v581, 0
          %v601 = vunpack.c.l.b16 %v565
          %v602 = vunpack.c.l.b16 %v566
          %v603 = vunpack.c.l.b16 %v567
          %v604 = vunpack.c.l.b16 %v568
          %v605 = vunpack.c.l.b16 %v569
          %v606 = vunpack.c.l.b16 %v570
          %v607 = vunpack.c.l.b16 %v571
          %v608 = vunpack.c.l.b16 %v572
          %v609 = vunpack.c.l.b16 %v573
          %v610 = vunpack.c.l.b16 %v574
          %v611 = vunpack.c.l.b16 %v575
          %v612 = vunpack.c.l.b16 %v576
          %v613 = vunpack.c.l.b16 %v577
          %v614 = vunpack.c.l.b16 %v578
          %v615 = vunpack.c.l.b16 %v579
          %v616 = vunpack.c.l.b16 %v580
          %v617 = vpack.c.b16 %v602, %v601
          %v618 = vpack.c.b16 %v604, %v603
          %v619 = vpack.c.b16 %v606, %v605
          %v620 = vpack.c.b16 %v608, %v607
          %v621 = vpack.c.b16 %v610, %v609
          %v622 = vpack.c.b16 %v612, %v611
          %v623 = vpack.c.b16 %v614, %v613
          %v624 = vpack.c.b16 %v616, %v615
          %633 = vmatpush.bf16.msra.mxu0 %v624
          %634 = vmatpush.bf16.msra.mxu0 %v623
          %635 = vmatpush.bf16.msra.mxu0 %v622
          %636 = vmatpush.bf16.msra.mxu0 %v621
          %637 = vmatpush.bf16.msra.mxu0 %v620
          %638 = vmatpush.bf16.msra.mxu0 %v619
          %639 = vmatpush.bf16.msra.mxu0 %v618
          %640 = vmatpush.bf16.msra.mxu0 %v617
          %641 = vmatmul.bf16.gmra.mxu0 %v564
          %v642 = vpop.f32.mrf.mxu0
          %v643 = vadd.f32 %v583, %v642
          %v644 = vpop.f32.mrf.mxu0
          %645 = vdwg.mxu0
          %v646 = vld [vmem:[%s5] sm:$0xf]
          %v647 = vld [vmem:[%s5 + $0x4] sm:$0xf]
          %v648 = vld [vmem:[%s5 + $0x8] sm:$0xf]
          %v649 = vld [vmem:[%s5 + $0xc] sm:$0xf]
          %v650 = vld [vmem:[%s5 + $0x10] sm:$0xf]
          %v651 = vld [vmem:[%s5 + $0x14] sm:$0xf]
          %v652 = vld [vmem:[%s5 + $0x18] sm:$0xf]
          %v653 = vld [vmem:[%s5 + $0x1c] sm:$0xf]
          %v654 = vld [vmem:[%s5 + $0x20] sm:$0xf]
          %v655 = vld [vmem:[%s5 + $0x24] sm:$0xf]
          %v656 = vld [vmem:[%s5 + $0x28] sm:$0xf]
          %v657 = vld [vmem:[%s5 + $0x2c] sm:$0xf]
          %v658 = vld [vmem:[%s5 + $0x30] sm:$0xf]
          %v659 = vld [vmem:[%s5 + $0x34] sm:$0xf]
          %v660 = vld [vmem:[%s5 + $0x38] sm:$0xf]
          %v661 = vld [vmem:[%s5 + $0x3c] sm:$0xf]
          %v662 = vld [vmem:[%s6] sm:$0x1]
          %v664 = vperm.slane %v662, 0
          %v682 = vunpack.c.l.b16 %v646
          %v683 = vunpack.c.l.b16 %v647
          %v684 = vunpack.c.l.b16 %v648
          %v685 = vunpack.c.l.b16 %v649
          %v686 = vunpack.c.l.b16 %v650
          %v687 = vunpack.c.l.b16 %v651
          %v688 = vunpack.c.l.b16 %v652
          %v689 = vunpack.c.l.b16 %v653
          %v690 = vunpack.c.l.b16 %v654
          %v691 = vunpack.c.l.b16 %v655
          %v692 = vunpack.c.l.b16 %v656
          %v693 = vunpack.c.l.b16 %v657
          %v694 = vunpack.c.l.b16 %v658
          %v695 = vunpack.c.l.b16 %v659
          %v696 = vunpack.c.l.b16 %v660
          %v697 = vunpack.c.l.b16 %v661
          %v698 = vpack.c.b16 %v683, %v682
          %v699 = vpack.c.b16 %v685, %v684
          %v700 = vpack.c.b16 %v687, %v686
          %v701 = vpack.c.b16 %v689, %v688
          %v702 = vpack.c.b16 %v691, %v690
          %v703 = vpack.c.b16 %v693, %v692
          %v704 = vpack.c.b16 %v695, %v694
          %v705 = vpack.c.b16 %v697, %v696
          %714 = vmatpush.bf16.msra.mxu0 %v705
          %715 = vmatpush.bf16.msra.mxu0 %v704
          %716 = vmatpush.bf16.msra.mxu0 %v703
          %717 = vmatpush.bf16.msra.mxu0 %v702
          %718 = vmatpush.bf16.msra.mxu0 %v701
          %719 = vmatpush.bf16.msra.mxu0 %v700
          %720 = vmatpush.bf16.msra.mxu0 %v699
          %721 = vmatpush.bf16.msra.mxu0 %v698
          %722 = vmatmul.bf16.gmra.mxu0 %v564
          %v723 = vpop.f32.mrf.mxu0
          %v724 = vadd.f32 %v664, %v723
          %v725 = vpop.f32.mrf.mxu0
          %726 = vdwg.mxu0
          %v727 = vpack.c.bf16 %v643, %v643
          %vm728 = vcmask 60416
          %729 = vst.msk [vmem:[#allocation2] sm:$0xf] %vm728, %v727
          %v730 = vpack.c.bf16 %v724, %v724
          %731 = vst.msk [vmem:[#allocation3] sm:$0xf] %vm728, %v730
          %s732 = scalar_lea.vmem %s3, 64
          %v733 = vld [vmem:[%s732] sm:$0xf]
          %v734 = vld [vmem:[%s732 + $0x4] sm:$0xf]
          %v735 = vld [vmem:[%s732 + $0x8] sm:$0xf]
          %v736 = vld [vmem:[%s732 + $0xc] sm:$0xf]
          %v737 = vld [vmem:[%s732 + $0x10] sm:$0xf]
          %v738 = vld [vmem:[%s732 + $0x14] sm:$0xf]
          %v739 = vld [vmem:[%s732 + $0x18] sm:$0xf]
          %v740 = vld [vmem:[%s732 + $0x1c] sm:$0xf]
          %v741 = vld [vmem:[%s732 + $0x20] sm:$0xf]
          %v742 = vld [vmem:[%s732 + $0x24] sm:$0xf]
          %v743 = vld [vmem:[%s732 + $0x28] sm:$0xf]
          %v744 = vld [vmem:[%s732 + $0x2c] sm:$0xf]
          %v745 = vld [vmem:[%s732 + $0x30] sm:$0xf]
          %v746 = vld [vmem:[%s732 + $0x34] sm:$0xf]
          %v747 = vld [vmem:[%s732 + $0x38] sm:$0xf]
          %v748 = vld [vmem:[%s732 + $0x3c] sm:$0xf]
          %s749 = scalar_lea.vmem %s4, 1
          %v750 = vld [vmem:[%s749] sm:$0x1]
          %v752 = vperm.slane %v750, 0
          %v770 = vunpack.c.l.b16 %v733
          %v771 = vunpack.c.l.b16 %v734
          %v772 = vunpack.c.l.b16 %v735
          %v773 = vunpack.c.l.b16 %v736
          %v774 = vunpack.c.l.b16 %v737
          %v775 = vunpack.c.l.b16 %v738
          %v776 = vunpack.c.l.b16 %v739
          %v777 = vunpack.c.l.b16 %v740
          %v778 = vunpack.c.l.b16 %v741
          %v779 = vunpack.c.l.b16 %v742
          %v780 = vunpack.c.l.b16 %v743
          %v781 = vunpack.c.l.b16 %v744
          %v782 = vunpack.c.l.b16 %v745
          %v783 = vunpack.c.l.b16 %v746
          %v784 = vunpack.c.l.b16 %v747
          %v785 = vunpack.c.l.b16 %v748
          %v786 = vpack.c.b16 %v771, %v770
          %v787 = vpack.c.b16 %v773, %v772
          %v788 = vpack.c.b16 %v775, %v774
          %v789 = vpack.c.b16 %v777, %v776
          %v790 = vpack.c.b16 %v779, %v778
          %v791 = vpack.c.b16 %v781, %v780
          %v792 = vpack.c.b16 %v783, %v782
          %v793 = vpack.c.b16 %v785, %v784
          %802 = vmatpush.bf16.msra.mxu0 %v793
          %803 = vmatpush.bf16.msra.mxu0 %v792
          %804 = vmatpush.bf16.msra.mxu0 %v791
          %805 = vmatpush.bf16.msra.mxu0 %v790
          %806 = vmatpush.bf16.msra.mxu0 %v789
          %807 = vmatpush.bf16.msra.mxu0 %v788
          %808 = vmatpush.bf16.msra.mxu0 %v787
          %809 = vmatpush.bf16.msra.mxu0 %v786
          %810 = vmatmul.bf16.gmra.mxu0 %v564
          %v811 = vpop.f32.mrf.mxu0
          %v812 = vadd.f32 %v752, %v811
          %v813 = vpop.f32.mrf.mxu0
          %814 = vdwg.mxu0
          %s815 = scalar_lea.vmem %s5, 64
          %v816 = vld [vmem:[%s815] sm:$0xf]
          %v817 = vld [vmem:[%s815 + $0x4] sm:$0xf]
          %v818 = vld [vmem:[%s815 + $0x8] sm:$0xf]
          %v819 = vld [vmem:[%s815 + $0xc] sm:$0xf]
          %v820 = vld [vmem:[%s815 + $0x10] sm:$0xf]
          %v821 = vld [vmem:[%s815 + $0x14] sm:$0xf]
          %v822 = vld [vmem:[%s815 + $0x18] sm:$0xf]
          %v823 = vld [vmem:[%s815 + $0x1c] sm:$0xf]
          %v824 = vld [vmem:[%s815 + $0x20] sm:$0xf]
          %v825 = vld [vmem:[%s815 + $0x24] sm:$0xf]
          %v826 = vld [vmem:[%s815 + $0x28] sm:$0xf]
          %v827 = vld [vmem:[%s815 + $0x2c] sm:$0xf]
          %v828 = vld [vmem:[%s815 + $0x30] sm:$0xf]
          %v829 = vld [vmem:[%s815 + $0x34] sm:$0xf]
          %v830 = vld [vmem:[%s815 + $0x38] sm:$0xf]
          %v831 = vld [vmem:[%s815 + $0x3c] sm:$0xf]
          %s832 = scalar_lea.vmem %s6, 1
          %v833 = vld [vmem:[%s832] sm:$0x1]
          %v835 = vperm.slane %v833, 0
          %v853 = vunpack.c.l.b16 %v816
          %v854 = vunpack.c.l.b16 %v817
          %v855 = vunpack.c.l.b16 %v818
          %v856 = vunpack.c.l.b16 %v819
          %v857 = vunpack.c.l.b16 %v820
          %v858 = vunpack.c.l.b16 %v821
          %v859 = vunpack.c.l.b16 %v822
          %v860 = vunpack.c.l.b16 %v823
          %v861 = vunpack.c.l.b16 %v824
          %v862 = vunpack.c.l.b16 %v825
          %v863 = vunpack.c.l.b16 %v826
          %v864 = vunpack.c.l.b16 %v827
          %v865 = vunpack.c.l.b16 %v828
          %v866 = vunpack.c.l.b16 %v829
          %v867 = vunpack.c.l.b16 %v830
          %v868 = vunpack.c.l.b16 %v831
          %v869 = vpack.c.b16 %v854, %v853
          %v870 = vpack.c.b16 %v856, %v855
          %v871 = vpack.c.b16 %v858, %v857
          %v872 = vpack.c.b16 %v860, %v859
          %v873 = vpack.c.b16 %v862, %v861
          %v874 = vpack.c.b16 %v864, %v863
          %v875 = vpack.c.b16 %v866, %v865
          %v876 = vpack.c.b16 %v868, %v867
          %885 = vmatpush.bf16.msra.mxu0 %v876
          %886 = vmatpush.bf16.msra.mxu0 %v875
          %887 = vmatpush.bf16.msra.mxu0 %v874
          %888 = vmatpush.bf16.msra.mxu0 %v873
          %889 = vmatpush.bf16.msra.mxu0 %v872
          %890 = vmatpush.bf16.msra.mxu0 %v871
          %891 = vmatpush.bf16.msra.mxu0 %v870
          %892 = vmatpush.bf16.msra.mxu0 %v869
          %893 = vmatmul.bf16.gmra.mxu0 %v564
          %v894 = vpop.f32.mrf.mxu0
          %v895 = vadd.f32 %v835, %v894
          %v896 = vpop.f32.mrf.mxu0
          %897 = vdwg.mxu0
          %v898 = vpack.c.bf16 %v812, %v812
          %s899 = scalar_lea.vmem [#allocation2], 4
          %900 = vst.msk [vmem:[%s899] sm:$0xf] %vm728, %v898
          %v901 = vpack.c.bf16 %v895, %v895
          %s902 = scalar_lea.vmem [#allocation3], 4
          %903 = vst.msk [vmem:[%s902] sm:$0xf] %vm728, %v901
          %s904 = scalar_lea.vmem %s3, 128
          %v905 = vld [vmem:[%s904] sm:$0xf]
          %v906 = vld [vmem:[%s904 + $0x4] sm:$0xf]
          %v907 = vld [vmem:[%s904 + $0x8] sm:$0xf]
          %v908 = vld [vmem:[%s904 + $0xc] sm:$0xf]
          %v909 = vld [vmem:[%s904 + $0x10] sm:$0xf]
          %v910 = vld [vmem:[%s904 + $0x14] sm:$0xf]
          %v911 = vld [vmem:[%s904 + $0x18] sm:$0xf]
          %v912 = vld [vmem:[%s904 + $0x1c] sm:$0xf]
          %v913 = vld [vmem:[%s904 + $0x20] sm:$0xf]
          %v914 = vld [vmem:[%s904 + $0x24] sm:$0xf]
          %v915 = vld [vmem:[%s904 + $0x28] sm:$0xf]
          %v916 = vld [vmem:[%s904 + $0x2c] sm:$0xf]
          %v917 = vld [vmem:[%s904 + $0x30] sm:$0xf]
          %v918 = vld [vmem:[%s904 + $0x34] sm:$0xf]
          %v919 = vld [vmem:[%s904 + $0x38] sm:$0xf]
          %v920 = vld [vmem:[%s904 + $0x3c] sm:$0xf]
          %s921 = scalar_lea.vmem %s4, 2
          %v922 = vld [vmem:[%s921] sm:$0x1]
          %v924 = vperm.slane %v922, 0
          %v942 = vunpack.c.l.b16 %v905
          %v943 = vunpack.c.l.b16 %v906
          %v944 = vunpack.c.l.b16 %v907
          %v945 = vunpack.c.l.b16 %v908
          %v946 = vunpack.c.l.b16 %v909
          %v947 = vunpack.c.l.b16 %v910
          %v948 = vunpack.c.l.b16 %v911
          %v949 = vunpack.c.l.b16 %v912
          %v950 = vunpack.c.l.b16 %v913
          %v951 = vunpack.c.l.b16 %v914
          %v952 = vunpack.c.l.b16 %v915
          %v953 = vunpack.c.l.b16 %v916
          %v954 = vunpack.c.l.b16 %v917
          %v955 = vunpack.c.l.b16 %v918
          %v956 = vunpack.c.l.b16 %v919
          %v957 = vunpack.c.l.b16 %v920
          %v958 = vpack.c.b16 %v943, %v942
          %v959 = vpack.c.b16 %v945, %v944
          %v960 = vpack.c.b16 %v947, %v946
          %v961 = vpack.c.b16 %v949, %v948
          %v962 = vpack.c.b16 %v951, %v950
          %v963 = vpack.c.b16 %v953, %v952
          %v964 = vpack.c.b16 %v955, %v954
          %v965 = vpack.c.b16 %v957, %v956
          %974 = vmatpush.bf16.msra.mxu0 %v965
          %975 = vmatpush.bf16.msra.mxu0 %v964
          %976 = vmatpush.bf16.msra.mxu0 %v963
          %977 = vmatpush.bf16.msra.mxu0 %v962
          %978 = vmatpush.bf16.msra.mxu0 %v961
          %979 = vmatpush.bf16.msra.mxu0 %v960
          %980 = vmatpush.bf16.msra.mxu0 %v959
          %981 = vmatpush.bf16.msra.mxu0 %v958
          %982 = vmatmul.bf16.gmra.mxu0 %v564
          %v983 = vpop.f32.mrf.mxu0
          %v984 = vadd.f32 %v924, %v983
          %v985 = vpop.f32.mrf.mxu0
          %986 = vdwg.mxu0
          %s987 = scalar_lea.vmem %s5, 128
          %v988 = vld [vmem:[%s987] sm:$0xf]
          %v989 = vld [vmem:[%s987 + $0x4] sm:$0xf]
          %v990 = vld [vmem:[%s987 + $0x8] sm:$0xf]
          %v991 = vld [vmem:[%s987 + $0xc] sm:$0xf]
          %v992 = vld [vmem:[%s987 + $0x10] sm:$0xf]
          %v993 = vld [vmem:[%s987 + $0x14] sm:$0xf]
          %v994 = vld [vmem:[%s987 + $0x18] sm:$0xf]
          %v995 = vld [vmem:[%s987 + $0x1c] sm:$0xf]
          %v996 = vld [vmem:[%s987 + $0x20] sm:$0xf]
          %v997 = vld [vmem:[%s987 + $0x24] sm:$0xf]
          %v998 = vld [vmem:[%s987 + $0x28] sm:$0xf]
          %v999 = vld [vmem:[%s987 + $0x2c] sm:$0xf]
          %v1000 = vld [vmem:[%s987 + $0x30] sm:$0xf]
          %v1001 = vld [vmem:[%s987 + $0x34] sm:$0xf]
          %v1002 = vld [vmem:[%s987 + $0x38] sm:$0xf]
          %v1003 = vld [vmem:[%s987 + $0x3c] sm:$0xf]
          %s1004 = scalar_lea.vmem %s6, 2
          %v1005 = vld [vmem:[%s1004] sm:$0x1]
          %v1007 = vperm.slane %v1005, 0
          %v1025 = vunpack.c.l.b16 %v988
          %v1026 = vunpack.c.l.b16 %v989
          %v1027 = vunpack.c.l.b16 %v990
          %v1028 = vunpack.c.l.b16 %v991
          %v1029 = vunpack.c.l.b16 %v992
          %v1030 = vunpack.c.l.b16 %v993
          %v1031 = vunpack.c.l.b16 %v994
          %v1032 = vunpack.c.l.b16 %v995
          %v1033 = vunpack.c.l.b16 %v996
          %v1034 = vunpack.c.l.b16 %v997
          %v1035 = vunpack.c.l.b16 %v998
          %v1036 = vunpack.c.l.b16 %v999
          %v1037 = vunpack.c.l.b16 %v1000
          %v1038 = vunpack.c.l.b16 %v1001
          %v1039 = vunpack.c.l.b16 %v1002
          %v1040 = vunpack.c.l.b16 %v1003
          %v1041 = vpack.c.b16 %v1026, %v1025
          %v1042 = vpack.c.b16 %v1028, %v1027
          %v1043 = vpack.c.b16 %v1030, %v1029
          %v1044 = vpack.c.b16 %v1032, %v1031
          %v1045 = vpack.c.b16 %v1034, %v1033
          %v1046 = vpack.c.b16 %v1036, %v1035
          %v1047 = vpack.c.b16 %v1038, %v1037
          %v1048 = vpack.c.b16 %v1040, %v1039
          %1057 = vmatpush.bf16.msra.mxu0 %v1048
          %1058 = vmatpush.bf16.msra.mxu0 %v1047
          %1059 = vmatpush.bf16.msra.mxu0 %v1046
          %1060 = vmatpush.bf16.msra.mxu0 %v1045
          %1061 = vmatpush.bf16.msra.mxu0 %v1044
          %1062 = vmatpush.bf16.msra.mxu0 %v1043
          %1063 = vmatpush.bf16.msra.mxu0 %v1042
          %1064 = vmatpush.bf16.msra.mxu0 %v1041
          %1065 = vmatmul.bf16.gmra.mxu0 %v564
          %v1066 = vpop.f32.mrf.mxu0
          %v1067 = vadd.f32 %v1007, %v1066
          %v1068 = vpop.f32.mrf.mxu0
          %1069 = vdwg.mxu0
          %v1070 = vpack.c.bf16 %v984, %v984
          %s1071 = scalar_lea.vmem [#allocation2], 8
          %1072 = vst.msk [vmem:[%s1071] sm:$0xf] %vm728, %v1070
          %v1073 = vpack.c.bf16 %v1067, %v1067
          %s1074 = scalar_lea.vmem [#allocation3], 8
          %1075 = vst.msk [vmem:[%s1074] sm:$0xf] %vm728, %v1073
          %s1076 = scalar_lea.vmem %s3, 192
          %v1077 = vld [vmem:[%s1076] sm:$0xf]
          %v1078 = vld [vmem:[%s1076 + $0x4] sm:$0xf]
          %v1079 = vld [vmem:[%s1076 + $0x8] sm:$0xf]
          %v1080 = vld [vmem:[%s1076 + $0xc] sm:$0xf]
          %v1081 = vld [vmem:[%s1076 + $0x10] sm:$0xf]
          %v1082 = vld [vmem:[%s1076 + $0x14] sm:$0xf]
          %v1083 = vld [vmem:[%s1076 + $0x18] sm:$0xf]
          %v1084 = vld [vmem:[%s1076 + $0x1c] sm:$0xf]
          %v1085 = vld [vmem:[%s1076 + $0x20] sm:$0xf]
          %v1086 = vld [vmem:[%s1076 + $0x24] sm:$0xf]
          %v1087 = vld [vmem:[%s1076 + $0x28] sm:$0xf]
          %v1088 = vld [vmem:[%s1076 + $0x2c] sm:$0xf]
          %v1089 = vld [vmem:[%s1076 + $0x30] sm:$0xf]
          %v1090 = vld [vmem:[%s1076 + $0x34] sm:$0xf]
          %v1091 = vld [vmem:[%s1076 + $0x38] sm:$0xf]
          %v1092 = vld [vmem:[%s1076 + $0x3c] sm:$0xf]
          %s1093 = scalar_lea.vmem %s4, 3
          %v1094 = vld [vmem:[%s1093] sm:$0x1]
          %v1096 = vperm.slane %v1094, 0
          %v1114 = vunpack.c.l.b16 %v1077
          %v1115 = vunpack.c.l.b16 %v1078
          %v1116 = vunpack.c.l.b16 %v1079
          %v1117 = vunpack.c.l.b16 %v1080
          %v1118 = vunpack.c.l.b16 %v1081
          %v1119 = vunpack.c.l.b16 %v1082
          %v1120 = vunpack.c.l.b16 %v1083
          %v1121 = vunpack.c.l.b16 %v1084
          %v1122 = vunpack.c.l.b16 %v1085
          %v1123 = vunpack.c.l.b16 %v1086
          %v1124 = vunpack.c.l.b16 %v1087
          %v1125 = vunpack.c.l.b16 %v1088
          %v1126 = vunpack.c.l.b16 %v1089
          %v1127 = vunpack.c.l.b16 %v1090
          %v1128 = vunpack.c.l.b16 %v1091
          %v1129 = vunpack.c.l.b16 %v1092
          %v1130 = vpack.c.b16 %v1115, %v1114
          %v1131 = vpack.c.b16 %v1117, %v1116
          %v1132 = vpack.c.b16 %v1119, %v1118
          %v1133 = vpack.c.b16 %v1121, %v1120
          %v1134 = vpack.c.b16 %v1123, %v1122
          %v1135 = vpack.c.b16 %v1125, %v1124
          %v1136 = vpack.c.b16 %v1127, %v1126
          %v1137 = vpack.c.b16 %v1129, %v1128
          %1146 = vmatpush.bf16.msra.mxu0 %v1137
          %1147 = vmatpush.bf16.msra.mxu0 %v1136
          %1148 = vmatpush.bf16.msra.mxu0 %v1135
          %1149 = vmatpush.bf16.msra.mxu0 %v1134
          %1150 = vmatpush.bf16.msra.mxu0 %v1133
          %1151 = vmatpush.bf16.msra.mxu0 %v1132
          %1152 = vmatpush.bf16.msra.mxu0 %v1131
          %1153 = vmatpush.bf16.msra.mxu0 %v1130
          %1154 = vmatmul.bf16.gmra.mxu0 %v564
          %v1155 = vpop.f32.mrf.mxu0
          %v1156 = vadd.f32 %v1096, %v1155
          %v1157 = vpop.f32.mrf.mxu0
          %1158 = vdwg.mxu0
          %s1159 = scalar_lea.vmem %s5, 192
          %v1160 = vld [vmem:[%s1159] sm:$0xf]
          %v1161 = vld [vmem:[%s1159 + $0x4] sm:$0xf]
          %v1162 = vld [vmem:[%s1159 + $0x8] sm:$0xf]
          %v1163 = vld [vmem:[%s1159 + $0xc] sm:$0xf]
          %v1164 = vld [vmem:[%s1159 + $0x10] sm:$0xf]
          %v1165 = vld [vmem:[%s1159 + $0x14] sm:$0xf]
          %v1166 = vld [vmem:[%s1159 + $0x18] sm:$0xf]
          %v1167 = vld [vmem:[%s1159 + $0x1c] sm:$0xf]
          %v1168 = vld [vmem:[%s1159 + $0x20] sm:$0xf]
          %v1169 = vld [vmem:[%s1159 + $0x24] sm:$0xf]
          %v1170 = vld [vmem:[%s1159 + $0x28] sm:$0xf]
          %v1171 = vld [vmem:[%s1159 + $0x2c] sm:$0xf]
          %v1172 = vld [vmem:[%s1159 + $0x30] sm:$0xf]
          %v1173 = vld [vmem:[%s1159 + $0x34] sm:$0xf]
          %v1174 = vld [vmem:[%s1159 + $0x38] sm:$0xf]
          %v1175 = vld [vmem:[%s1159 + $0x3c] sm:$0xf]
          %s1176 = scalar_lea.vmem %s6, 3
          %v1177 = vld [vmem:[%s1176] sm:$0x1]
          %v1179 = vperm.slane %v1177, 0
          %v1197 = vunpack.c.l.b16 %v1160
          %v1198 = vunpack.c.l.b16 %v1161
          %v1199 = vunpack.c.l.b16 %v1162
          %v1200 = vunpack.c.l.b16 %v1163
          %v1201 = vunpack.c.l.b16 %v1164
          %v1202 = vunpack.c.l.b16 %v1165
          %v1203 = vunpack.c.l.b16 %v1166
          %v1204 = vunpack.c.l.b16 %v1167
          %v1205 = vunpack.c.l.b16 %v1168
          %v1206 = vunpack.c.l.b16 %v1169
          %v1207 = vunpack.c.l.b16 %v1170
          %v1208 = vunpack.c.l.b16 %v1171
          %v1209 = vunpack.c.l.b16 %v1172
          %v1210 = vunpack.c.l.b16 %v1173
          %v1211 = vunpack.c.l.b16 %v1174
          %v1212 = vunpack.c.l.b16 %v1175
          %v1213 = vpack.c.b16 %v1198, %v1197
          %v1214 = vpack.c.b16 %v1200, %v1199
          %v1215 = vpack.c.b16 %v1202, %v1201
          %v1216 = vpack.c.b16 %v1204, %v1203
          %v1217 = vpack.c.b16 %v1206, %v1205
          %v1218 = vpack.c.b16 %v1208, %v1207
          %v1219 = vpack.c.b16 %v1210, %v1209
          %v1220 = vpack.c.b16 %v1212, %v1211
          %1229 = vmatpush.bf16.msra.mxu0 %v1220
          %1230 = vmatpush.bf16.msra.mxu0 %v1219
          %1231 = vmatpush.bf16.msra.mxu0 %v1218
          %1232 = vmatpush.bf16.msra.mxu0 %v1217
          %1233 = vmatpush.bf16.msra.mxu0 %v1216
          %1234 = vmatpush.bf16.msra.mxu0 %v1215
          %1235 = vmatpush.bf16.msra.mxu0 %v1214
          %1236 = vmatpush.bf16.msra.mxu0 %v1213
          %1237 = vmatmul.bf16.gmra.mxu0 %v564
          %v1238 = vpop.f32.mrf.mxu0
          %v1239 = vadd.f32 %v1179, %v1238
          %v1240 = vpop.f32.mrf.mxu0
          %1241 = vdwg.mxu0
          %v1242 = vpack.c.bf16 %v1156, %v1156
          %s1243 = scalar_lea.vmem [#allocation2], 12
          %1244 = vst.msk [vmem:[%s1243] sm:$0xf] %vm728, %v1242
          %v1245 = vpack.c.bf16 %v1239, %v1239
          %s1246 = scalar_lea.vmem [#allocation3], 12
          %1247 = vst.msk [vmem:[%s1246] sm:$0xf] %vm728, %v1245
        $region92: #{tpu_custom_call.1} parent=87 // pred_fallthru
          _
        %s1248 = smul.u32 %s36, 8
        %s1249 = scalar_lea.vmem %s557, %s1248
        %v1250 = vld [vmem:[%s1249] sm:$0xff]
        %v1251 = vpack.c.bf16 %v1250, %v1250
        %v1252 = vld [vmem:[%s1] sm:$0xf]
        %v1253 = vld [vmem:[%s1 + $0x4] sm:$0xf]
        %v1254 = vld [vmem:[%s1 + $0x8] sm:$0xf]
        %v1255 = vld [vmem:[%s1 + $0xc] sm:$0xf]
        %v1256 = vld [vmem:[%s1 + $0x10] sm:$0xf]
        %v1257 = vld [vmem:[%s1 + $0x14] sm:$0xf]
        %v1258 = vld [vmem:[%s1 + $0x18] sm:$0xf]
        %v1259 = vld [vmem:[%s1 + $0x1c] sm:$0xf]
        %v1260 = vld [vmem:[%s1 + $0x20] sm:$0xf]
        %v1261 = vld [vmem:[%s1 + $0x24] sm:$0xf]
        %v1262 = vld [vmem:[%s1 + $0x28] sm:$0xf]
        %v1263 = vld [vmem:[%s1 + $0x2c] sm:$0xf]
        %v1264 = vld [vmem:[%s1 + $0x30] sm:$0xf]
        %v1265 = vld [vmem:[%s1 + $0x34] sm:$0xf]
        %v1266 = vld [vmem:[%s1 + $0x38] sm:$0xf]
        %v1267 = vld [vmem:[%s1 + $0x3c] sm:$0xf]
        %v1268 = vld [vmem:[%s2] sm:$0x1]
        %v1270 = vperm.slane %v1268, 0
        %v1288 = vunpack.c.l.b16 %v1252
        %v1289 = vunpack.c.l.b16 %v1253
        %v1290 = vunpack.c.l.b16 %v1254
        %v1291 = vunpack.c.l.b16 %v1255
        %v1292 = vunpack.c.l.b16 %v1256
        %v1293 = vunpack.c.l.b16 %v1257
        %v1294 = vunpack.c.l.b16 %v1258
        %v1295 = vunpack.c.l.b16 %v1259
        %v1296 = vunpack.c.l.b16 %v1260
        %v1297 = vunpack.c.l.b16 %v1261
        %v1298 = vunpack.c.l.b16 %v1262
        %v1299 = vunpack.c.l.b16 %v1263
        %v1300 = vunpack.c.l.b16 %v1264
        %v1301 = vunpack.c.l.b16 %v1265
        %v1302 = vunpack.c.l.b16 %v1266
        %v1303 = vunpack.c.l.b16 %v1267
        %v1304 = vpack.c.b16 %v1289, %v1288
        %v1305 = vpack.c.b16 %v1291, %v1290
        %v1306 = vpack.c.b16 %v1293, %v1292
        %v1307 = vpack.c.b16 %v1295, %v1294
        %v1308 = vpack.c.b16 %v1297, %v1296
        %v1309 = vpack.c.b16 %v1299, %v1298
        %v1310 = vpack.c.b16 %v1301, %v1300
        %v1311 = vpack.c.b16 %v1303, %v1302
        %1320 = vmatpush.bf16.msra.mxu0 %v1311
        %1321 = vmatpush.bf16.msra.mxu0 %v1310
        %1322 = vmatpush.bf16.msra.mxu0 %v1309
        %1323 = vmatpush.bf16.msra.mxu0 %v1308
        %1324 = vmatpush.bf16.msra.mxu0 %v1307
        %1325 = vmatpush.bf16.msra.mxu0 %v1306
        %1326 = vmatpush.bf16.msra.mxu0 %v1305
        %1327 = vmatpush.bf16.msra.mxu0 %v1304
        %1328 = vmatmul.bf16.gmra.mxu0 %v1251
        %v1329 = vpop.f32.mrf.mxu0
        %v1330 = vadd.f32 %v1270, %v1329
        %v1331 = vpop.f32.mrf.mxu0
        %1332 = vdwg.mxu0
        %v1333 = vmul.f32 %v1330, 0.35355338
        %v1334 = vpack.c.bf16 %v1333, %v1333
        %v1335 = vld [vmem:[#allocation2] sm:$0xf]
        %v1336 = vld [vmem:[#allocation3] sm:$0xf]
        %vm1337 = vcmask 64512
        %v1339 = vsel %vm1337, %v1334, 0
        %v1342 = vsel %vm1337, %v1335, 0
        %1344 = vmatpush.bf16.xpose.msra.mxu0 0
        %1345 = vmatpush.bf16.xpose.msra.mxu0 0
        %1346 = vmatpush.bf16.xpose.msra.mxu0 0
        %1347 = vmatpush.bf16.xpose.msra.mxu0 0
        %1348 = vmatpush.bf16.xpose.msra.mxu0 0
        %1349 = vmatpush.bf16.xpose.msra.mxu0 0
        %1350 = vmatpush.bf16.xpose.msra.mxu0 0
        %1351 = vmatpush.bf16.xpose.msra.mxu0 %v1342
        %1352 = vmatmul.bf16.gmra.mxu0 %v1339
        %v1353 = vpop.f32.mrf.mxu0
        %v1354 = vadd.f32 0.0, %v1353
        %v1355 = vpop.f32.mrf.mxu0
        %1356 = vdwg.mxu0
        %v1357 = vsel %vm1337, %v1354, -inf
        %1358 = vmax.xlane.f32.xlu0 %v1357
        %v1359 = vpop.xlane.xlu0 %1358
        %v1360 = vsub.f32 %v1354, %v1359
        %v1361 = vmul.f32 %v1360, 1.442695
        %v1362 = vpow.pop %v1361
        %v1363 = vsel %vm1337, %v1362, 0.0
        %1364 = vadd.xlane.f32.xlu0 %v1363
        %v1365 = vpop.xlane.xlu0 %1364
        %v1366 = vrcp.pop %v1365
        %v1367 = vmul.f32 %v1362, %v1366
        %v1368 = vpack.c.bf16 %v1367, %v1367
        %v1370 = vsel %vm1337, %v1368, 0
        %vm1372 = vcmask 1043456
        %v1374 = vsel %vm1372, %v1336, 0
        %1376 = vmatpush.bf16.msra.mxu0 0
        %1377 = vmatpush.bf16.msra.mxu0 0
        %1378 = vmatpush.bf16.msra.mxu0 0
        %1379 = vmatpush.bf16.msra.mxu0 0
        %1380 = vmatpush.bf16.msra.mxu0 0
        %1381 = vmatpush.bf16.msra.mxu0 0
        %1382 = vmatpush.bf16.msra.mxu0 0
        %1383 = vmatpush.bf16.msra.mxu0 %v1374
        %1384 = vmatmul.bf16.gmra.mxu0 %v1370
        %v1385 = vpop.f32.mrf.mxu0
        %v1386 = vadd.f32 0.0, %v1385
        %v1387 = vpop.f32.mrf.mxu0
        %1388 = vdwg.mxu0
        %v1389 = vpack.c.bf16 %v1386, %v1386
        %v1390 = vld [vmem:[%s7] sm:$0xf]
        %s1391 = scalar_lea.vmem %s1, 64
        %v1392 = vld [vmem:[%s1391] sm:$0xf]
        %v1393 = vld [vmem:[%s1391 + $0x4] sm:$0xf]
        %v1394 = vld [vmem:[%s1391 + $0x8] sm:$0xf]
        %v1395 = vld [vmem:[%s1391 + $0xc] sm:$0xf]
        %v1396 = vld [vmem:[%s1391 + $0x10] sm:$0xf]
        %v1397 = vld [vmem:[%s1391 + $0x14] sm:$0xf]
        %v1398 = vld [vmem:[%s1391 + $0x18] sm:$0xf]
        %v1399 = vld [vmem:[%s1391 + $0x1c] sm:$0xf]
        %v1400 = vld [vmem:[%s1391 + $0x20] sm:$0xf]
        %v1401 = vld [vmem:[%s1391 + $0x24] sm:$0xf]
        %v1402 = vld [vmem:[%s1391 + $0x28] sm:$0xf]
        %v1403 = vld [vmem:[%s1391 + $0x2c] sm:$0xf]
        %v1404 = vld [vmem:[%s1391 + $0x30] sm:$0xf]
        %v1405 = vld [vmem:[%s1391 + $0x34] sm:$0xf]
        %v1406 = vld [vmem:[%s1391 + $0x38] sm:$0xf]
        %v1407 = vld [vmem:[%s1391 + $0x3c] sm:$0xf]
        %s1408 = scalar_lea.vmem %s2, 1
        %v1409 = vld [vmem:[%s1408] sm:$0x1]
        %v1411 = vperm.slane %v1409, 0
        %v1429 = vunpack.c.l.b16 %v1392
        %v1430 = vunpack.c.l.b16 %v1393
        %v1431 = vunpack.c.l.b16 %v1394
        %v1432 = vunpack.c.l.b16 %v1395
        %v1433 = vunpack.c.l.b16 %v1396
        %v1434 = vunpack.c.l.b16 %v1397
        %v1435 = vunpack.c.l.b16 %v1398
        %v1436 = vunpack.c.l.b16 %v1399
        %v1437 = vunpack.c.l.b16 %v1400
        %v1438 = vunpack.c.l.b16 %v1401
        %v1439 = vunpack.c.l.b16 %v1402
        %v1440 = vunpack.c.l.b16 %v1403
        %v1441 = vunpack.c.l.b16 %v1404
        %v1442 = vunpack.c.l.b16 %v1405
        %v1443 = vunpack.c.l.b16 %v1406
        %v1444 = vunpack.c.l.b16 %v1407
        %v1445 = vpack.c.b16 %v1430, %v1429
        %v1446 = vpack.c.b16 %v1432, %v1431
        %v1447 = vpack.c.b16 %v1434, %v1433
        %v1448 = vpack.c.b16 %v1436, %v1435
        %v1449 = vpack.c.b16 %v1438, %v1437
        %v1450 = vpack.c.b16 %v1440, %v1439
        %v1451 = vpack.c.b16 %v1442, %v1441
        %v1452 = vpack.c.b16 %v1444, %v1443
        %1461 = vmatpush.bf16.msra.mxu0 %v1452
        %1462 = vmatpush.bf16.msra.mxu0 %v1451
        %1463 = vmatpush.bf16.msra.mxu0 %v1450
        %1464 = vmatpush.bf16.msra.mxu0 %v1449
        %1465 = vmatpush.bf16.msra.mxu0 %v1448
        %1466 = vmatpush.bf16.msra.mxu0 %v1447
        %1467 = vmatpush.bf16.msra.mxu0 %v1446
        %1468 = vmatpush.bf16.msra.mxu0 %v1445
        %1469 = vmatmul.bf16.gmra.mxu0 %v1251
        %v1470 = vpop.f32.mrf.mxu0
        %v1471 = vadd.f32 %v1411, %v1470
        %v1472 = vpop.f32.mrf.mxu0
        %1473 = vdwg.mxu0
        %v1474 = vmul.f32 %v1471, 0.35355338
        %v1475 = vpack.c.bf16 %v1474, %v1474
        %s1476 = scalar_lea.vmem [#allocation2], 4
        %v1477 = vld [vmem:[%s1476] sm:$0xf]
        %s1478 = scalar_lea.vmem [#allocation3], 4
        %v1479 = vld [vmem:[%s1478] sm:$0xf]
        %v1481 = vsel %vm1337, %v1475, 0
        %v1484 = vsel %vm1337, %v1477, 0
        %1486 = vmatpush.bf16.xpose.msra.mxu0 0
        %1487 = vmatpush.bf16.xpose.msra.mxu0 0
        %1488 = vmatpush.bf16.xpose.msra.mxu0 0
        %1489 = vmatpush.bf16.xpose.msra.mxu0 0
        %1490 = vmatpush.bf16.xpose.msra.mxu0 0
        %1491 = vmatpush.bf16.xpose.msra.mxu0 0
        %1492 = vmatpush.bf16.xpose.msra.mxu0 0
        %1493 = vmatpush.bf16.xpose.msra.mxu0 %v1484
        %1494 = vmatmul.bf16.gmra.mxu0 %v1481
        %v1495 = vpop.f32.mrf.mxu0
        %v1496 = vadd.f32 0.0, %v1495
        %v1497 = vpop.f32.mrf.mxu0
        %1498 = vdwg.mxu0
        %v1499 = vsel %vm1337, %v1496, -inf
        %1500 = vmax.xlane.f32.xlu0 %v1499
        %v1501 = vpop.xlane.xlu0 %1500
        %v1502 = vsub.f32 %v1496, %v1501
        %v1503 = vmul.f32 %v1502, 1.442695
        %v1504 = vpow.pop %v1503
        %v1505 = vsel %vm1337, %v1504, 0.0
        %1506 = vadd.xlane.f32.xlu0 %v1505
        %v1507 = vpop.xlane.xlu0 %1506
        %v1508 = vrcp.pop %v1507
        %v1509 = vmul.f32 %v1504, %v1508
        %v1510 = vpack.c.bf16 %v1509, %v1509
        %v1512 = vsel %vm1337, %v1510, 0
        %v1515 = vsel %vm1372, %v1479, 0
        %1517 = vmatpush.bf16.msra.mxu0 0
        %1518 = vmatpush.bf16.msra.mxu0 0
        %1519 = vmatpush.bf16.msra.mxu0 0
        %1520 = vmatpush.bf16.msra.mxu0 0
        %1521 = vmatpush.bf16.msra.mxu0 0
        %1522 = vmatpush.bf16.msra.mxu0 0
        %1523 = vmatpush.bf16.msra.mxu0 0
        %1524 = vmatpush.bf16.msra.mxu0 %v1515
        %1525 = vmatmul.bf16.gmra.mxu0 %v1512
        %v1526 = vpop.f32.mrf.mxu0
        %v1527 = vadd.f32 0.0, %v1526
        %v1528 = vpop.f32.mrf.mxu0
        %1529 = vdwg.mxu0
        %v1530 = vpack.c.bf16 %v1527, %v1527
        %s1531 = scalar_lea.vmem %s7, 4
        %v1532 = vld [vmem:[%s1531] sm:$0xf]
        %v1534 = vsel %vm1337, %v1530, 0
        %v1537 = vsel %vm1372, %v1532, 0
        %1539 = vmatpush.bf16.msra.mxu0 0
        %1540 = vmatpush.bf16.msra.mxu0 0
        %1541 = vmatpush.bf16.msra.mxu0 0
        %1542 = vmatpush.bf16.msra.mxu0 0
        %1543 = vmatpush.bf16.msra.mxu0 0
        %1544 = vmatpush.bf16.msra.mxu0 0
        %1545 = vmatpush.bf16.msra.mxu0 0
        %1546 = vmatpush.bf16.msra.mxu0 %v1537
        %1547 = vmatmul.bf16.gmra.mxu0 %v1534
        %v1548 = vpop.f32.mrf.mxu0
        %v1549 = vadd.f32 0.0, %v1548
        %v1550 = vpop.f32.mrf.mxu0
        %1551 = vdwg.mxu0
        %v1553 = vsel %vm1337, %v1389, 0
        %v1556 = vsel %vm1372, %v1390, 0
        %1558 = vmatpush.bf16.msra.mxu0 0
        %1559 = vmatpush.bf16.msra.mxu0 0
        %1560 = vmatpush.bf16.msra.mxu0 0
        %1561 = vmatpush.bf16.msra.mxu0 0
        %1562 = vmatpush.bf16.msra.mxu0 0
        %1563 = vmatpush.bf16.msra.mxu0 0
        %1564 = vmatpush.bf16.msra.mxu0 0
        %1565 = vmatpush.bf16.msra.mxu0 %v1556
        %1566 = vmatmul.bf16.gmra.mxu0 %v1553
        %v1567 = vpop.f32.mrf.mxu0
        %v1568 = vadd.f32 %v1549, %v1567
        %v1569 = vpop.f32.mrf.mxu0
        %1570 = vdwg.mxu0
        %s1571 = scalar_lea.vmem %s1, 128
        %v1572 = vld [vmem:[%s1571] sm:$0xf]
        %v1573 = vld [vmem:[%s1571 + $0x4] sm:$0xf]
        %v1574 = vld [vmem:[%s1571 + $0x8] sm:$0xf]
        %v1575 = vld [vmem:[%s1571 + $0xc] sm:$0xf]
        %v1576 = vld [vmem:[%s1571 + $0x10] sm:$0xf]
        %v1577 = vld [vmem:[%s1571 + $0x14] sm:$0xf]
        %v1578 = vld [vmem:[%s1571 + $0x18] sm:$0xf]
        %v1579 = vld [vmem:[%s1571 + $0x1c] sm:$0xf]
        %v1580 = vld [vmem:[%s1571 + $0x20] sm:$0xf]
        %v1581 = vld [vmem:[%s1571 + $0x24] sm:$0xf]
        %v1582 = vld [vmem:[%s1571 + $0x28] sm:$0xf]
        %v1583 = vld [vmem:[%s1571 + $0x2c] sm:$0xf]
        %v1584 = vld [vmem:[%s1571 + $0x30] sm:$0xf]
        %v1585 = vld [vmem:[%s1571 + $0x34] sm:$0xf]
        %v1586 = vld [vmem:[%s1571 + $0x38] sm:$0xf]
        %v1587 = vld [vmem:[%s1571 + $0x3c] sm:$0xf]
        %s1588 = scalar_lea.vmem %s2, 2
        %v1589 = vld [vmem:[%s1588] sm:$0x1]
        %v1591 = vperm.slane %v1589, 0
        %v1609 = vunpack.c.l.b16 %v1572
        %v1610 = vunpack.c.l.b16 %v1573
        %v1611 = vunpack.c.l.b16 %v1574
        %v1612 = vunpack.c.l.b16 %v1575
        %v1613 = vunpack.c.l.b16 %v1576
        %v1614 = vunpack.c.l.b16 %v1577
        %v1615 = vunpack.c.l.b16 %v1578
        %v1616 = vunpack.c.l.b16 %v1579
        %v1617 = vunpack.c.l.b16 %v1580
        %v1618 = vunpack.c.l.b16 %v1581
        %v1619 = vunpack.c.l.b16 %v1582
        %v1620 = vunpack.c.l.b16 %v1583
        %v1621 = vunpack.c.l.b16 %v1584
        %v1622 = vunpack.c.l.b16 %v1585
        %v1623 = vunpack.c.l.b16 %v1586
        %v1624 = vunpack.c.l.b16 %v1587
        %v1625 = vpack.c.b16 %v1610, %v1609
        %v1626 = vpack.c.b16 %v1612, %v1611
        %v1627 = vpack.c.b16 %v1614, %v1613
        %v1628 = vpack.c.b16 %v1616, %v1615
        %v1629 = vpack.c.b16 %v1618, %v1617
        %v1630 = vpack.c.b16 %v1620, %v1619
        %v1631 = vpack.c.b16 %v1622, %v1621
        %v1632 = vpack.c.b16 %v1624, %v1623
        %1641 = vmatpush.bf16.msra.mxu0 %v1632
        %1642 = vmatpush.bf16.msra.mxu0 %v1631
        %1643 = vmatpush.bf16.msra.mxu0 %v1630
        %1644 = vmatpush.bf16.msra.mxu0 %v1629
        %1645 = vmatpush.bf16.msra.mxu0 %v1628
        %1646 = vmatpush.bf16.msra.mxu0 %v1627
        %1647 = vmatpush.bf16.msra.mxu0 %v1626
        %1648 = vmatpush.bf16.msra.mxu0 %v1625
        %1649 = vmatmul.bf16.gmra.mxu0 %v1251
        %v1650 = vpop.f32.mrf.mxu0
        %v1651 = vadd.f32 %v1591, %v1650
        %v1652 = vpop.f32.mrf.mxu0
        %1653 = vdwg.mxu0
        %v1654 = vmul.f32 %v1651, 0.35355338
        %v1655 = vpack.c.bf16 %v1654, %v1654
        %s1656 = scalar_lea.vmem [#allocation2], 8
        %v1657 = vld [vmem:[%s1656] sm:$0xf]
        %s1658 = scalar_lea.vmem [#allocation3], 8
        %v1659 = vld [vmem:[%s1658] sm:$0xf]
        %v1661 = vsel %vm1337, %v1655, 0
        %v1664 = vsel %vm1337, %v1657, 0
        %1666 = vmatpush.bf16.xpose.msra.mxu0 0
        %1667 = vmatpush.bf16.xpose.msra.mxu0 0
        %1668 = vmatpush.bf16.xpose.msra.mxu0 0
        %1669 = vmatpush.bf16.xpose.msra.mxu0 0
        %1670 = vmatpush.bf16.xpose.msra.mxu0 0
        %1671 = vmatpush.bf16.xpose.msra.mxu0 0
        %1672 = vmatpush.bf16.xpose.msra.mxu0 0
        %1673 = vmatpush.bf16.xpose.msra.mxu0 %v1664
        %1674 = vmatmul.bf16.gmra.mxu0 %v1661
        %v1675 = vpop.f32.mrf.mxu0
        %v1676 = vadd.f32 0.0, %v1675
        %v1677 = vpop.f32.mrf.mxu0
        %1678 = vdwg.mxu0
        %v1679 = vsel %vm1337, %v1676, -inf
        %1680 = vmax.xlane.f32.xlu0 %v1679
        %v1681 = vpop.xlane.xlu0 %1680
        %v1682 = vsub.f32 %v1676, %v1681
        %v1683 = vmul.f32 %v1682, 1.442695
        %v1684 = vpow.pop %v1683
        %v1685 = vsel %vm1337, %v1684, 0.0
        %1686 = vadd.xlane.f32.xlu0 %v1685
        %v1687 = vpop.xlane.xlu0 %1686
        %v1688 = vrcp.pop %v1687
        %v1689 = vmul.f32 %v1684, %v1688
        %v1690 = vpack.c.bf16 %v1689, %v1689
        %v1692 = vsel %vm1337, %v1690, 0
        %v1695 = vsel %vm1372, %v1659, 0
        %1697 = vmatpush.bf16.msra.mxu0 0
        %1698 = vmatpush.bf16.msra.mxu0 0
        %1699 = vmatpush.bf16.msra.mxu0 0
        %1700 = vmatpush.bf16.msra.mxu0 0
        %1701 = vmatpush.bf16.msra.mxu0 0
        %1702 = vmatpush.bf16.msra.mxu0 0
        %1703 = vmatpush.bf16.msra.mxu0 0
        %1704 = vmatpush.bf16.msra.mxu0 %v1695
        %1705 = vmatmul.bf16.gmra.mxu0 %v1692
        %v1706 = vpop.f32.mrf.mxu0
        %v1707 = vadd.f32 0.0, %v1706
        %v1708 = vpop.f32.mrf.mxu0
        %1709 = vdwg.mxu0
        %v1710 = vpack.c.bf16 %v1707, %v1707
        %s1711 = scalar_lea.vmem %s7, 8
        %v1712 = vld [vmem:[%s1711] sm:$0xf]
        %v1714 = vsel %vm1337, %v1710, 0
        %v1717 = vsel %vm1372, %v1712, 0
        %1719 = vmatpush.bf16.msra.mxu0 0
        %1720 = vmatpush.bf16.msra.mxu0 0
        %1721 = vmatpush.bf16.msra.mxu0 0
        %1722 = vmatpush.bf16.msra.mxu0 0
        %1723 = vmatpush.bf16.msra.mxu0 0
        %1724 = vmatpush.bf16.msra.mxu0 0
        %1725 = vmatpush.bf16.msra.mxu0 0
        %1726 = vmatpush.bf16.msra.mxu0 %v1717
        %1727 = vmatmul.bf16.gmra.mxu0 %v1714
        %v1728 = vpop.f32.mrf.mxu0
        %v1729 = vadd.f32 0.0, %v1728
        %v1730 = vpop.f32.mrf.mxu0
        %1731 = vdwg.mxu0
        %v1732 = vadd.f32 %v1568, %v1729
        %s1733 = scalar_lea.vmem %s1, 192
        %v1734 = vld [vmem:[%s1733] sm:$0xf]
        %v1735 = vld [vmem:[%s1733 + $0x4] sm:$0xf]
        %v1736 = vld [vmem:[%s1733 + $0x8] sm:$0xf]
        %v1737 = vld [vmem:[%s1733 + $0xc] sm:$0xf]
        %v1738 = vld [vmem:[%s1733 + $0x10] sm:$0xf]
        %v1739 = vld [vmem:[%s1733 + $0x14] sm:$0xf]
        %v1740 = vld [vmem:[%s1733 + $0x18] sm:$0xf]
        %v1741 = vld [vmem:[%s1733 + $0x1c] sm:$0xf]
        %v1742 = vld [vmem:[%s1733 + $0x20] sm:$0xf]
        %v1743 = vld [vmem:[%s1733 + $0x24] sm:$0xf]
        %v1744 = vld [vmem:[%s1733 + $0x28] sm:$0xf]
        %v1745 = vld [vmem:[%s1733 + $0x2c] sm:$0xf]
        %v1746 = vld [vmem:[%s1733 + $0x30] sm:$0xf]
        %v1747 = vld [vmem:[%s1733 + $0x34] sm:$0xf]
        %v1748 = vld [vmem:[%s1733 + $0x38] sm:$0xf]
        %v1749 = vld [vmem:[%s1733 + $0x3c] sm:$0xf]
        %s1750 = scalar_lea.vmem %s2, 3
        %v1751 = vld [vmem:[%s1750] sm:$0x1]
        %v1753 = vperm.slane %v1751, 0
        %v1771 = vunpack.c.l.b16 %v1734
        %v1772 = vunpack.c.l.b16 %v1735
        %v1773 = vunpack.c.l.b16 %v1736
        %v1774 = vunpack.c.l.b16 %v1737
        %v1775 = vunpack.c.l.b16 %v1738
        %v1776 = vunpack.c.l.b16 %v1739
        %v1777 = vunpack.c.l.b16 %v1740
        %v1778 = vunpack.c.l.b16 %v1741
        %v1779 = vunpack.c.l.b16 %v1742
        %v1780 = vunpack.c.l.b16 %v1743
        %v1781 = vunpack.c.l.b16 %v1744
        %v1782 = vunpack.c.l.b16 %v1745
        %v1783 = vunpack.c.l.b16 %v1746
        %v1784 = vunpack.c.l.b16 %v1747
        %v1785 = vunpack.c.l.b16 %v1748
        %v1786 = vunpack.c.l.b16 %v1749
        %v1787 = vpack.c.b16 %v1772, %v1771
        %v1788 = vpack.c.b16 %v1774, %v1773
        %v1789 = vpack.c.b16 %v1776, %v1775
        %v1790 = vpack.c.b16 %v1778, %v1777
        %v1791 = vpack.c.b16 %v1780, %v1779
        %v1792 = vpack.c.b16 %v1782, %v1781
        %v1793 = vpack.c.b16 %v1784, %v1783
        %v1794 = vpack.c.b16 %v1786, %v1785
        %1803 = vmatpush.bf16.msra.mxu0 %v1794
        %1804 = vmatpush.bf16.msra.mxu0 %v1793
        %1805 = vmatpush.bf16.msra.mxu0 %v1792
        %1806 = vmatpush.bf16.msra.mxu0 %v1791
        %1807 = vmatpush.bf16.msra.mxu0 %v1790
        %1808 = vmatpush.bf16.msra.mxu0 %v1789
        %1809 = vmatpush.bf16.msra.mxu0 %v1788
        %1810 = vmatpush.bf16.msra.mxu0 %v1787
        %1811 = vmatmul.bf16.gmra.mxu0 %v1251
        %v1812 = vpop.f32.mrf.mxu0
        %v1813 = vadd.f32 %v1753, %v1812
        %v1814 = vpop.f32.mrf.mxu0
        %1815 = vdwg.mxu0
        %v1816 = vmul.f32 %v1813, 0.35355338
        %v1817 = vpack.c.bf16 %v1816, %v1816
        %s1818 = scalar_lea.vmem [#allocation2], 12
        %v1819 = vld [vmem:[%s1818] sm:$0xf]
        %s1820 = scalar_lea.vmem [#allocation3], 12
        %v1821 = vld [vmem:[%s1820] sm:$0xf]
        %v1823 = vsel %vm1337, %v1817, 0
        %v1826 = vsel %vm1337, %v1819, 0
        %1828 = vmatpush.bf16.xpose.msra.mxu0 0
        %1829 = vmatpush.bf16.xpose.msra.mxu0 0
        %1830 = vmatpush.bf16.xpose.msra.mxu0 0
        %1831 = vmatpush.bf16.xpose.msra.mxu0 0
        %1832 = vmatpush.bf16.xpose.msra.mxu0 0
        %1833 = vmatpush.bf16.xpose.msra.mxu0 0
        %1834 = vmatpush.bf16.xpose.msra.mxu0 0
        %1835 = vmatpush.bf16.xpose.msra.mxu0 %v1826
        %1836 = vmatmul.bf16.gmra.mxu0 %v1823
        %v1837 = vpop.f32.mrf.mxu0
        %v1838 = vadd.f32 0.0, %v1837
        %v1839 = vpop.f32.mrf.mxu0
        %1840 = vdwg.mxu0
        %v1841 = vsel %vm1337, %v1838, -inf
        %1842 = vmax.xlane.f32.xlu0 %v1841
        %v1843 = vpop.xlane.xlu0 %1842
        %v1844 = vsub.f32 %v1838, %v1843
        %v1845 = vmul.f32 %v1844, 1.442695
        %v1846 = vpow.pop %v1845
        %v1847 = vsel %vm1337, %v1846, 0.0
        %1848 = vadd.xlane.f32.xlu0 %v1847
        %v1849 = vpop.xlane.xlu0 %1848
        %v1850 = vrcp.pop %v1849
        %v1851 = vmul.f32 %v1846, %v1850
        %v1852 = vpack.c.bf16 %v1851, %v1851
        %v1854 = vsel %vm1337, %v1852, 0
        %v1857 = vsel %vm1372, %v1821, 0
        %1859 = vmatpush.bf16.msra.mxu0 0
        %1860 = vmatpush.bf16.msra.mxu0 0
        %1861 = vmatpush.bf16.msra.mxu0 0
        %1862 = vmatpush.bf16.msra.mxu0 0
        %1863 = vmatpush.bf16.msra.mxu0 0
        %1864 = vmatpush.bf16.msra.mxu0 0
        %1865 = vmatpush.bf16.msra.mxu0 0
        %1866 = vmatpush.bf16.msra.mxu0 %v1857
        %1867 = vmatmul.bf16.gmra.mxu0 %v1854
        %v1868 = vpop.f32.mrf.mxu0
        %v1869 = vadd.f32 0.0, %v1868
        %v1870 = vpop.f32.mrf.mxu0
        %1871 = vdwg.mxu0
        %v1872 = vpack.c.bf16 %v1869, %v1869
        %s1873 = scalar_lea.vmem %s7, 12
        %v1874 = vld [vmem:[%s1873] sm:$0xf]
        %v1876 = vsel %vm1337, %v1872, 0
        %v1879 = vsel %vm1372, %v1874, 0
        %1881 = vmatpush.bf16.msra.mxu0 0
        %1882 = vmatpush.bf16.msra.mxu0 0
        %1883 = vmatpush.bf16.msra.mxu0 0
        %1884 = vmatpush.bf16.msra.mxu0 0
        %1885 = vmatpush.bf16.msra.mxu0 0
        %1886 = vmatpush.bf16.msra.mxu0 0
        %1887 = vmatpush.bf16.msra.mxu0 0
        %1888 = vmatpush.bf16.msra.mxu0 %v1879
        %1889 = vmatmul.bf16.gmra.mxu0 %v1876
        %v1890 = vpop.f32.mrf.mxu0
        %v1891 = vadd.f32 0.0, %v1890
        %v1892 = vpop.f32.mrf.mxu0
        %1893 = vdwg.mxu0
        %v1894 = vadd.f32 %v1732, %v1891
        %v1895 = vld [vmem:[%s8] sm:$0x1]
        %v1897 = vperm.slane %v1895, 0
        %v1899 = vadd.f32 %v1894, %v1897
        %v1900 = vadd.f32 %v1250, %v1899
        %v1901 = vld [vmem:[%s9] sm:$0x1]
        %v1902 = vld [vmem:[%s10] sm:$0x1]
        %1903 = vadd.xlane.f32.xlu0 %v1900
        %v1904 = vpop.xlane.xlu0 %1903
        %v1905 = vmul.f32 %v1904, 0.03125
        %v1906 = vsub.f32 %v1900, %v1905
        %v1907 = vmul.f32 %v1906, %v1906
        %1908 = vadd.xlane.f32.xlu0 %v1907
        %v1909 = vpop.xlane.xlu0 %1908
        %v1910 = vmul.f32 %v1905, %v1905
        %v1911 = vmul.f32 %v1910, 96.0
        %v1912 = vsub.f32 %v1909, %v1911
        %v1913 = vmul.f32 %v1912, 0.03125
        %v1914 = vadd.f32 %v1913, 1e-05
        %v1915 = vrsqrt.pop %v1914
        %v1916 = vmul.f32 %v1915, %v1914
        %v1917 = vmul.f32 %v1916, %v1915
        %v1918 = vmul.f32 0.5, %v1917
        %v1919 = vsub.f32 1.5, %v1918
        %v1920 = vmul.f32 %v1915, %v1919
        %vm1921 = vweird.f32 %v1914
        %vm1922 = vweird.f32 %v1915
        %vm1923 = vmor %vm1921, %vm1922
        %v1924 = vsel %vm1923, %v1915, %v1920
        %v1925 = vmul.f32 %v1906, %v1924
        %v1927 = vperm.slane %v1901, 0
        %v1929 = vmul.f32 %v1925, %v1927
        %v1931 = vperm.slane %v1902, 0
        %v1933 = vadd.f32 %v1929, %v1931
        %v1934 = vpack.c.bf16 %v1933, %v1933
        %v1935 = vld [vmem:[%s11] sm:$0xf]
        %v1936 = vld [vmem:[%s11 + $0x4] sm:$0xf]
        %v1937 = vld [vmem:[%s11 + $0x8] sm:$0xf]
        %v1938 = vld [vmem:[%s11 + $0xc] sm:$0xf]
        %v1939 = vld [vmem:[%s11 + $0x10] sm:$0xf]
        %v1940 = vld [vmem:[%s11 + $0x14] sm:$0xf]
        %v1941 = vld [vmem:[%s11 + $0x18] sm:$0xf]
        %v1942 = vld [vmem:[%s11 + $0x1c] sm:$0xf]
        %v1943 = vld [vmem:[%s11 + $0x20] sm:$0xf]
        %v1944 = vld [vmem:[%s11 + $0x24] sm:$0xf]
        %v1945 = vld [vmem:[%s11 + $0x28] sm:$0xf]
        %v1946 = vld [vmem:[%s11 + $0x2c] sm:$0xf]
        %v1947 = vld [vmem:[%s11 + $0x30] sm:$0xf]
        %v1948 = vld [vmem:[%s11 + $0x34] sm:$0xf]
        %v1949 = vld [vmem:[%s11 + $0x38] sm:$0xf]
        %v1950 = vld [vmem:[%s11 + $0x3c] sm:$0xf]
        %v1951 = vld [vmem:[%s12] sm:$0x1]
        %v1953 = vperm.slane %v1951, 0
        %v1971 = vunpack.c.l.b16 %v1935
        %v1972 = vunpack.c.l.b16 %v1936
        %v1973 = vunpack.c.l.b16 %v1937
        %v1974 = vunpack.c.l.b16 %v1938
        %v1975 = vunpack.c.l.b16 %v1939
        %v1976 = vunpack.c.l.b16 %v1940
        %v1977 = vunpack.c.l.b16 %v1941
        %v1978 = vunpack.c.l.b16 %v1942
        %v1979 = vunpack.c.l.b16 %v1943
        %v1980 = vunpack.c.l.b16 %v1944
        %v1981 = vunpack.c.l.b16 %v1945
        %v1982 = vunpack.c.l.b16 %v1946
        %v1983 = vunpack.c.l.b16 %v1947
        %v1984 = vunpack.c.l.b16 %v1948
        %v1985 = vunpack.c.l.b16 %v1949
        %v1986 = vunpack.c.l.b16 %v1950
        %v1987 = vpack.c.b16 %v1972, %v1971
        %v1988 = vpack.c.b16 %v1974, %v1973
        %v1989 = vpack.c.b16 %v1976, %v1975
        %v1990 = vpack.c.b16 %v1978, %v1977
        %v1991 = vpack.c.b16 %v1980, %v1979
        %v1992 = vpack.c.b16 %v1982, %v1981
        %v1993 = vpack.c.b16 %v1984, %v1983
        %v1994 = vpack.c.b16 %v1986, %v1985
        %2003 = vmatpush.bf16.msra.mxu0 %v1994
        %2004 = vmatpush.bf16.msra.mxu0 %v1993
        %2005 = vmatpush.bf16.msra.mxu0 %v1992
        %2006 = vmatpush.bf16.msra.mxu0 %v1991
        %2007 = vmatpush.bf16.msra.mxu0 %v1990
        %2008 = vmatpush.bf16.msra.mxu0 %v1989
        %2009 = vmatpush.bf16.msra.mxu0 %v1988
        %2010 = vmatpush.bf16.msra.mxu0 %v1987
        %2011 = vmatmul.bf16.gmra.mxu0 %v1934
        %v2012 = vpop.f32.mrf.mxu0
        %v2013 = vadd.f32 %v1953, %v2012
        %v2014 = vpop.f32.mrf.mxu0
        %2015 = vdwg.mxu0
        %v2016 = vmax.f32 %v2013, 0.0
        %v2017 = vpack.c.bf16 %v2016, %v2016
        %v2018 = vld [vmem:[%s13] sm:$0xf]
        %v2019 = vld [vmem:[%s13 + $0x4] sm:$0xf]
        %v2020 = vld [vmem:[%s13 + $0x8] sm:$0xf]
        %v2021 = vld [vmem:[%s13 + $0xc] sm:$0xf]
        %v2022 = vld [vmem:[%s13 + $0x10] sm:$0xf]
        %v2023 = vld [vmem:[%s13 + $0x14] sm:$0xf]
        %v2024 = vld [vmem:[%s13 + $0x18] sm:$0xf]
        %v2025 = vld [vmem:[%s13 + $0x1c] sm:$0xf]
        %v2026 = vld [vmem:[%s13 + $0x20] sm:$0xf]
        %v2027 = vld [vmem:[%s13 + $0x24] sm:$0xf]
        %v2028 = vld [vmem:[%s13 + $0x28] sm:$0xf]
        %v2029 = vld [vmem:[%s13 + $0x2c] sm:$0xf]
        %v2030 = vld [vmem:[%s13 + $0x30] sm:$0xf]
        %v2031 = vld [vmem:[%s13 + $0x34] sm:$0xf]
        %v2032 = vld [vmem:[%s13 + $0x38] sm:$0xf]
        %v2033 = vld [vmem:[%s13 + $0x3c] sm:$0xf]
        %v2034 = vld [vmem:[%s14] sm:$0x1]
        %v2036 = vperm.slane %v2034, 0
        %v2054 = vunpack.c.l.b16 %v2018
        %v2055 = vunpack.c.l.b16 %v2019
        %v2056 = vunpack.c.l.b16 %v2020
        %v2057 = vunpack.c.l.b16 %v2021
        %v2058 = vunpack.c.l.b16 %v2022
        %v2059 = vunpack.c.l.b16 %v2023
        %v2060 = vunpack.c.l.b16 %v2024
        %v2061 = vunpack.c.l.b16 %v2025
        %v2062 = vunpack.c.l.b16 %v2026
        %v2063 = vunpack.c.l.b16 %v2027
        %v2064 = vunpack.c.l.b16 %v2028
        %v2065 = vunpack.c.l.b16 %v2029
        %v2066 = vunpack.c.l.b16 %v2030
        %v2067 = vunpack.c.l.b16 %v2031
        %v2068 = vunpack.c.l.b16 %v2032
        %v2069 = vunpack.c.l.b16 %v2033
        %v2070 = vpack.c.b16 %v2055, %v2054
        %v2071 = vpack.c.b16 %v2057, %v2056
        %v2072 = vpack.c.b16 %v2059, %v2058
        %v2073 = vpack.c.b16 %v2061, %v2060
        %v2074 = vpack.c.b16 %v2063, %v2062
        %v2075 = vpack.c.b16 %v2065, %v2064
        %v2076 = vpack.c.b16 %v2067, %v2066
        %v2077 = vpack.c.b16 %v2069, %v2068
        %2086 = vmatpush.bf16.msra.mxu0 %v2077
        %2087 = vmatpush.bf16.msra.mxu0 %v2076
        %2088 = vmatpush.bf16.msra.mxu0 %v2075
        %2089 = vmatpush.bf16.msra.mxu0 %v2074
        %2090 = vmatpush.bf16.msra.mxu0 %v2073
        %2091 = vmatpush.bf16.msra.mxu0 %v2072
        %2092 = vmatpush.bf16.msra.mxu0 %v2071
        %2093 = vmatpush.bf16.msra.mxu0 %v2070
        %2094 = vmatmul.bf16.gmra.mxu0 %v2017
        %v2095 = vpop.f32.mrf.mxu0
        %v2096 = vadd.f32 %v2036, %v2095
        %v2097 = vpop.f32.mrf.mxu0
        %2098 = vdwg.mxu0
        %v2099 = vadd.f32 %v1933, %v2096
        %v2100 = vld [vmem:[%s15] sm:$0x1]
        %v2101 = vld [vmem:[%s16] sm:$0x1]
        %2102 = vadd.xlane.f32.xlu0 %v2099
        %v2103 = vpop.xlane.xlu0 %2102
        %v2104 = vmul.f32 %v2103, 0.03125
        %v2105 = vsub.f32 %v2099, %v2104
        %v2106 = vmul.f32 %v2105, %v2105
        %2107 = vadd.xlane.f32.xlu0 %v2106
        %v2108 = vpop.xlane.xlu0 %2107
        %v2109 = vmul.f32 %v2104, %v2104
        %v2110 = vmul.f32 %v2109, 96.0
        %v2111 = vsub.f32 %v2108, %v2110
        %v2112 = vmul.f32 %v2111, 0.03125
        %v2113 = vadd.f32 %v2112, 1e-05
        %v2114 = vrsqrt.pop %v2113
        %v2115 = vmul.f32 %v2114, %v2113
        %v2116 = vmul.f32 %v2115, %v2114
        %v2117 = vmul.f32 0.5, %v2116
        %v2118 = vsub.f32 1.5, %v2117
        %v2119 = vmul.f32 %v2114, %v2118
        %vm2120 = vweird.f32 %v2113
        %vm2121 = vweird.f32 %v2114
        %vm2122 = vmor %vm2120, %vm2121
        %v2123 = vsel %vm2122, %v2114, %v2119
        %v2124 = vmul.f32 %v2105, %v2123
        %v2126 = vperm.slane %v2100, 0
        %v2128 = vmul.f32 %v2124, %v2126
        %v2130 = vperm.slane %v2101, 0
        %v2132 = vadd.f32 %v2128, %v2130
        %2133 = vst [vmem:[%s553] sm:$0xff] %v2132
        %s2134 = sand.u32 %s415, 1
        %s2135 = scalar_lea.sflag [#allocation5], %s2134
        %s2136 = sand.u32 %s415, 1
        %s2137 = smul.addr %s2136, 8
        %s2138 = scalar_lea.vmem [#allocation4], %s2137
        // Predicated region
        $region93: #{tpu_custom_call.1} parent=87 // pred_check
          %p2139 = pneg %p425
        $region94: #{tpu_custom_call.1} parent=87 // pred_check_branch
          %2141 = sbr.rel (%p2139) target = $region96
        $region95: #{tpu_custom_call.1} parent=87 // pred_region
          %2143 = vsyncadd %s2135, 0
          %s2144 = sadd.s32 %s36, %s35
          %s2145 = smul.addr %s2144, 8
          %s2146 = scalar_lea.hbm %s17, %s2145
          %s2148 = sshll.u32 %s2138, 4
          %s2149 = int_to_ptr.vmem [resolvable:$true] %s2148
          %s2150 = sshll.u32 %s2146, 4
          %s2151 = int_to_ptr.hbm [resolvable:$true] %s2150
          %2153 = dma.vmem_to_hbm [thread:$0]  %s2149, 128, %s2151, %s2135
        $region96: #{tpu_custom_call.1} parent=87 // pred_fallthru
          _
      $region88: #{tpu_custom_call.1} parent=5 // pred_fallthru
        _
      %p2154 = scmp.le.s32.totalorder 2, %s26
      // Predicated region
      $region97: #{tpu_custom_call.1} parent=5 // pred_check
        %p2155 = pneg %p2154
      $region98: #{tpu_custom_call.1} parent=5 // pred_check_branch
        %2157 = sbr.rel (%p2155) target = $region100
      $region99: #{tpu_custom_call.1} parent=5 // pred_region
        %s2158 = ssub.s32 %s26, 2
        // Predicated region
        $region101: #{tpu_custom_call.1} parent=99 // pred_check
          %p2159 = pneg %p431
        $region102: #{tpu_custom_call.1} parent=99 // pred_check_branch
          %2161 = sbr.rel (%p2159) target = $region104
        $region103: #{tpu_custom_call.1} parent=99 // pred_region
          %s2162 = sand.u32 %s416, 1
          %s2163 = scalar_lea.sflag [#allocation5], %s2162
          %s2164 = sand.u32 %s416, 1
          %s2165 = smul.addr %s2164, 8
          %s2166 = scalar_lea.vmem [#allocation4], %s2165
          %2168 = dma.done %s2163, 128
        $region104: #{tpu_custom_call.1} parent=99 // pred_fallthru
          _
      $region100: #{tpu_custom_call.1} parent=5 // pred_fallthru
        _
    $region6: #{tpu_custom_call.1} parent=1 // loop_footer
      %s30 = sadd.s32 1, %s26
    $region7: #{tpu_custom_call.1} parent=1 // loop_footer_branch
      %25 = sbr.rel target = $region3
    $region8: #{tpu_custom_call.1} parent=1 // loop_exit
      _
    %2169 = vsyncpa [#allocation5], 1
    %s2170 = scalar_lea.sflag [#allocation5], 1
    %2171 = vsyncpa %s2170, 1

</llo_original>
